<compile_context>
chip_gen: v7x
topology: tpu7x:2x2x1
jax: 0.10.0
libtpu: 0.0.40
codegen_flags: <defaults>
</compile_context>

<pallas_src>
import jax
import jax.numpy as jnp
from jax import lax
from jax.experimental import pallas as pl
from jax.experimental.pallas import tpu as pltpu

N_EMBD = 650       # from the PyTorch module
NUM_HEADS = 2
HEAD_SIZE = 128
DROPOUT = 0.2      # eval-mode identity (see TODO below)


def _mha_kernel(x_ref, wqkv_ref, wproj_ref, bproj_ref, o_ref):
    # x_ref: (T, Cp) bf16, wqkv_ref: (Cp, 3*H*D) bf16,
    # wproj_ref: (H*D, Cp) bf16, bproj_ref: (1, Cp) f32, o_ref: (T, Cp) f32
    HD = NUM_HEADS * HEAD_SIZE
    D = HEAD_SIZE
    T = x_ref.shape[0]

    x = x_ref[...]                                                   # bf16 (T, Cp)
    # All heads' Q/K/V in one wide matmul (N = 3*H*D = 768 fills the MXU).
    qkv = jnp.dot(x, wqkv_ref[...], preferred_element_type=jnp.float32)  # (T, 3HD) f32
    q_all = qkv[:, 0 * HD:1 * HD]
    k_all = qkv[:, 1 * HD:2 * HD]
    v_all = qkv[:, 2 * HD:3 * HD]

    # Causal mask: computed once, reused for every head.
    row = lax.broadcasted_iota(jnp.int32, (T, T), 0)
    col = lax.broadcasted_iota(jnp.int32, (T, T), 1)
    causal = col <= row

    scale = HEAD_SIZE ** -0.5                       # k.shape[-1] ** (-0.5)
    neg_big = jnp.float32(-1e30)                    # finite -> no exp(-inf - -inf) NaN risk

    head_outs = []
    for h in range(NUM_HEADS):                      # static unroll, H = 2
        qh = q_all[:, h * D:(h + 1) * D].astype(jnp.bfloat16)
        kh = k_all[:, h * D:(h + 1) * D].astype(jnp.bfloat16)
        vh = v_all[:, h * D:(h + 1) * D].astype(jnp.bfloat16)

        # q @ k^T without materializing a transpose: contract last dims.
        s = lax.dot_general(qh, kh,
                            dimension_numbers=(((1,), (1,)), ((), ())),
                            preferred_element_type=jnp.float32) * scale   # (T, T)
        s = jnp.where(causal, s, neg_big)

        m = jnp.max(s, axis=-1, keepdims=True)
        e = jnp.exp(s - m)
        denom = jnp.sum(e, axis=-1, keepdims=True)
        p = e * pl.reciprocal(denom, approx=True)            # softmax(dim=-1), f32
        # TODO(synk): attention dropout (train-mode torch RNG) not reproduced;
        # implemented as eval-mode identity.
        head_outs.append(jnp.dot(p.astype(jnp.bfloat16), vh,
                                 preferred_element_type=jnp.float32))     # (T, D)

    heads = jnp.concatenate(head_outs, axis=-1).astype(jnp.bfloat16)      # (T, H*D)

    # Output projection (fused): (T, H*D) @ (H*D, Cp) + bias.
    y = jnp.dot(heads, wproj_ref[...], preferred_element_type=jnp.float32)
    y = y + bproj_ref[...]
    # TODO(synk): output dropout (train-mode torch RNG) not reproduced;
    # implemented as eval-mode identity.
    o_ref[...] = y.astype(o_ref.dtype)


def multi_head_attention(x, w_qkv, w_proj, b_proj):
    """x: (B, T, C) f32; w_qkv: (C, 3*H*D); w_proj: (H*D, C); b_proj: (C,)."""
    B, T, C = x.shape
    HD = NUM_HEADS * HEAD_SIZE
    Cp = ((C + 127) // 128) * 128        # pad embedding dim to a lane multiple (768)

    # Layout plumbing: zero-pad C -> Cp and cast matmul operands to bf16.
    # (In a real model the padded/cast weights would be prepared once.)
    x_p = jnp.zeros((B, T, Cp), jnp.bfloat16).at[:, :, :C].set(x.astype(jnp.bfloat16))
    wqkv_p = jnp.zeros((Cp, 3 * HD), jnp.bfloat16).at[:C, :].set(w_qkv.astype(jnp.bfloat16))
    wproj_p = jnp.zeros((HD, Cp), jnp.bfloat16).at[:, :C].set(w_proj.astype(jnp.bfloat16))
    bproj_p = jnp.zeros((1, Cp), jnp.float32).at[0, :C].set(b_proj)

    out_p = pl.pallas_call(
        _mha_kernel,
        out_shape=jax.ShapeDtypeStruct((B, T, Cp), jnp.float32),
        grid_spec=pltpu.PrefetchScalarGridSpec(
            num_scalar_prefetch=0,
            grid=(B,),
            in_specs=[
                pl.BlockSpec((pl.Squeezed(), T, Cp), lambda b: (b, 0, 0)),  # x (per batch)
                pl.BlockSpec((Cp, 3 * HD), lambda b: (0, 0)),               # stacked QKV W
                pl.BlockSpec((HD, Cp), lambda b: (0, 0)),                   # W_proj
                pl.BlockSpec((1, Cp), lambda b: (0, 0)),                    # b_proj
            ],
            out_specs=pl.BlockSpec((pl.Squeezed(), T, Cp), lambda b: (b, 0, 0)),
        ),
        compiler_params=pltpu.CompilerParams(
            dimension_semantics=("parallel",)),   # batch axis -> both TCs on v7x
    )(x_p, wqkv_p, wproj_p, bproj_p)

    return out_p[:, :, :C]


# pure-JAX f32 reference for correctness check
def _reference(x, wq, wk, wv, w_proj, b_proj):
    q = jnp.einsum('btc,hcd->bhtd', x, wq)
    k = jnp.einsum('btc,hcd->bhtd', x, wk)
    v = jnp.einsum('btc,hcd->bhtd', x, wv)
    s = jnp.einsum('bhtd,bhsd->bhts', q, k) * HEAD_SIZE ** -0.5
    T = x.shape[1]
    mask = jnp.tril(jnp.ones((T, T), dtype=bool))
    s = jnp.where(mask, s, -jnp.inf)
    p = jax.nn.softmax(s, axis=-1)
    o = jnp.einsum('bhts,bhsd->bhtd', p, v)
    o = jnp.transpose(o, (0, 2, 1, 3)).reshape(x.shape[0], T, -1)
    return o @ w_proj + b_proj


if __name__ == "__main__":
    B, T, C, H, D = 2, 64, N_EMBD, NUM_HEADS, HEAD_SIZE
    key = jax.random.PRNGKey(0)
    kx, kq, kk, kv, kw, kb = jax.random.split(key, 6)

    x = jax.random.normal(kx, (B, T, C), dtype=jnp.float32)

    # nn.Linear default init: U(-1/sqrt(in_features), 1/sqrt(in_features)).
    lim_qkv = 1.0 / (C ** 0.5)
    wq = jax.random.uniform(kq, (H, C, D), jnp.float32, -lim_qkv, lim_qkv)
    wk = jax.random.uniform(kk, (H, C, D), jnp.float32, -lim_qkv, lim_qkv)
    wv = jax.random.uniform(kv, (H, C, D), jnp.float32, -lim_qkv, lim_qkv)

    lim_p = 1.0 / ((H * D) ** 0.5)
    w_proj = jax.random.uniform(kw, (H * D, C), jnp.float32, -lim_p, lim_p)
    b_proj = jax.random.uniform(kb, (C,), jnp.float32, -lim_p, lim_p)

    # Stack per-head weights as (C, H*D) per projection, head h in columns
    # [h*D, (h+1)*D) (matches torch.cat order), then concat Q|K|V -> (C, 3*H*D).
    wq_s = jnp.transpose(wq, (1, 0, 2)).reshape(C, H * D)
    wk_s = jnp.transpose(wk, (1, 0, 2)).reshape(C, H * D)
    wv_s = jnp.transpose(wv, (1, 0, 2)).reshape(C, H * D)
    w_qkv = jnp.concatenate([wq_s, wk_s, wv_s], axis=1)

    out = multi_head_attention(x, w_qkv, w_proj, b_proj)
    out = jax.block_until_ready(out)

    ref = _reference(x, wq, wk, wv, w_proj, b_proj)
    assert out.shape == (B, T, C), out.shape
    max_err = jnp.max(jnp.abs(out - ref))
    # bf16 matmul operands (f32 accumulation) -> compare at bf16-level tolerance.
    assert jnp.allclose(out, ref, rtol=3e-2, atol=3e-2), f"max err {max_err}"
    print("KERNEL_OK")
</pallas_src>

<mosaic_0001>
module attributes {stable_mosaic.version = 11 : i64} {
  func.func @_mha_kernel(%arg0: i32, %arg1: memref<1x64x768xbf16, #tpu.memory_space<vmem>>, %arg2: memref<768x768xbf16, #tpu.memory_space<vmem>>, %arg3: memref<256x768xbf16, #tpu.memory_space<vmem>>, %arg4: memref<1x768xf32, #tpu.memory_space<vmem>>, %arg5: memref<1x64x768xf32, #tpu.memory_space<vmem>>) attributes {dimension_semantics = [#tpu.dimension_semantics<parallel>], iteration_bounds = array<i64: 2>, scalar_prefetch = 0 : i64, scratch_operands = 0 : i64, tpu.core_type = #tpu.core_type<tc>, window_params = [{transform_indices = @transform_0, window_bounds = array<i64: 1, 64, 768>}, {pipeline_mode = #tpu.pipeline_mode<synchronous>, transform_indices = @transform_1, window_bounds = array<i64: 768, 768>}, {pipeline_mode = #tpu.pipeline_mode<synchronous>, transform_indices = @transform_2, window_bounds = array<i64: 256, 768>}, {pipeline_mode = #tpu.pipeline_mode<synchronous>, transform_indices = @transform_3, window_bounds = array<i64: 1, 768>}, {transform_indices = @transform_4, window_bounds = array<i64: 1, 64, 768>}]} {
    %c0 = arith.constant 0 : index
    %c0_0 = arith.constant 0 : index
    %c0_1 = arith.constant 0 : index
    %0 = vector.load %arg1[%c0, %c0_0, %c0_1] : memref<1x64x768xbf16, #tpu.memory_space<vmem>>, vector<1x64x768xbf16>
    %1 = vector.shape_cast %0 : vector<1x64x768xbf16> to vector<64x768xbf16>
    %c0_2 = arith.constant 0 : index
    %c0_3 = arith.constant 0 : index
    %2 = vector.load %arg2[%c0_2, %c0_3] : memref<768x768xbf16, #tpu.memory_space<vmem>>, vector<768x768xbf16>
    %cst = arith.constant dense<0.000000e+00> : vector<64x768xf32>
    %3 = tpu.matmul %1, %2, %cst {dimension_numbers = #tpu.dot_dimension_numbers<[1], [0], [0], [1], [0, 0, 1, 1], [], []>} : vector<64x768xbf16>, vector<768x768xbf16>, vector<64x768xf32> -> vector<64x768xf32>
    %4 = vector.extract_strided_slice %3 {offsets = [0, 0], sizes = [64, 256], strides = [1, 1]} : vector<64x768xf32> to vector<64x256xf32>
    %5 = vector.extract_strided_slice %3 {offsets = [0, 256], sizes = [64, 256], strides = [1, 1]} : vector<64x768xf32> to vector<64x256xf32>
    %6 = vector.extract_strided_slice %3 {offsets = [0, 512], sizes = [64, 256], strides = [1, 1]} : vector<64x768xf32> to vector<64x256xf32>
    %7 = tpu.iota {dimensions = array<i32: 0>} : vector<64x64xi32>
    %8 = tpu.iota {dimensions = array<i32: 1>} : vector<64x64xi32>
    %9 = arith.cmpi sle, %8, %7 : vector<64x64xi32>
    %10 = vector.extract_strided_slice %4 {offsets = [0, 0], sizes = [64, 128], strides = [1, 1]} : vector<64x256xf32> to vector<64x128xf32>
    %11 = arith.truncf %10 : vector<64x128xf32> to vector<64x128xbf16>
    %12 = vector.extract_strided_slice %5 {offsets = [0, 0], sizes = [64, 128], strides = [1, 1]} : vector<64x256xf32> to vector<64x128xf32>
    %13 = arith.truncf %12 : vector<64x128xf32> to vector<64x128xbf16>
    %14 = vector.extract_strided_slice %6 {offsets = [0, 0], sizes = [64, 128], strides = [1, 1]} : vector<64x256xf32> to vector<64x128xf32>
    %15 = arith.truncf %14 : vector<64x128xf32> to vector<64x128xbf16>
    %cst_4 = arith.constant dense<0.000000e+00> : vector<64x64xf32>
    %16 = tpu.matmul %11, %13, %cst_4 {dimension_numbers = #tpu.dot_dimension_numbers<[1], [1], [0], [0], [0, 0, 1, 0], [], []>} : vector<64x128xbf16>, vector<64x128xbf16>, vector<64x64xf32> -> vector<64x64xf32>
    %cst_5 = arith.constant 0.0883883461 : f32
    %17 = vector.broadcast %cst_5 : f32 to vector<64x64xf32>
    %18 = arith.mulf %16, %17 : vector<64x64xf32>
    %cst_6 = arith.constant -1.000000e+30 : f32
    %19 = vector.broadcast %cst_6 : f32 to vector<64x64xf32>
    %20 = arith.select %9, %18, %19 : vector<64x64xi1>, vector<64x64xf32>
    %cst_7 = arith.constant dense<0xFF800000> : vector<64xf32>
    %21 = vector.multi_reduction <maximumf>, %20, %cst_7 [1] : vector<64x64xf32> to vector<64xf32>
    %22 = vector.shape_cast %21 : vector<64xf32> to vector<64x1xf32>
    %23 = vector.broadcast %22 : vector<64x1xf32> to vector<64x64xf32>
    %24 = arith.subf %20, %23 : vector<64x64xf32>
    %25 = math.exp %24 : vector<64x64xf32>
    %cst_8 = arith.constant dense<0.000000e+00> : vector<64xf32>
    %26 = vector.multi_reduction <add>, %25, %cst_8 [1] : vector<64x64xf32> to vector<64xf32>
    %27 = vector.shape_cast %26 : vector<64xf32> to vector<64x1xf32>
    %28 = tpu.reciprocal %27 {approx = true} : vector<64x1xf32> -> vector<64x1xf32>
    %29 = vector.broadcast %28 : vector<64x1xf32> to vector<64x64xf32>
    %30 = arith.mulf %25, %29 : vector<64x64xf32>
    %31 = arith.truncf %30 : vector<64x64xf32> to vector<64x64xbf16>
    %cst_9 = arith.constant dense<0.000000e+00> : vector<64x128xf32>
    %32 = tpu.matmul %31, %15, %cst_9 {dimension_numbers = #tpu.dot_dimension_numbers<[1], [0], [0], [1], [0, 0, 1, 1], [], []>} : vector<64x64xbf16>, vector<64x128xbf16>, vector<64x128xf32> -> vector<64x128xf32>
    %33 = vector.extract_strided_slice %4 {offsets = [0, 128], sizes = [64, 128], strides = [1, 1]} : vector<64x256xf32> to vector<64x128xf32>
    %34 = arith.truncf %33 : vector<64x128xf32> to vector<64x128xbf16>
    %35 = vector.extract_strided_slice %5 {offsets = [0, 128], sizes = [64, 128], strides = [1, 1]} : vector<64x256xf32> to vector<64x128xf32>
    %36 = arith.truncf %35 : vector<64x128xf32> to vector<64x128xbf16>
    %37 = vector.extract_strided_slice %6 {offsets = [0, 128], sizes = [64, 128], strides = [1, 1]} : vector<64x256xf32> to vector<64x128xf32>
    %38 = arith.truncf %37 : vector<64x128xf32> to vector<64x128xbf16>
    %cst_10 = arith.constant dense<0.000000e+00> : vector<64x64xf32>
    %39 = tpu.matmul %34, %36, %cst_10 {dimension_numbers = #tpu.dot_dimension_numbers<[1], [1], [0], [0], [0, 0, 1, 0], [], []>} : vector<64x128xbf16>, vector<64x128xbf16>, vector<64x64xf32> -> vector<64x64xf32>
    %cst_11 = arith.constant 0.0883883461 : f32
    %40 = vector.broadcast %cst_11 : f32 to vector<64x64xf32>
    %41 = arith.mulf %39, %40 : vector<64x64xf32>
    %cst_12 = arith.constant -1.000000e+30 : f32
    %42 = vector.broadcast %cst_12 : f32 to vector<64x64xf32>
    %43 = arith.select %9, %41, %42 : vector<64x64xi1>, vector<64x64xf32>
    %cst_13 = arith.constant dense<0xFF800000> : vector<64xf32>
    %44 = vector.multi_reduction <maximumf>, %43, %cst_13 [1] : vector<64x64xf32> to vector<64xf32>
    %45 = vector.shape_cast %44 : vector<64xf32> to vector<64x1xf32>
    %46 = vector.broadcast %45 : vector<64x1xf32> to vector<64x64xf32>
    %47 = arith.subf %43, %46 : vector<64x64xf32>
    %48 = math.exp %47 : vector<64x64xf32>
    %cst_14 = arith.constant dense<0.000000e+00> : vector<64xf32>
    %49 = vector.multi_reduction <add>, %48, %cst_14 [1] : vector<64x64xf32> to vector<64xf32>
    %50 = vector.shape_cast %49 : vector<64xf32> to vector<64x1xf32>
    %51 = tpu.reciprocal %50 {approx = true} : vector<64x1xf32> -> vector<64x1xf32>
    %52 = vector.broadcast %51 : vector<64x1xf32> to vector<64x64xf32>
    %53 = arith.mulf %48, %52 : vector<64x64xf32>
    %54 = arith.truncf %53 : vector<64x64xf32> to vector<64x64xbf16>
    %cst_15 = arith.constant dense<0.000000e+00> : vector<64x128xf32>
    %55 = tpu.matmul %54, %38, %cst_15 {dimension_numbers = #tpu.dot_dimension_numbers<[1], [0], [0], [1], [0, 0, 1, 1], [], []>} : vector<64x64xbf16>, vector<64x128xbf16>, vector<64x128xf32> -> vector<64x128xf32>
    %56 = tpu.concatenate %32, %55 in 1 : vector<64x128xf32>, vector<64x128xf32> -> vector<64x256xf32>
    %57 = arith.truncf %56 : vector<64x256xf32> to vector<64x256xbf16>
    %c0_16 = arith.constant 0 : index
    %c0_17 = arith.constant 0 : index
    %58 = vector.load %arg3[%c0_16, %c0_17] : memref<256x768xbf16, #tpu.memory_space<vmem>>, vector<256x768xbf16>
    %cst_18 = arith.constant dense<0.000000e+00> : vector<64x768xf32>
    %59 = tpu.matmul %57, %58, %cst_18 {dimension_numbers = #tpu.dot_dimension_numbers<[1], [0], [0], [1], [0, 0, 1, 1], [], []>} : vector<64x256xbf16>, vector<256x768xbf16>, vector<64x768xf32> -> vector<64x768xf32>
    %c0_19 = arith.constant 0 : index
    %c0_20 = arith.constant 0 : index
    %60 = vector.load %arg4[%c0_19, %c0_20] : memref<1x768xf32, #tpu.memory_space<vmem>>, vector<1x768xf32>
    %61 = vector.broadcast %60 : vector<1x768xf32> to vector<64x768xf32>
    %62 = arith.addf %59, %61 : vector<64x768xf32>
    %c0_21 = arith.constant 0 : index
    %c0_22 = arith.constant 0 : index
    %c0_23 = arith.constant 0 : index
    %63 = vector.load %arg5[%c0_21, %c0_22, %c0_23] : memref<1x64x768xf32, #tpu.memory_space<vmem>>, vector<1x64x768xf32>
    %64 = vector.shape_cast %63 : vector<1x64x768xf32> to vector<64x768xf32>
    %65 = vector.shape_cast %62 : vector<64x768xf32> to vector<1x64x768xf32>
    tpu.vector_store %arg5[%c0_21, %c0_22, %c0_23], %65 {strides = array<i32>} : memref<1x64x768xf32, #tpu.memory_space<vmem>>, vector<1x64x768xf32>,
    return
  }
  func.func @transform_0(%arg0: i32) -> (i32, i32, i32) {
    %c0_i32 = arith.constant 0 : i32
    %c0_i32_0 = arith.constant 0 : i32
    %c0_i32_1 = arith.constant 0 : i32
    return %arg0, %c0_i32, %c0_i32_0 : i32, i32, i32
  }
  func.func @transform_1(%arg0: i32) -> (i32, i32) {
    %c0_i32 = arith.constant 0 : i32
    %c0_i32_0 = arith.constant 0 : i32
    %c0_i32_1 = arith.constant 0 : i32
    return %c0_i32, %c0_i32_0 : i32, i32
  }
  func.func @transform_2(%arg0: i32) -> (i32, i32) {
    %c0_i32 = arith.constant 0 : i32
    %c0_i32_0 = arith.constant 0 : i32
    %c0_i32_1 = arith.constant 0 : i32
    return %c0_i32, %c0_i32_0 : i32, i32
  }
  func.func @transform_3(%arg0: i32) -> (i32, i32) {
    %c0_i32 = arith.constant 0 : i32
    %c0_i32_0 = arith.constant 0 : i32
    %c0_i32_1 = arith.constant 0 : i32
    return %c0_i32, %c0_i32_0 : i32, i32
  }
  func.func @transform_4(%arg0: i32) -> (i32, i32, i32) {
    %c0_i32 = arith.constant 0 : i32
    %c0_i32_0 = arith.constant 0 : i32
    %c0_i32_1 = arith.constant 0 : i32
    return %arg0, %c0_i32, %c0_i32_0 : i32, i32, i32
  }
}

</mosaic_0001>

<llo_original>
// kernel: tpu_custom_call.1
$region0: #{tpu_custom_call.1}
  #allocation0 [shape = 'u32[]', space=smem, size = 0x4, offset = 0x4, fixed_abs, tag = 'smem constant byte address 0x4 - core index']
  #allocation1 [shape = 'u32[144,128]{1,0:T(1,128)}', space=vmem, size = 0x12000, scoped, tag = 'internal scratch']
  %s0 = inlined_call_operand.hbm [shape: bf16[2,64,768], index: 0, kind: input, shape index: {}]
  %s1 = inlined_call_operand.hbm [shape: bf16[768,768], index: 1, kind: input, shape index: {}]
  %s2 = inlined_call_operand.hbm [shape: bf16[256,768], index: 2, kind: input, shape index: {}]
  %s3 = inlined_call_operand.hbm [shape: f32[1,768], index: 3, kind: input, shape index: {}]
  %s4 = inlined_call_operand.hbm [shape: f32[2,64,768], index: 4, kind: output, shape index: {}]
  %s5 = sld [smem:[#allocation0]]
  $region65: #{tpu_custom_call.1} parent=0
    _
  %s7 = ssub.s32 1, %s5
  %s8 = scalar_select 0, %s7, %s5
  $region1: #{tpu_custom_call.1} parent=0
    #allocation2 [shape = 'u8[196608]{0}', space=vmem, size = 0x30000, scoped, tag = 'input window, operand 0']
    #allocation3 [shape = 's32[2]{0}', space=sflag, size = 0x8, scoped, tag = 'scoped memory for tpu_custom_call.1']
    #allocation4 [shape = 's32[2]{0}', space=sflag, size = 0x8, scoped, tag = 'scoped memory for tpu_custom_call.1']
    #allocation5 [shape = 'u8[1179648]{0}', space=vmem, size = 0x120000, scoped, tag = 'input window, operand 1, single buffered']
    #allocation6 [shape = 's32[1]{0}', space=sflag, size = 0x4, scoped, tag = 'scoped memory for tpu_custom_call.1']
    #allocation7 [shape = 'u8[393216]{0}', space=vmem, size = 0x60000, scoped, tag = 'input window, operand 2, single buffered']
    #allocation8 [shape = 'u8[3072]{0}', space=vmem, size = 0xc00, scoped, tag = 'input window, operand 3, single buffered']
    #allocation9 [shape = 's32[1]{0}', space=sflag, size = 0x4, scoped, tag = 'scoped memory for tpu_custom_call.1']
    #allocation10 [shape = 'u8[393216]{0}', space=vmem, size = 0x60000, scoped, tag = 'output window, operand 0']
    %9 = vsyncpa [#allocation3], 0
    %s10 = scalar_lea.sflag [#allocation3], 1
    %11 = vsyncpa %s10, 0
    %12 = vsyncpa [#allocation6], 0
    %13 = vsyncpa [#allocation9], 0
    %14 = vsyncpa [#allocation4], 0
    %s15 = scalar_lea.sflag [#allocation4], 1
    %16 = vsyncpa %s15, 0
    loop: start=0, step=1, limit=4
    $region2: #{tpu_custom_call.1} parent=1 // loop_pre_header
      _
    $region3: #{tpu_custom_call.1} parent=1 // loop_header
      %s18 = sphi 0, %s22
      %p19 = scmp.ge.s32.totalorder %s18, 4
      %s28 = sphi 0, %s30
      %s31 = sphi 0, %s28
      %s32 = sphi 0, %s31
      %s48 = sphi 0, %s32
      %s52 = sphi 0, %s52
      %s54 = sphi 0, %s52
      %s55 = sphi 0, %s54
      %s69 = sphi 0, %s55
      %s73 = sphi 0, %s73
      %s75 = sphi 0, %s73
      %s76 = sphi 0, %s75
      %s90 = sphi 0, %s76
      %s94 = sphi 0, %s94
      %s96 = sphi 0, %s94
      %s97 = sphi 0, %s96
      %s111 = sphi 0, %s97
      %s117 = sphi 0, %s119
      %s120 = sphi 0, %s117
      %s121 = sphi 0, %s120
      %s137 = sphi 0, %s121
    $region4: #{tpu_custom_call.1} parent=1 // loop_header_branch
      %21 = sbr.rel (%p19) target = $region8
    $region5: #{tpu_custom_call.1} parent=1 // loop_body
      %s23 = ssub.s32 %s18, 1
      %s24 = ssub.s32 %s18, 2
      %s25 = sadd.s32 %s18, 1
      %s26 = ssub.s32 %s18, %s25
      %p27 = scmp.eq.s32.totalorder %s26, 0
      %s29 = sadd.s32 %s28, 1
      %s30 = scalar_select %p27, %s28, %s29
      %p33 = pneg %p27
      %p34 = scmp.eq.s32.totalorder %s18, 1
      %p35 = por %p33, %p34
      %p36 = scmp.ne.s32.totalorder %s28, %s31
      %p37 = scmp.eq.s32.totalorder %s18, 0
      %p38 = por %p36, %p37
      %p39 = scmp.ne.s32.totalorder %s28, %s31
      %p40 = scmp.eq.s32.totalorder %s23, 1
      %p41 = por %p39, %p40
      %p42 = scmp.ne.s32.totalorder %s31, %s32
      %p43 = scmp.eq.s32.totalorder %s23, 0
      %p44 = por %p42, %p43
      %p45 = scmp.ne.s32.totalorder %s31, %s32
      %p46 = scmp.eq.s32.totalorder %s24, 1
      %p47 = por %p45, %p46
      %p49 = scmp.ne.s32.totalorder %s32, %s48
      %p50 = scmp.eq.s32.totalorder %s24, 0
      %p51 = por %p49, %p50
      %s53 = sadd.s32 %s52, 1
      %p56 = scmp.eq.s32.totalorder %s18, 1
      %p57 = scmp.ne.s32.totalorder %s52, %s54
      %p58 = scmp.eq.s32.totalorder %s18, 0
      %p59 = por %p57, %p58
      %p60 = scmp.ne.s32.totalorder %s52, %s54
      %p61 = scmp.eq.s32.totalorder %s23, 1
      %p62 = por %p60, %p61
      %p63 = scmp.ne.s32.totalorder %s54, %s55
      %p64 = scmp.eq.s32.totalorder %s23, 0
      %p65 = por %p63, %p64
      %p66 = scmp.ne.s32.totalorder %s54, %s55
      %p67 = scmp.eq.s32.totalorder %s24, 1
      %p68 = por %p66, %p67
      %p70 = scmp.ne.s32.totalorder %s55, %s69
      %p71 = scmp.eq.s32.totalorder %s24, 0
      %p72 = por %p70, %p71
      %s74 = sadd.s32 %s73, 1
      %p77 = scmp.eq.s32.totalorder %s18, 1
      %p78 = scmp.ne.s32.totalorder %s73, %s75
      %p79 = scmp.eq.s32.totalorder %s18, 0
      %p80 = por %p78, %p79
      %p81 = scmp.ne.s32.totalorder %s73, %s75
      %p82 = scmp.eq.s32.totalorder %s23, 1
      %p83 = por %p81, %p82
      %p84 = scmp.ne.s32.totalorder %s75, %s76
      %p85 = scmp.eq.s32.totalorder %s23, 0
      %p86 = por %p84, %p85
      %p87 = scmp.ne.s32.totalorder %s75, %s76
      %p88 = scmp.eq.s32.totalorder %s24, 1
      %p89 = por %p87, %p88
      %p91 = scmp.ne.s32.totalorder %s76, %s90
      %p92 = scmp.eq.s32.totalorder %s24, 0
      %p93 = por %p91, %p92
      %s95 = sadd.s32 %s94, 1
      %p98 = scmp.eq.s32.totalorder %s18, 1
      %p99 = scmp.ne.s32.totalorder %s94, %s96
      %p100 = scmp.eq.s32.totalorder %s18, 0
      %p101 = por %p99, %p100
      %p102 = scmp.ne.s32.totalorder %s94, %s96
      %p103 = scmp.eq.s32.totalorder %s23, 1
      %p104 = por %p102, %p103
      %p105 = scmp.ne.s32.totalorder %s96, %s97
      %p106 = scmp.eq.s32.totalorder %s23, 0
      %p107 = por %p105, %p106
      %p108 = scmp.ne.s32.totalorder %s96, %s97
      %p109 = scmp.eq.s32.totalorder %s24, 1
      %p110 = por %p108, %p109
      %p112 = scmp.ne.s32.totalorder %s97, %s111
      %p113 = scmp.eq.s32.totalorder %s24, 0
      %p114 = por %p112, %p113
      %s115 = ssub.s32 %s18, %s25
      %p116 = scmp.eq.s32.totalorder %s115, 0
      %s118 = sadd.s32 %s117, 1
      %s119 = scalar_select %p116, %s117, %s118
      %p122 = pneg %p116
      %p123 = scmp.eq.s32.totalorder %s18, 1
      %p124 = por %p122, %p123
      %p125 = scmp.ne.s32.totalorder %s117, %s120
      %p126 = scmp.eq.s32.totalorder %s18, 0
      %p127 = por %p125, %p126
      %p128 = scmp.ne.s32.totalorder %s117, %s120
      %p129 = scmp.eq.s32.totalorder %s23, 1
      %p130 = por %p128, %p129
      %p131 = scmp.ne.s32.totalorder %s120, %s121
      %p132 = scmp.eq.s32.totalorder %s23, 0
      %p133 = por %p131, %p132
      %p134 = scmp.ne.s32.totalorder %s120, %s121
      %p135 = scmp.eq.s32.totalorder %s24, 1
      %p136 = por %p134, %p135
      %p138 = scmp.ne.s32.totalorder %s121, %s137
      %p139 = scmp.eq.s32.totalorder %s24, 0
      %p140 = por %p138, %p139
      %p141 = scmp.le.s32.totalorder 1, %s18
      %p142 = scmp.lt.s32.totalorder %s18, 3
      %p143 = pnand %p141, %p142
      %p144 = pneg %p143
      // Predicated region
      $region9: #{tpu_custom_call.1} parent=5 // pred_check
        _
      $region10: #{tpu_custom_call.1} parent=5 // pred_check_branch
        %146 = sbr.rel (%p143) target = $region12
      $region11: #{tpu_custom_call.1} parent=5 // pred_region
        %s147 = ssub.s32 %s18, 1
        // Predicated region
        $region13: #{tpu_custom_call.1} parent=11 // pred_check
          %p148 = pneg %p65
        $region14: #{tpu_custom_call.1} parent=11 // pred_check_branch
          %150 = sbr.rel (%p148) target = $region16
        $region15: #{tpu_custom_call.1} parent=11 // pred_region
          %s152 = ssub.s32 36864, 36864
          %153 = vsyncadd [#allocation6], %s152
          %s154 = sshll.u32 [#allocation5], 4
          %s155 = int_to_ptr.vmem [resolvable:$true] %s154
          %160 = dma.hbm_to_vmem [thread:$0]  %s1, 36864, %s155, [#allocation6], 384, 384, 24
        $region16: #{tpu_custom_call.1} parent=11 // pred_fallthru
          _
        // Predicated region
        $region17: #{tpu_custom_call.1} parent=11 // pred_check
          %p161 = pneg %p86
        $region18: #{tpu_custom_call.1} parent=11 // pred_check_branch
          %163 = sbr.rel (%p161) target = $region20
        $region19: #{tpu_custom_call.1} parent=11 // pred_region
          %s165 = ssub.s32 12288, 12288
          %166 = vsyncadd [#allocation6], %s165
          %s167 = sshll.u32 [#allocation7], 4
          %s168 = int_to_ptr.vmem [resolvable:$true] %s167
          %173 = dma.hbm_to_vmem [thread:$0]  %s2, 12288, %s168, [#allocation6], 384, 384, 24
        $region20: #{tpu_custom_call.1} parent=11 // pred_fallthru
          _
        // Predicated region
        $region21: #{tpu_custom_call.1} parent=11 // pred_check
          %p174 = pneg %p107
        $region22: #{tpu_custom_call.1} parent=11 // pred_check_branch
          %176 = sbr.rel (%p174) target = $region24
        $region23: #{tpu_custom_call.1} parent=11 // pred_region
          %s178 = ssub.s32 96, 96
          %179 = vsyncadd [#allocation9], %s178
          %s181 = sshll.u32 [#allocation8], 4
          %s182 = int_to_ptr.vmem [resolvable:$true] %s181
          %184 = dma.hbm_to_vmem [thread:$0]  %s3, 96, %s182, [#allocation9]
        $region24: #{tpu_custom_call.1} parent=11 // pred_fallthru
          _
      $region12: #{tpu_custom_call.1} parent=5 // pred_fallthru
        _
      %p185 = scmp.lt.s32.totalorder %s18, 2
      // Predicated region
      $region25: #{tpu_custom_call.1} parent=5 // pred_check
        %p186 = pneg %p185
      $region26: #{tpu_custom_call.1} parent=5 // pred_check_branch
        %188 = sbr.rel (%p186) target = $region28
      $region27: #{tpu_custom_call.1} parent=5 // pred_region
        // Predicated region
        $region29: #{tpu_custom_call.1} parent=27 // pred_check
          %p189 = pneg %p38
        $region30: #{tpu_custom_call.1} parent=27 // pred_check_branch
          %191 = sbr.rel (%p189) target = $region32
        $region31: #{tpu_custom_call.1} parent=27 // pred_region
          %s192 = sand.u32 %s28, 1
          %s193 = scalar_lea.sflag [#allocation3], %s192
          %s194 = sand.u32 %s28, 1
          %s195 = smul.addr %s194, 192
          %s196 = scalar_lea.vmem [#allocation2], %s195
          %s198 = ssub.s32 3072, 3072
          %199 = vsyncadd %s193, %s198
          %s200 = smul.addr %s18, 48
          %s201 = smul.addr %s200, 64
          %s202 = scalar_lea.hbm %s0, %s201
          %s203 = sshll.u32 %s196, 4
          %s204 = int_to_ptr.vmem [resolvable:$true] %s203
          %209 = dma.hbm_to_vmem [thread:$0]  %s202, 3072, %s204, %s193, 384, 384, 24
        $region32: #{tpu_custom_call.1} parent=27 // pred_fallthru
          _
      $region28: #{tpu_custom_call.1} parent=5 // pred_fallthru
        _
      %p210 = scmp.le.s32.totalorder 1, %s18
      %p211 = scmp.lt.s32.totalorder %s18, 3
      %p212 = pnand %p210, %p211
      %p213 = pneg %p212
      // Predicated region
      $region33: #{tpu_custom_call.1} parent=5 // pred_check
        _
      $region34: #{tpu_custom_call.1} parent=5 // pred_check_branch
        %215 = sbr.rel (%p212) target = $region36
      $region35: #{tpu_custom_call.1} parent=5 // pred_region
        %s216 = ssub.s32 %s18, 1
        %s217 = sand.u32 %s31, 1
        %s218 = scalar_lea.sflag [#allocation3], %s217
        %s219 = sand.u32 %s31, 1
        %s220 = smul.addr %s219, 192
        %s221 = scalar_lea.vmem [#allocation2], %s220
        // Predicated region
        $region37: #{tpu_custom_call.1} parent=35 // pred_check
          %p222 = pneg %p44
        $region38: #{tpu_custom_call.1} parent=35 // pred_check_branch
          %224 = sbr.rel (%p222) target = $region40
        $region39: #{tpu_custom_call.1} parent=35 // pred_region
          %225 = dma.done %s218, 3072
        $region40: #{tpu_custom_call.1} parent=35 // pred_fallthru
          _
        // Predicated region
        $region41: #{tpu_custom_call.1} parent=35 // pred_check
          %p226 = pneg %p65
        $region42: #{tpu_custom_call.1} parent=35 // pred_check_branch
          %228 = sbr.rel (%p226) target = $region44
        $region43: #{tpu_custom_call.1} parent=35 // pred_region
          %229 = dma.done [#allocation6], 36864
        $region44: #{tpu_custom_call.1} parent=35 // pred_fallthru
          _
        // Predicated region
        $region45: #{tpu_custom_call.1} parent=35 // pred_check
          %p230 = pneg %p86
        $region46: #{tpu_custom_call.1} parent=35 // pred_check_branch
          %232 = sbr.rel (%p230) target = $region48
        $region47: #{tpu_custom_call.1} parent=35 // pred_region
          %233 = dma.done [#allocation6], 12288
        $region48: #{tpu_custom_call.1} parent=35 // pred_fallthru
          _
        // Predicated region
        $region49: #{tpu_custom_call.1} parent=35 // pred_check
          %p234 = pneg %p107
        $region50: #{tpu_custom_call.1} parent=35 // pred_check_branch
          %236 = sbr.rel (%p234) target = $region52
        $region51: #{tpu_custom_call.1} parent=35 // pred_region
          %237 = dma.done [#allocation9], 96
        $region52: #{tpu_custom_call.1} parent=35 // pred_fallthru
          _
        %s238 = sand.u32 %s31, 1
        %s239 = scalar_lea.sflag [#allocation3], %s238
        %s240 = sand.u32 %s31, 1
        %s241 = smul.addr %s240, 192
        %s242 = scalar_lea.vmem [#allocation2], %s241
        %p243 = pneg %p44
        %p244 = pneg %p41
        %p245 = pneg %p65
        %p246 = pneg %p62
        %p247 = pneg %p86
        %p248 = pneg %p83
        %p249 = pneg %p107
        %p250 = pneg %p104
        %p251 = pneg %p133
        %p252 = pneg %p130
        %s253 = sand.u32 %s120, 1
        %s254 = scalar_lea.sflag [#allocation4], %s253
        %s255 = sand.u32 %s120, 1
        %s256 = smul.addr %s255, 384
        %s257 = scalar_lea.vmem [#allocation10], %s256
        %v259 = vld [vmem:[%s221] sm:$0xff]
        %v260 = vld [vmem:[%s221 + $0x8] sm:$0xff]
        %v261 = vld [vmem:[%s221 + $0x10] sm:$0xff]
        %v262 = vld [vmem:[%s221 + $0x18] sm:$0xff]
        %v263 = vld [vmem:[%s221 + $0x20] sm:$0xff]
        %v264 = vld [vmem:[%s221 + $0x28] sm:$0xff]
        %v265 = vld [vmem:[%s221 + $0x30] sm:$0xff]
        %v266 = vld [vmem:[%s221 + $0x38] sm:$0xff]
        %v267 = vld [vmem:[%s221 + $0x40] sm:$0xff]
        %v268 = vld [vmem:[%s221 + $0x48] sm:$0xff]
        %v269 = vld [vmem:[%s221 + $0x50] sm:$0xff]
        %v270 = vld [vmem:[%s221 + $0x58] sm:$0xff]
        %v271 = vld [vmem:[%s221 + $0x60] sm:$0xff]
        %v272 = vld [vmem:[%s221 + $0x68] sm:$0xff]
        %v273 = vld [vmem:[%s221 + $0x70] sm:$0xff]
        %v274 = vld [vmem:[%s221 + $0x78] sm:$0xff]
        %v275 = vld [vmem:[%s221 + $0x80] sm:$0xff]
        %v276 = vld [vmem:[%s221 + $0x88] sm:$0xff]
        %v277 = vld [vmem:[%s221 + $0x90] sm:$0xff]
        %v278 = vld [vmem:[%s221 + $0x98] sm:$0xff]
        %v279 = vld [vmem:[%s221 + $0xa0] sm:$0xff]
        %v280 = vld [vmem:[%s221 + $0xa8] sm:$0xff]
        %v281 = vld [vmem:[%s221 + $0xb0] sm:$0xff]
        %v282 = vld [vmem:[%s221 + $0xb8] sm:$0xff]
        %v283 = vld [vmem:[#allocation5] sm:$0xff]
        %v284 = vld [vmem:[#allocation5 + $0x8] sm:$0xff]
        %v285 = vld [vmem:[#allocation5 + $0x10] sm:$0xff]
        %v286 = vld [vmem:[#allocation5 + $0x18] sm:$0xff]
        %v287 = vld [vmem:[#allocation5 + $0x20] sm:$0xff]
        %v288 = vld [vmem:[#allocation5 + $0x28] sm:$0xff]
        %v289 = vld [vmem:[#allocation5 + $0x30] sm:$0xff]
        %v290 = vld [vmem:[#allocation5 + $0x38] sm:$0xff]
        %v291 = vld [vmem:[#allocation5 + $0x40] sm:$0xff]
        %v292 = vld [vmem:[#allocation5 + $0x48] sm:$0xff]
        %v293 = vld [vmem:[#allocation5 + $0x50] sm:$0xff]
        %v294 = vld [vmem:[#allocation5 + $0x58] sm:$0xff]
        %v295 = vld [vmem:[#allocation5 + $0x60] sm:$0xff]
        %v296 = vld [vmem:[#allocation5 + $0x68] sm:$0xff]
        %v297 = vld [vmem:[#allocation5 + $0x70] sm:$0xff]
        %v298 = vld [vmem:[#allocation5 + $0x78] sm:$0xff]
        %v299 = vld [vmem:[#allocation5 + $0x80] sm:$0xff]
        %v300 = vld [vmem:[#allocation5 + $0x88] sm:$0xff]
        %v301 = vld [vmem:[#allocation5 + $0x90] sm:$0xff]
        %v302 = vld [vmem:[#allocation5 + $0x98] sm:$0xff]
        %v303 = vld [vmem:[#allocation5 + $0xa0] sm:$0xff]
        %v304 = vld [vmem:[#allocation5 + $0xa8] sm:$0xff]
        %v305 = vld [vmem:[#allocation5 + $0xb0] sm:$0xff]
        %v306 = vld [vmem:[#allocation5 + $0xb8] sm:$0xff]
        %v307 = vld [vmem:[#allocation5 + $0xc0] sm:$0xff]
        %v308 = vld [vmem:[#allocation5 + $0xc8] sm:$0xff]
        %v309 = vld [vmem:[#allocation5 + $0xd0] sm:$0xff]
        %v310 = vld [vmem:[#allocation5 + $0xd8] sm:$0xff]
        %v311 = vld [vmem:[#allocation5 + $0xe0] sm:$0xff]
        %v312 = vld [vmem:[#allocation5 + $0xe8] sm:$0xff]
        %v313 = vld [vmem:[#allocation5 + $0xf0] sm:$0xff]
        %v314 = vld [vmem:[#allocation5 + $0xf8] sm:$0xff]
        %v315 = vld [vmem:[#allocation5 + $0x100] sm:$0xff]
        %v316 = vld [vmem:[#allocation5 + $0x108] sm:$0xff]
        %v317 = vld [vmem:[#allocation5 + $0x110] sm:$0xff]
        %v318 = vld [vmem:[#allocation5 + $0x118] sm:$0xff]
        %v319 = vld [vmem:[#allocation5 + $0x120] sm:$0xff]
        %v320 = vld [vmem:[#allocation5 + $0x128] sm:$0xff]
        %v321 = vld [vmem:[#allocation5 + $0x130] sm:$0xff]
        %v322 = vld [vmem:[#allocation5 + $0x138] sm:$0xff]
        %v323 = vld [vmem:[#allocation5 + $0x140] sm:$0xff]
        %v324 = vld [vmem:[#allocation5 + $0x148] sm:$0xff]
        %v325 = vld [vmem:[#allocation5 + $0x150] sm:$0xff]
        %v326 = vld [vmem:[#allocation5 + $0x158] sm:$0xff]
        %v327 = vld [vmem:[#allocation5 + $0x160] sm:$0xff]
        %v328 = vld [vmem:[#allocation5 + $0x168] sm:$0xff]
        %v329 = vld [vmem:[#allocation5 + $0x170] sm:$0xff]
        %v330 = vld [vmem:[#allocation5 + $0x178] sm:$0xff]
        %v331 = vld [vmem:[#allocation5 + $0x180] sm:$0xff]
        %v332 = vld [vmem:[#allocation5 + $0x188] sm:$0xff]
        %v333 = vld [vmem:[#allocation5 + $0x190] sm:$0xff]
        %v334 = vld [vmem:[#allocation5 + $0x198] sm:$0xff]
        %v335 = vld [vmem:[#allocation5 + $0x1a0] sm:$0xff]
        %v336 = vld [vmem:[#allocation5 + $0x1a8] sm:$0xff]
        %v337 = vld [vmem:[#allocation5 + $0x1b0] sm:$0xff]
        %v338 = vld [vmem:[#allocation5 + $0x1b8] sm:$0xff]
        %v339 = vld [vmem:[#allocation5 + $0x1c0] sm:$0xff]
        %v340 = vld [vmem:[#allocation5 + $0x1c8] sm:$0xff]
        %v341 = vld [vmem:[#allocation5 + $0x1d0] sm:$0xff]
        %v342 = vld [vmem:[#allocation5 + $0x1d8] sm:$0xff]
        %v343 = vld [vmem:[#allocation5 + $0x1e0] sm:$0xff]
        %v344 = vld [vmem:[#allocation5 + $0x1e8] sm:$0xff]
        %v345 = vld [vmem:[#allocation5 + $0x1f0] sm:$0xff]
        %v346 = vld [vmem:[#allocation5 + $0x1f8] sm:$0xff]
        %v347 = vld [vmem:[#allocation5 + $0x200] sm:$0xff]
        %v348 = vld [vmem:[#allocation5 + $0x208] sm:$0xff]
        %v349 = vld [vmem:[#allocation5 + $0x210] sm:$0xff]
        %v350 = vld [vmem:[#allocation5 + $0x218] sm:$0xff]
        %v351 = vld [vmem:[#allocation5 + $0x220] sm:$0xff]
        %v352 = vld [vmem:[#allocation5 + $0x228] sm:$0xff]
        %v353 = vld [vmem:[#allocation5 + $0x230] sm:$0xff]
        %v354 = vld [vmem:[#allocation5 + $0x238] sm:$0xff]
        %v355 = vld [vmem:[#allocation5 + $0x240] sm:$0xff]
        %v356 = vld [vmem:[#allocation5 + $0x248] sm:$0xff]
        %v357 = vld [vmem:[#allocation5 + $0x250] sm:$0xff]
        %v358 = vld [vmem:[#allocation5 + $0x258] sm:$0xff]
        %v359 = vld [vmem:[#allocation5 + $0x260] sm:$0xff]
        %v360 = vld [vmem:[#allocation5 + $0x268] sm:$0xff]
        %v361 = vld [vmem:[#allocation5 + $0x270] sm:$0xff]
        %v362 = vld [vmem:[#allocation5 + $0x278] sm:$0xff]
        %v363 = vld [vmem:[#allocation5 + $0x280] sm:$0xff]
        %v364 = vld [vmem:[#allocation5 + $0x288] sm:$0xff]
        %v365 = vld [vmem:[#allocation5 + $0x290] sm:$0xff]
        %v366 = vld [vmem:[#allocation5 + $0x298] sm:$0xff]
        %v367 = vld [vmem:[#allocation5 + $0x2a0] sm:$0xff]
        %v368 = vld [vmem:[#allocation5 + $0x2a8] sm:$0xff]
        %v369 = vld [vmem:[#allocation5 + $0x2b0] sm:$0xff]
        %v370 = vld [vmem:[#allocation5 + $0x2b8] sm:$0xff]
        %v371 = vld [vmem:[#allocation5 + $0x2c0] sm:$0xff]
        %v372 = vld [vmem:[#allocation5 + $0x2c8] sm:$0xff]
        %v373 = vld [vmem:[#allocation5 + $0x2d0] sm:$0xff]
        %v374 = vld [vmem:[#allocation5 + $0x2d8] sm:$0xff]
        %v375 = vld [vmem:[#allocation5 + $0x2e0] sm:$0xff]
        %v376 = vld [vmem:[#allocation5 + $0x2e8] sm:$0xff]
        %v377 = vld [vmem:[#allocation5 + $0x2f0] sm:$0xff]
        %v378 = vld [vmem:[#allocation5 + $0x2f8] sm:$0xff]
        %v379 = vld [vmem:[#allocation5 + $0x300] sm:$0xff]
        %v380 = vld [vmem:[#allocation5 + $0x308] sm:$0xff]
        %v381 = vld [vmem:[#allocation5 + $0x310] sm:$0xff]
        %v382 = vld [vmem:[#allocation5 + $0x318] sm:$0xff]
        %v383 = vld [vmem:[#allocation5 + $0x320] sm:$0xff]
        %v384 = vld [vmem:[#allocation5 + $0x328] sm:$0xff]
        %v385 = vld [vmem:[#allocation5 + $0x330] sm:$0xff]
        %v386 = vld [vmem:[#allocation5 + $0x338] sm:$0xff]
        %v387 = vld [vmem:[#allocation5 + $0x340] sm:$0xff]
        %v388 = vld [vmem:[#allocation5 + $0x348] sm:$0xff]
        %v389 = vld [vmem:[#allocation5 + $0x350] sm:$0xff]
        %v390 = vld [vmem:[#allocation5 + $0x358] sm:$0xff]
        %v391 = vld [vmem:[#allocation5 + $0x360] sm:$0xff]
        %v392 = vld [vmem:[#allocation5 + $0x368] sm:$0xff]
        %v393 = vld [vmem:[#allocation5 + $0x370] sm:$0xff]
        %v394 = vld [vmem:[#allocation5 + $0x378] sm:$0xff]
        %v395 = vld [vmem:[#allocation5 + $0x380] sm:$0xff]
        %v396 = vld [vmem:[#allocation5 + $0x388] sm:$0xff]
        %v397 = vld [vmem:[#allocation5 + $0x390] sm:$0xff]
        %v398 = vld [vmem:[#allocation5 + $0x398] sm:$0xff]
        %v399 = vld [vmem:[#allocation5 + $0x3a0] sm:$0xff]
        %v400 = vld [vmem:[#allocation5 + $0x3a8] sm:$0xff]
        %v401 = vld [vmem:[#allocation5 + $0x3b0] sm:$0xff]
        %v402 = vld [vmem:[#allocation5 + $0x3b8] sm:$0xff]
        %v403 = vld [vmem:[#allocation5 + $0x3c0] sm:$0xff]
        %v404 = vld [vmem:[#allocation5 + $0x3c8] sm:$0xff]
        %v405 = vld [vmem:[#allocation5 + $0x3d0] sm:$0xff]
        %v406 = vld [vmem:[#allocation5 + $0x3d8] sm:$0xff]
        %v407 = vld [vmem:[#allocation5 + $0x3e0] sm:$0xff]
        %v408 = vld [vmem:[#allocation5 + $0x3e8] sm:$0xff]
        %v409 = vld [vmem:[#allocation5 + $0x3f0] sm:$0xff]
        %v410 = vld [vmem:[#allocation5 + $0x3f8] sm:$0xff]
        %v411 = vld [vmem:[#allocation5 + $0x400] sm:$0xff]
        %v412 = vld [vmem:[#allocation5 + $0x408] sm:$0xff]
        %v413 = vld [vmem:[#allocation5 + $0x410] sm:$0xff]
        %v414 = vld [vmem:[#allocation5 + $0x418] sm:$0xff]
        %v415 = vld [vmem:[#allocation5 + $0x420] sm:$0xff]
        %v416 = vld [vmem:[#allocation5 + $0x428] sm:$0xff]
        %v417 = vld [vmem:[#allocation5 + $0x430] sm:$0xff]
        %v418 = vld [vmem:[#allocation5 + $0x438] sm:$0xff]
        %v419 = vld [vmem:[#allocation5 + $0x440] sm:$0xff]
        %v420 = vld [vmem:[#allocation5 + $0x448] sm:$0xff]
        %v421 = vld [vmem:[#allocation5 + $0x450] sm:$0xff]
        %v422 = vld [vmem:[#allocation5 + $0x458] sm:$0xff]
        %v423 = vld [vmem:[#allocation5 + $0x460] sm:$0xff]
        %v424 = vld [vmem:[#allocation5 + $0x468] sm:$0xff]
        %v425 = vld [vmem:[#allocation5 + $0x470] sm:$0xff]
        %v426 = vld [vmem:[#allocation5 + $0x478] sm:$0xff]
        %v427 = vld [vmem:[#allocation5 + $0x480] sm:$0xff]
        %v428 = vld [vmem:[#allocation5 + $0x488] sm:$0xff]
        %v429 = vld [vmem:[#allocation5 + $0x490] sm:$0xff]
        %v430 = vld [vmem:[#allocation5 + $0x498] sm:$0xff]
        %v431 = vld [vmem:[#allocation5 + $0x4a0] sm:$0xff]
        %v432 = vld [vmem:[#allocation5 + $0x4a8] sm:$0xff]
        %v433 = vld [vmem:[#allocation5 + $0x4b0] sm:$0xff]
        %v434 = vld [vmem:[#allocation5 + $0x4b8] sm:$0xff]
        %v435 = vld [vmem:[#allocation5 + $0x4c0] sm:$0xff]
        %v436 = vld [vmem:[#allocation5 + $0x4c8] sm:$0xff]
        %v437 = vld [vmem:[#allocation5 + $0x4d0] sm:$0xff]
        %v438 = vld [vmem:[#allocation5 + $0x4d8] sm:$0xff]
        %v439 = vld [vmem:[#allocation5 + $0x4e0] sm:$0xff]
        %v440 = vld [vmem:[#allocation5 + $0x4e8] sm:$0xff]
        %v441 = vld [vmem:[#allocation5 + $0x4f0] sm:$0xff]
        %v442 = vld [vmem:[#allocation5 + $0x4f8] sm:$0xff]
        %v443 = vld [vmem:[#allocation5 + $0x500] sm:$0xff]
        %v444 = vld [vmem:[#allocation5 + $0x508] sm:$0xff]
        %v445 = vld [vmem:[#allocation5 + $0x510] sm:$0xff]
        %v446 = vld [vmem:[#allocation5 + $0x518] sm:$0xff]
        %v447 = vld [vmem:[#allocation5 + $0x520] sm:$0xff]
        %v448 = vld [vmem:[#allocation5 + $0x528] sm:$0xff]
        %v449 = vld [vmem:[#allocation5 + $0x530] sm:$0xff]
        %v450 = vld [vmem:[#allocation5 + $0x538] sm:$0xff]
        %v451 = vld [vmem:[#allocation5 + $0x540] sm:$0xff]
        %v452 = vld [vmem:[#allocation5 + $0x548] sm:$0xff]
        %v453 = vld [vmem:[#allocation5 + $0x550] sm:$0xff]
        %v454 = vld [vmem:[#allocation5 + $0x558] sm:$0xff]
        %v455 = vld [vmem:[#allocation5 + $0x560] sm:$0xff]
        %v456 = vld [vmem:[#allocation5 + $0x568] sm:$0xff]
        %v457 = vld [vmem:[#allocation5 + $0x570] sm:$0xff]
        %v458 = vld [vmem:[#allocation5 + $0x578] sm:$0xff]
        %v459 = vld [vmem:[#allocation5 + $0x580] sm:$0xff]
        %v460 = vld [vmem:[#allocation5 + $0x588] sm:$0xff]
        %v461 = vld [vmem:[#allocation5 + $0x590] sm:$0xff]
        %v462 = vld [vmem:[#allocation5 + $0x598] sm:$0xff]
        %v463 = vld [vmem:[#allocation5 + $0x5a0] sm:$0xff]
        %v464 = vld [vmem:[#allocation5 + $0x5a8] sm:$0xff]
        %v465 = vld [vmem:[#allocation5 + $0x5b0] sm:$0xff]
        %v466 = vld [vmem:[#allocation5 + $0x5b8] sm:$0xff]
        %v467 = vld [vmem:[#allocation5 + $0x5c0] sm:$0xff]
        %v468 = vld [vmem:[#allocation5 + $0x5c8] sm:$0xff]
        %v469 = vld [vmem:[#allocation5 + $0x5d0] sm:$0xff]
        %v470 = vld [vmem:[#allocation5 + $0x5d8] sm:$0xff]
        %v471 = vld [vmem:[#allocation5 + $0x5e0] sm:$0xff]
        %v472 = vld [vmem:[#allocation5 + $0x5e8] sm:$0xff]
        %v473 = vld [vmem:[#allocation5 + $0x5f0] sm:$0xff]
        %v474 = vld [vmem:[#allocation5 + $0x5f8] sm:$0xff]
        %v475 = vld [vmem:[#allocation5 + $0x600] sm:$0xff]
        %v476 = vld [vmem:[#allocation5 + $0x608] sm:$0xff]
        %v477 = vld [vmem:[#allocation5 + $0x610] sm:$0xff]
        %v478 = vld [vmem:[#allocation5 + $0x618] sm:$0xff]
        %v479 = vld [vmem:[#allocation5 + $0x620] sm:$0xff]
        %v480 = vld [vmem:[#allocation5 + $0x628] sm:$0xff]
        %v481 = vld [vmem:[#allocation5 + $0x630] sm:$0xff]
        %v482 = vld [vmem:[#allocation5 + $0x638] sm:$0xff]
        %v483 = vld [vmem:[#allocation5 + $0x640] sm:$0xff]
        %v484 = vld [vmem:[#allocation5 + $0x648] sm:$0xff]
        %v485 = vld [vmem:[#allocation5 + $0x650] sm:$0xff]
        %v486 = vld [vmem:[#allocation5 + $0x658] sm:$0xff]
        %v487 = vld [vmem:[#allocation5 + $0x660] sm:$0xff]
        %v488 = vld [vmem:[#allocation5 + $0x668] sm:$0xff]
        %v489 = vld [vmem:[#allocation5 + $0x670] sm:$0xff]
        %v490 = vld [vmem:[#allocation5 + $0x678] sm:$0xff]
        %v491 = vld [vmem:[#allocation5 + $0x680] sm:$0xff]
        %v492 = vld [vmem:[#allocation5 + $0x688] sm:$0xff]
        %v493 = vld [vmem:[#allocation5 + $0x690] sm:$0xff]
        %v494 = vld [vmem:[#allocation5 + $0x698] sm:$0xff]
        %v495 = vld [vmem:[#allocation5 + $0x6a0] sm:$0xff]
        %v496 = vld [vmem:[#allocation5 + $0x6a8] sm:$0xff]
        %v497 = vld [vmem:[#allocation5 + $0x6b0] sm:$0xff]
        %v498 = vld [vmem:[#allocation5 + $0x6b8] sm:$0xff]
        %v499 = vld [vmem:[#allocation5 + $0x6c0] sm:$0xff]
        %v500 = vld [vmem:[#allocation5 + $0x6c8] sm:$0xff]
        %v501 = vld [vmem:[#allocation5 + $0x6d0] sm:$0xff]
        %v502 = vld [vmem:[#allocation5 + $0x6d8] sm:$0xff]
        %v503 = vld [vmem:[#allocation5 + $0x6e0] sm:$0xff]
        %v504 = vld [vmem:[#allocation5 + $0x6e8] sm:$0xff]
        %v505 = vld [vmem:[#allocation5 + $0x6f0] sm:$0xff]
        %v506 = vld [vmem:[#allocation5 + $0x6f8] sm:$0xff]
        %v507 = vld [vmem:[#allocation5 + $0x700] sm:$0xff]
        %v508 = vld [vmem:[#allocation5 + $0x708] sm:$0xff]
        %v509 = vld [vmem:[#allocation5 + $0x710] sm:$0xff]
        %v510 = vld [vmem:[#allocation5 + $0x718] sm:$0xff]
        %v511 = vld [vmem:[#allocation5 + $0x720] sm:$0xff]
        %v512 = vld [vmem:[#allocation5 + $0x728] sm:$0xff]
        %v513 = vld [vmem:[#allocation5 + $0x730] sm:$0xff]
        %v514 = vld [vmem:[#allocation5 + $0x738] sm:$0xff]
        %v515 = vld [vmem:[#allocation5 + $0x740] sm:$0xff]
        %v516 = vld [vmem:[#allocation5 + $0x748] sm:$0xff]
        %v517 = vld [vmem:[#allocation5 + $0x750] sm:$0xff]
        %v518 = vld [vmem:[#allocation5 + $0x758] sm:$0xff]
        %v519 = vld [vmem:[#allocation5 + $0x760] sm:$0xff]
        %v520 = vld [vmem:[#allocation5 + $0x768] sm:$0xff]
        %v521 = vld [vmem:[#allocation5 + $0x770] sm:$0xff]
        %v522 = vld [vmem:[#allocation5 + $0x778] sm:$0xff]
        %v523 = vld [vmem:[#allocation5 + $0x780] sm:$0xff]
        %v524 = vld [vmem:[#allocation5 + $0x788] sm:$0xff]
        %v525 = vld [vmem:[#allocation5 + $0x790] sm:$0xff]
        %v526 = vld [vmem:[#allocation5 + $0x798] sm:$0xff]
        %v527 = vld [vmem:[#allocation5 + $0x7a0] sm:$0xff]
        %v528 = vld [vmem:[#allocation5 + $0x7a8] sm:$0xff]
        %v529 = vld [vmem:[#allocation5 + $0x7b0] sm:$0xff]
        %v530 = vld [vmem:[#allocation5 + $0x7b8] sm:$0xff]
        %v531 = vld [vmem:[#allocation5 + $0x7c0] sm:$0xff]
        %v532 = vld [vmem:[#allocation5 + $0x7c8] sm:$0xff]
        %v533 = vld [vmem:[#allocation5 + $0x7d0] sm:$0xff]
        %v534 = vld [vmem:[#allocation5 + $0x7d8] sm:$0xff]
        %v535 = vld [vmem:[#allocation5 + $0x7e0] sm:$0xff]
        %v536 = vld [vmem:[#allocation5 + $0x7e8] sm:$0xff]
        %v537 = vld [vmem:[#allocation5 + $0x7f0] sm:$0xff]
        %v538 = vld [vmem:[#allocation5 + $0x7f8] sm:$0xff]
        %v539 = vld [vmem:[#allocation5 + $0x800] sm:$0xff]
        %v540 = vld [vmem:[#allocation5 + $0x808] sm:$0xff]
        %v541 = vld [vmem:[#allocation5 + $0x810] sm:$0xff]
        %v542 = vld [vmem:[#allocation5 + $0x818] sm:$0xff]
        %v543 = vld [vmem:[#allocation5 + $0x820] sm:$0xff]
        %v544 = vld [vmem:[#allocation5 + $0x828] sm:$0xff]
        %v545 = vld [vmem:[#allocation5 + $0x830] sm:$0xff]
        %v546 = vld [vmem:[#allocation5 + $0x838] sm:$0xff]
        %v547 = vld [vmem:[#allocation5 + $0x840] sm:$0xff]
        %v548 = vld [vmem:[#allocation5 + $0x848] sm:$0xff]
        %v549 = vld [vmem:[#allocation5 + $0x850] sm:$0xff]
        %v550 = vld [vmem:[#allocation5 + $0x858] sm:$0xff]
        %v551 = vld [vmem:[#allocation5 + $0x860] sm:$0xff]
        %v552 = vld [vmem:[#allocation5 + $0x868] sm:$0xff]
        %v553 = vld [vmem:[#allocation5 + $0x870] sm:$0xff]
        %v554 = vld [vmem:[#allocation5 + $0x878] sm:$0xff]
        %v555 = vld [vmem:[#allocation5 + $0x880] sm:$0xff]
        %v556 = vld [vmem:[#allocation5 + $0x888] sm:$0xff]
        %v557 = vld [vmem:[#allocation5 + $0x890] sm:$0xff]
        %v558 = vld [vmem:[#allocation5 + $0x898] sm:$0xff]
        %v559 = vld [vmem:[#allocation5 + $0x8a0] sm:$0xff]
        %v560 = vld [vmem:[#allocation5 + $0x8a8] sm:$0xff]
        %v561 = vld [vmem:[#allocation5 + $0x8b0] sm:$0xff]
        %v562 = vld [vmem:[#allocation5 + $0x8b8] sm:$0xff]
        %v563 = vld [vmem:[#allocation5 + $0x8c0] sm:$0xff]
        %v564 = vld [vmem:[#allocation5 + $0x8c8] sm:$0xff]
        %v565 = vld [vmem:[#allocation5 + $0x8d0] sm:$0xff]
        %v566 = vld [vmem:[#allocation5 + $0x8d8] sm:$0xff]
        %v567 = vld [vmem:[#allocation5 + $0x8e0] sm:$0xff]
        %v568 = vld [vmem:[#allocation5 + $0x8e8] sm:$0xff]
        %v569 = vld [vmem:[#allocation5 + $0x8f0] sm:$0xff]
        %v570 = vld [vmem:[#allocation5 + $0x8f8] sm:$0xff]
        %v595 = vunpack.c.l.b16 %v259
        %v596 = vunpack.c.h.b16 %v259
        %v597 = vunpack.c.l.b16 %v260
        %v598 = vunpack.c.h.b16 %v260
        %v599 = vunpack.c.l.b16 %v261
        %v600 = vunpack.c.h.b16 %v261
        %v601 = vunpack.c.l.b16 %v262
        %v602 = vunpack.c.h.b16 %v262
        %v603 = vunpack.c.l.b16 %v263
        %v604 = vunpack.c.h.b16 %v263
        %v605 = vunpack.c.l.b16 %v264
        %v606 = vunpack.c.h.b16 %v264
        %v607 = vunpack.c.l.b16 %v265
        %v608 = vunpack.c.h.b16 %v265
        %v609 = vunpack.c.l.b16 %v266
        %v610 = vunpack.c.h.b16 %v266
        %v611 = vunpack.c.l.b16 %v267
        %v612 = vunpack.c.h.b16 %v267
        %v613 = vunpack.c.l.b16 %v268
        %v614 = vunpack.c.h.b16 %v268
        %v615 = vunpack.c.l.b16 %v269
        %v616 = vunpack.c.h.b16 %v269
        %v617 = vunpack.c.l.b16 %v270
        %v618 = vunpack.c.h.b16 %v270
        %v619 = vunpack.c.l.b16 %v271
        %v620 = vunpack.c.h.b16 %v271
        %v621 = vunpack.c.l.b16 %v272
        %v622 = vunpack.c.h.b16 %v272
        %v623 = vunpack.c.l.b16 %v273
        %v624 = vunpack.c.h.b16 %v273
        %v625 = vunpack.c.l.b16 %v274
        %v626 = vunpack.c.h.b16 %v274
        %v627 = vunpack.c.l.b16 %v275
        %v628 = vunpack.c.h.b16 %v275
        %v629 = vunpack.c.l.b16 %v276
        %v630 = vunpack.c.h.b16 %v276
        %v631 = vunpack.c.l.b16 %v277
        %v632 = vunpack.c.h.b16 %v277
        %v633 = vunpack.c.l.b16 %v278
        %v634 = vunpack.c.h.b16 %v278
        %v635 = vunpack.c.l.b16 %v279
        %v636 = vunpack.c.h.b16 %v279
        %v637 = vunpack.c.l.b16 %v280
        %v638 = vunpack.c.h.b16 %v280
        %v639 = vunpack.c.l.b16 %v281
        %v640 = vunpack.c.h.b16 %v281
        %v641 = vunpack.c.l.b16 %v282
        %v642 = vunpack.c.h.b16 %v282
        %v643 = vpack.c.b16 %v601, %v595
        %v644 = vpack.c.b16 %v602, %v596
        %v645 = vpack.c.b16 %v603, %v597
        %v646 = vpack.c.b16 %v604, %v598
        %v647 = vpack.c.b16 %v605, %v599
        %v648 = vpack.c.b16 %v606, %v600
        %v649 = vpack.c.b16 %v613, %v607
        %v650 = vpack.c.b16 %v614, %v608
        %v651 = vpack.c.b16 %v615, %v609
        %v652 = vpack.c.b16 %v616, %v610
        %v653 = vpack.c.b16 %v617, %v611
        %v654 = vpack.c.b16 %v618, %v612
        %v655 = vpack.c.b16 %v625, %v619
        %v656 = vpack.c.b16 %v626, %v620
        %v657 = vpack.c.b16 %v627, %v621
        %v658 = vpack.c.b16 %v628, %v622
        %v659 = vpack.c.b16 %v629, %v623
        %v660 = vpack.c.b16 %v630, %v624
        %v661 = vpack.c.b16 %v637, %v631
        %v662 = vpack.c.b16 %v638, %v632
        %v663 = vpack.c.b16 %v639, %v633
        %v664 = vpack.c.b16 %v640, %v634
        %v665 = vpack.c.b16 %v641, %v635
        %v666 = vpack.c.b16 %v642, %v636
        %v979 = vunpack.c.l.b16 %v283
        %v980 = vunpack.c.h.b16 %v283
        %v981 = vunpack.c.l.b16 %v284
        %v982 = vunpack.c.h.b16 %v284
        %v983 = vunpack.c.l.b16 %v285
        %v984 = vunpack.c.h.b16 %v285
        %v985 = vunpack.c.l.b16 %v286
        %v986 = vunpack.c.h.b16 %v286
        %v987 = vunpack.c.l.b16 %v287
        %v988 = vunpack.c.h.b16 %v287
        %v989 = vunpack.c.l.b16 %v288
        %v990 = vunpack.c.h.b16 %v288
        %v991 = vunpack.c.l.b16 %v289
        %v992 = vunpack.c.h.b16 %v289
        %v993 = vunpack.c.l.b16 %v290
        %v994 = vunpack.c.h.b16 %v290
        %v995 = vunpack.c.l.b16 %v291
        %v996 = vunpack.c.h.b16 %v291
        %v997 = vunpack.c.l.b16 %v292
        %v998 = vunpack.c.h.b16 %v292
        %v999 = vunpack.c.l.b16 %v293
        %v1000 = vunpack.c.h.b16 %v293
        %v1001 = vunpack.c.l.b16 %v294
        %v1002 = vunpack.c.h.b16 %v294
        %v1003 = vunpack.c.l.b16 %v295
        %v1004 = vunpack.c.h.b16 %v295
        %v1005 = vunpack.c.l.b16 %v296
        %v1006 = vunpack.c.h.b16 %v296
        %v1007 = vunpack.c.l.b16 %v297
        %v1008 = vunpack.c.h.b16 %v297
        %v1009 = vunpack.c.l.b16 %v298
        %v1010 = vunpack.c.h.b16 %v298
        %v1011 = vunpack.c.l.b16 %v299
        %v1012 = vunpack.c.h.b16 %v299
        %v1013 = vunpack.c.l.b16 %v300
        %v1014 = vunpack.c.h.b16 %v300
        %v1015 = vunpack.c.l.b16 %v301
        %v1016 = vunpack.c.h.b16 %v301
        %v1017 = vunpack.c.l.b16 %v302
        %v1018 = vunpack.c.h.b16 %v302
        %v1019 = vunpack.c.l.b16 %v303
        %v1020 = vunpack.c.h.b16 %v303
        %v1021 = vunpack.c.l.b16 %v304
        %v1022 = vunpack.c.h.b16 %v304
        %v1023 = vunpack.c.l.b16 %v305
        %v1024 = vunpack.c.h.b16 %v305
        %v1025 = vunpack.c.l.b16 %v306
        %v1026 = vunpack.c.h.b16 %v306
        %v1027 = vunpack.c.l.b16 %v307
        %v1028 = vunpack.c.h.b16 %v307
        %v1029 = vunpack.c.l.b16 %v308
        %v1030 = vunpack.c.h.b16 %v308
        %v1031 = vunpack.c.l.b16 %v309
        %v1032 = vunpack.c.h.b16 %v309
        %v1033 = vunpack.c.l.b16 %v310
        %v1034 = vunpack.c.h.b16 %v310
        %v1035 = vunpack.c.l.b16 %v311
        %v1036 = vunpack.c.h.b16 %v311
        %v1037 = vunpack.c.l.b16 %v312
        %v1038 = vunpack.c.h.b16 %v312
        %v1039 = vunpack.c.l.b16 %v313
        %v1040 = vunpack.c.h.b16 %v313
        %v1041 = vunpack.c.l.b16 %v314
        %v1042 = vunpack.c.h.b16 %v314
        %v1043 = vunpack.c.l.b16 %v315
        %v1044 = vunpack.c.h.b16 %v315
        %v1045 = vunpack.c.l.b16 %v316
        %v1046 = vunpack.c.h.b16 %v316
        %v1047 = vunpack.c.l.b16 %v317
        %v1048 = vunpack.c.h.b16 %v317
        %v1049 = vunpack.c.l.b16 %v318
        %v1050 = vunpack.c.h.b16 %v318
        %v1051 = vunpack.c.l.b16 %v319
        %v1052 = vunpack.c.h.b16 %v319
        %v1053 = vunpack.c.l.b16 %v320
        %v1054 = vunpack.c.h.b16 %v320
        %v1055 = vunpack.c.l.b16 %v321
        %v1056 = vunpack.c.h.b16 %v321
        %v1057 = vunpack.c.l.b16 %v322
        %v1058 = vunpack.c.h.b16 %v322
        %v1059 = vunpack.c.l.b16 %v323
        %v1060 = vunpack.c.h.b16 %v323
        %v1061 = vunpack.c.l.b16 %v324
        %v1062 = vunpack.c.h.b16 %v324
        %v1063 = vunpack.c.l.b16 %v325
        %v1064 = vunpack.c.h.b16 %v325
        %v1065 = vunpack.c.l.b16 %v326
        %v1066 = vunpack.c.h.b16 %v326
        %v1067 = vunpack.c.l.b16 %v327
        %v1068 = vunpack.c.h.b16 %v327
        %v1069 = vunpack.c.l.b16 %v328
        %v1070 = vunpack.c.h.b16 %v328
        %v1071 = vunpack.c.l.b16 %v329
        %v1072 = vunpack.c.h.b16 %v329
        %v1073 = vunpack.c.l.b16 %v330
        %v1074 = vunpack.c.h.b16 %v330
        %v1075 = vunpack.c.l.b16 %v331
        %v1076 = vunpack.c.h.b16 %v331
        %v1077 = vunpack.c.l.b16 %v332
        %v1078 = vunpack.c.h.b16 %v332
        %v1079 = vunpack.c.l.b16 %v333
        %v1080 = vunpack.c.h.b16 %v333
        %v1081 = vunpack.c.l.b16 %v334
        %v1082 = vunpack.c.h.b16 %v334
        %v1083 = vunpack.c.l.b16 %v335
        %v1084 = vunpack.c.h.b16 %v335
        %v1085 = vunpack.c.l.b16 %v336
        %v1086 = vunpack.c.h.b16 %v336
        %v1087 = vunpack.c.l.b16 %v337
        %v1088 = vunpack.c.h.b16 %v337
        %v1089 = vunpack.c.l.b16 %v338
        %v1090 = vunpack.c.h.b16 %v338
        %v1091 = vunpack.c.l.b16 %v339
        %v1092 = vunpack.c.h.b16 %v339
        %v1093 = vunpack.c.l.b16 %v340
        %v1094 = vunpack.c.h.b16 %v340
        %v1095 = vunpack.c.l.b16 %v341
        %v1096 = vunpack.c.h.b16 %v341
        %v1097 = vunpack.c.l.b16 %v342
        %v1098 = vunpack.c.h.b16 %v342
        %v1099 = vunpack.c.l.b16 %v343
        %v1100 = vunpack.c.h.b16 %v343
        %v1101 = vunpack.c.l.b16 %v344
        %v1102 = vunpack.c.h.b16 %v344
        %v1103 = vunpack.c.l.b16 %v345
        %v1104 = vunpack.c.h.b16 %v345
        %v1105 = vunpack.c.l.b16 %v346
        %v1106 = vunpack.c.h.b16 %v346
        %v1107 = vunpack.c.l.b16 %v347
        %v1108 = vunpack.c.h.b16 %v347
        %v1109 = vunpack.c.l.b16 %v348
        %v1110 = vunpack.c.h.b16 %v348
        %v1111 = vunpack.c.l.b16 %v349
        %v1112 = vunpack.c.h.b16 %v349
        %v1113 = vunpack.c.l.b16 %v350
        %v1114 = vunpack.c.h.b16 %v350
        %v1115 = vunpack.c.l.b16 %v351
        %v1116 = vunpack.c.h.b16 %v351
        %v1117 = vunpack.c.l.b16 %v352
        %v1118 = vunpack.c.h.b16 %v352
        %v1119 = vunpack.c.l.b16 %v353
        %v1120 = vunpack.c.h.b16 %v353
        %v1121 = vunpack.c.l.b16 %v354
        %v1122 = vunpack.c.h.b16 %v354
        %v1123 = vunpack.c.l.b16 %v355
        %v1124 = vunpack.c.h.b16 %v355
        %v1125 = vunpack.c.l.b16 %v356
        %v1126 = vunpack.c.h.b16 %v356
        %v1127 = vunpack.c.l.b16 %v357
        %v1128 = vunpack.c.h.b16 %v357
        %v1129 = vunpack.c.l.b16 %v358
        %v1130 = vunpack.c.h.b16 %v358
        %v1131 = vunpack.c.l.b16 %v359
        %v1132 = vunpack.c.h.b16 %v359
        %v1133 = vunpack.c.l.b16 %v360
        %v1134 = vunpack.c.h.b16 %v360
        %v1135 = vunpack.c.l.b16 %v361
        %v1136 = vunpack.c.h.b16 %v361
        %v1137 = vunpack.c.l.b16 %v362
        %v1138 = vunpack.c.h.b16 %v362
        %v1139 = vunpack.c.l.b16 %v363
        %v1140 = vunpack.c.h.b16 %v363
        %v1141 = vunpack.c.l.b16 %v364
        %v1142 = vunpack.c.h.b16 %v364
        %v1143 = vunpack.c.l.b16 %v365
        %v1144 = vunpack.c.h.b16 %v365
        %v1145 = vunpack.c.l.b16 %v366
        %v1146 = vunpack.c.h.b16 %v366
        %v1147 = vunpack.c.l.b16 %v367
        %v1148 = vunpack.c.h.b16 %v367
        %v1149 = vunpack.c.l.b16 %v368
        %v1150 = vunpack.c.h.b16 %v368
        %v1151 = vunpack.c.l.b16 %v369
        %v1152 = vunpack.c.h.b16 %v369
        %v1153 = vunpack.c.l.b16 %v370
        %v1154 = vunpack.c.h.b16 %v370
        %v1155 = vunpack.c.l.b16 %v371
        %v1156 = vunpack.c.h.b16 %v371
        %v1157 = vunpack.c.l.b16 %v372
        %v1158 = vunpack.c.h.b16 %v372
        %v1159 = vunpack.c.l.b16 %v373
        %v1160 = vunpack.c.h.b16 %v373
        %v1161 = vunpack.c.l.b16 %v374
        %v1162 = vunpack.c.h.b16 %v374
        %v1163 = vunpack.c.l.b16 %v375
        %v1164 = vunpack.c.h.b16 %v375
        %v1165 = vunpack.c.l.b16 %v376
        %v1166 = vunpack.c.h.b16 %v376
        %v1167 = vunpack.c.l.b16 %v377
        %v1168 = vunpack.c.h.b16 %v377
        %v1169 = vunpack.c.l.b16 %v378
        %v1170 = vunpack.c.h.b16 %v378
        %v1171 = vunpack.c.l.b16 %v379
        %v1172 = vunpack.c.h.b16 %v379
        %v1173 = vunpack.c.l.b16 %v380
        %v1174 = vunpack.c.h.b16 %v380
        %v1175 = vunpack.c.l.b16 %v381
        %v1176 = vunpack.c.h.b16 %v381
        %v1177 = vunpack.c.l.b16 %v382
        %v1178 = vunpack.c.h.b16 %v382
        %v1179 = vunpack.c.l.b16 %v383
        %v1180 = vunpack.c.h.b16 %v383
        %v1181 = vunpack.c.l.b16 %v384
        %v1182 = vunpack.c.h.b16 %v384
        %v1183 = vunpack.c.l.b16 %v385
        %v1184 = vunpack.c.h.b16 %v385
        %v1185 = vunpack.c.l.b16 %v386
        %v1186 = vunpack.c.h.b16 %v386
        %v1187 = vunpack.c.l.b16 %v387
        %v1188 = vunpack.c.h.b16 %v387
        %v1189 = vunpack.c.l.b16 %v388
        %v1190 = vunpack.c.h.b16 %v388
        %v1191 = vunpack.c.l.b16 %v389
        %v1192 = vunpack.c.h.b16 %v389
        %v1193 = vunpack.c.l.b16 %v390
        %v1194 = vunpack.c.h.b16 %v390
        %v1195 = vunpack.c.l.b16 %v391
        %v1196 = vunpack.c.h.b16 %v391
        %v1197 = vunpack.c.l.b16 %v392
        %v1198 = vunpack.c.h.b16 %v392
        %v1199 = vunpack.c.l.b16 %v393
        %v1200 = vunpack.c.h.b16 %v393
        %v1201 = vunpack.c.l.b16 %v394
        %v1202 = vunpack.c.h.b16 %v394
        %v1203 = vunpack.c.l.b16 %v395
        %v1204 = vunpack.c.h.b16 %v395
        %v1205 = vunpack.c.l.b16 %v396
        %v1206 = vunpack.c.h.b16 %v396
        %v1207 = vunpack.c.l.b16 %v397
        %v1208 = vunpack.c.h.b16 %v397
        %v1209 = vunpack.c.l.b16 %v398
        %v1210 = vunpack.c.h.b16 %v398
        %v1211 = vunpack.c.l.b16 %v399
        %v1212 = vunpack.c.h.b16 %v399
        %v1213 = vunpack.c.l.b16 %v400
        %v1214 = vunpack.c.h.b16 %v400
        %v1215 = vunpack.c.l.b16 %v401
        %v1216 = vunpack.c.h.b16 %v401
        %v1217 = vunpack.c.l.b16 %v402
        %v1218 = vunpack.c.h.b16 %v402
        %v1219 = vunpack.c.l.b16 %v403
        %v1220 = vunpack.c.h.b16 %v403
        %v1221 = vunpack.c.l.b16 %v404
        %v1222 = vunpack.c.h.b16 %v404
        %v1223 = vunpack.c.l.b16 %v405
        %v1224 = vunpack.c.h.b16 %v405
        %v1225 = vunpack.c.l.b16 %v406
        %v1226 = vunpack.c.h.b16 %v406
        %v1227 = vunpack.c.l.b16 %v407
        %v1228 = vunpack.c.h.b16 %v407
        %v1229 = vunpack.c.l.b16 %v408
        %v1230 = vunpack.c.h.b16 %v408
        %v1231 = vunpack.c.l.b16 %v409
        %v1232 = vunpack.c.h.b16 %v409
        %v1233 = vunpack.c.l.b16 %v410
        %v1234 = vunpack.c.h.b16 %v410
        %v1235 = vunpack.c.l.b16 %v411
        %v1236 = vunpack.c.h.b16 %v411
        %v1237 = vunpack.c.l.b16 %v412
        %v1238 = vunpack.c.h.b16 %v412
        %v1239 = vunpack.c.l.b16 %v413
        %v1240 = vunpack.c.h.b16 %v413
        %v1241 = vunpack.c.l.b16 %v414
        %v1242 = vunpack.c.h.b16 %v414
        %v1243 = vunpack.c.l.b16 %v415
        %v1244 = vunpack.c.h.b16 %v415
        %v1245 = vunpack.c.l.b16 %v416
        %v1246 = vunpack.c.h.b16 %v416
        %v1247 = vunpack.c.l.b16 %v417
        %v1248 = vunpack.c.h.b16 %v417
        %v1249 = vunpack.c.l.b16 %v418
        %v1250 = vunpack.c.h.b16 %v418
        %v1251 = vunpack.c.l.b16 %v419
        %v1252 = vunpack.c.h.b16 %v419
        %v1253 = vunpack.c.l.b16 %v420
        %v1254 = vunpack.c.h.b16 %v420
        %v1255 = vunpack.c.l.b16 %v421
        %v1256 = vunpack.c.h.b16 %v421
        %v1257 = vunpack.c.l.b16 %v422
        %v1258 = vunpack.c.h.b16 %v422
        %v1259 = vunpack.c.l.b16 %v423
        %v1260 = vunpack.c.h.b16 %v423
        %v1261 = vunpack.c.l.b16 %v424
        %v1262 = vunpack.c.h.b16 %v424
        %v1263 = vunpack.c.l.b16 %v425
        %v1264 = vunpack.c.h.b16 %v425
        %v1265 = vunpack.c.l.b16 %v426
        %v1266 = vunpack.c.h.b16 %v426
        %v1267 = vunpack.c.l.b16 %v427
        %v1268 = vunpack.c.h.b16 %v427
        %v1269 = vunpack.c.l.b16 %v428
        %v1270 = vunpack.c.h.b16 %v428
        %v1271 = vunpack.c.l.b16 %v429
        %v1272 = vunpack.c.h.b16 %v429
        %v1273 = vunpack.c.l.b16 %v430
        %v1274 = vunpack.c.h.b16 %v430
        %v1275 = vunpack.c.l.b16 %v431
        %v1276 = vunpack.c.h.b16 %v431
        %v1277 = vunpack.c.l.b16 %v432
        %v1278 = vunpack.c.h.b16 %v432
        %v1279 = vunpack.c.l.b16 %v433
        %v1280 = vunpack.c.h.b16 %v433
        %v1281 = vunpack.c.l.b16 %v434
        %v1282 = vunpack.c.h.b16 %v434
        %v1283 = vunpack.c.l.b16 %v435
        %v1284 = vunpack.c.h.b16 %v435
        %v1285 = vunpack.c.l.b16 %v436
        %v1286 = vunpack.c.h.b16 %v436
        %v1287 = vunpack.c.l.b16 %v437
        %v1288 = vunpack.c.h.b16 %v437
        %v1289 = vunpack.c.l.b16 %v438
        %v1290 = vunpack.c.h.b16 %v438
        %v1291 = vunpack.c.l.b16 %v439
        %v1292 = vunpack.c.h.b16 %v439
        %v1293 = vunpack.c.l.b16 %v440
        %v1294 = vunpack.c.h.b16 %v440
        %v1295 = vunpack.c.l.b16 %v441
        %v1296 = vunpack.c.h.b16 %v441
        %v1297 = vunpack.c.l.b16 %v442
        %v1298 = vunpack.c.h.b16 %v442
        %v1299 = vunpack.c.l.b16 %v443
        %v1300 = vunpack.c.h.b16 %v443
        %v1301 = vunpack.c.l.b16 %v444
        %v1302 = vunpack.c.h.b16 %v444
        %v1303 = vunpack.c.l.b16 %v445
        %v1304 = vunpack.c.h.b16 %v445
        %v1305 = vunpack.c.l.b16 %v446
        %v1306 = vunpack.c.h.b16 %v446
        %v1307 = vunpack.c.l.b16 %v447
        %v1308 = vunpack.c.h.b16 %v447
        %v1309 = vunpack.c.l.b16 %v448
        %v1310 = vunpack.c.h.b16 %v448
        %v1311 = vunpack.c.l.b16 %v449
        %v1312 = vunpack.c.h.b16 %v449
        %v1313 = vunpack.c.l.b16 %v450
        %v1314 = vunpack.c.h.b16 %v450
        %v1315 = vunpack.c.l.b16 %v451
        %v1316 = vunpack.c.h.b16 %v451
        %v1317 = vunpack.c.l.b16 %v452
        %v1318 = vunpack.c.h.b16 %v452
        %v1319 = vunpack.c.l.b16 %v453
        %v1320 = vunpack.c.h.b16 %v453
        %v1321 = vunpack.c.l.b16 %v454
        %v1322 = vunpack.c.h.b16 %v454
        %v1323 = vunpack.c.l.b16 %v455
        %v1324 = vunpack.c.h.b16 %v455
        %v1325 = vunpack.c.l.b16 %v456
        %v1326 = vunpack.c.h.b16 %v456
        %v1327 = vunpack.c.l.b16 %v457
        %v1328 = vunpack.c.h.b16 %v457
        %v1329 = vunpack.c.l.b16 %v458
        %v1330 = vunpack.c.h.b16 %v458
        %v1331 = vunpack.c.l.b16 %v459
        %v1332 = vunpack.c.h.b16 %v459
        %v1333 = vunpack.c.l.b16 %v460
        %v1334 = vunpack.c.h.b16 %v460
        %v1335 = vunpack.c.l.b16 %v461
        %v1336 = vunpack.c.h.b16 %v461
        %v1337 = vunpack.c.l.b16 %v462
        %v1338 = vunpack.c.h.b16 %v462
        %v1339 = vunpack.c.l.b16 %v463
        %v1340 = vunpack.c.h.b16 %v463
        %v1341 = vunpack.c.l.b16 %v464
        %v1342 = vunpack.c.h.b16 %v464
        %v1343 = vunpack.c.l.b16 %v465
        %v1344 = vunpack.c.h.b16 %v465
        %v1345 = vunpack.c.l.b16 %v466
        %v1346 = vunpack.c.h.b16 %v466
        %v1347 = vunpack.c.l.b16 %v467
        %v1348 = vunpack.c.h.b16 %v467
        %v1349 = vunpack.c.l.b16 %v468
        %v1350 = vunpack.c.h.b16 %v468
        %v1351 = vunpack.c.l.b16 %v469
        %v1352 = vunpack.c.h.b16 %v469
        %v1353 = vunpack.c.l.b16 %v470
        %v1354 = vunpack.c.h.b16 %v470
        %v1355 = vunpack.c.l.b16 %v471
        %v1356 = vunpack.c.h.b16 %v471
        %v1357 = vunpack.c.l.b16 %v472
        %v1358 = vunpack.c.h.b16 %v472
        %v1359 = vunpack.c.l.b16 %v473
        %v1360 = vunpack.c.h.b16 %v473
        %v1361 = vunpack.c.l.b16 %v474
        %v1362 = vunpack.c.h.b16 %v474
        %v1363 = vunpack.c.l.b16 %v475
        %v1364 = vunpack.c.h.b16 %v475
        %v1365 = vunpack.c.l.b16 %v476
        %v1366 = vunpack.c.h.b16 %v476
        %v1367 = vunpack.c.l.b16 %v477
        %v1368 = vunpack.c.h.b16 %v477
        %v1369 = vunpack.c.l.b16 %v478
        %v1370 = vunpack.c.h.b16 %v478
        %v1371 = vunpack.c.l.b16 %v479
        %v1372 = vunpack.c.h.b16 %v479
        %v1373 = vunpack.c.l.b16 %v480
        %v1374 = vunpack.c.h.b16 %v480
        %v1375 = vunpack.c.l.b16 %v481
        %v1376 = vunpack.c.h.b16 %v481
        %v1377 = vunpack.c.l.b16 %v482
        %v1378 = vunpack.c.h.b16 %v482
        %v1379 = vunpack.c.l.b16 %v483
        %v1380 = vunpack.c.h.b16 %v483
        %v1381 = vunpack.c.l.b16 %v484
        %v1382 = vunpack.c.h.b16 %v484
        %v1383 = vunpack.c.l.b16 %v485
        %v1384 = vunpack.c.h.b16 %v485
        %v1385 = vunpack.c.l.b16 %v486
        %v1386 = vunpack.c.h.b16 %v486
        %v1387 = vunpack.c.l.b16 %v487
        %v1388 = vunpack.c.h.b16 %v487
        %v1389 = vunpack.c.l.b16 %v488
        %v1390 = vunpack.c.h.b16 %v488
        %v1391 = vunpack.c.l.b16 %v489
        %v1392 = vunpack.c.h.b16 %v489
        %v1393 = vunpack.c.l.b16 %v490
        %v1394 = vunpack.c.h.b16 %v490
        %v1395 = vunpack.c.l.b16 %v491
        %v1396 = vunpack.c.h.b16 %v491
        %v1397 = vunpack.c.l.b16 %v492
        %v1398 = vunpack.c.h.b16 %v492
        %v1399 = vunpack.c.l.b16 %v493
        %v1400 = vunpack.c.h.b16 %v493
        %v1401 = vunpack.c.l.b16 %v494
        %v1402 = vunpack.c.h.b16 %v494
        %v1403 = vunpack.c.l.b16 %v495
        %v1404 = vunpack.c.h.b16 %v495
        %v1405 = vunpack.c.l.b16 %v496
        %v1406 = vunpack.c.h.b16 %v496
        %v1407 = vunpack.c.l.b16 %v497
        %v1408 = vunpack.c.h.b16 %v497
        %v1409 = vunpack.c.l.b16 %v498
        %v1410 = vunpack.c.h.b16 %v498
        %v1411 = vunpack.c.l.b16 %v499
        %v1412 = vunpack.c.h.b16 %v499
        %v1413 = vunpack.c.l.b16 %v500
        %v1414 = vunpack.c.h.b16 %v500
        %v1415 = vunpack.c.l.b16 %v501
        %v1416 = vunpack.c.h.b16 %v501
        %v1417 = vunpack.c.l.b16 %v502
        %v1418 = vunpack.c.h.b16 %v502
        %v1419 = vunpack.c.l.b16 %v503
        %v1420 = vunpack.c.h.b16 %v503
        %v1421 = vunpack.c.l.b16 %v504
        %v1422 = vunpack.c.h.b16 %v504
        %v1423 = vunpack.c.l.b16 %v505
        %v1424 = vunpack.c.h.b16 %v505
        %v1425 = vunpack.c.l.b16 %v506
        %v1426 = vunpack.c.h.b16 %v506
        %v1427 = vunpack.c.l.b16 %v507
        %v1428 = vunpack.c.h.b16 %v507
        %v1429 = vunpack.c.l.b16 %v508
        %v1430 = vunpack.c.h.b16 %v508
        %v1431 = vunpack.c.l.b16 %v509
        %v1432 = vunpack.c.h.b16 %v509
        %v1433 = vunpack.c.l.b16 %v510
        %v1434 = vunpack.c.h.b16 %v510
        %v1435 = vunpack.c.l.b16 %v511
        %v1436 = vunpack.c.h.b16 %v511
        %v1437 = vunpack.c.l.b16 %v512
        %v1438 = vunpack.c.h.b16 %v512
        %v1439 = vunpack.c.l.b16 %v513
        %v1440 = vunpack.c.h.b16 %v513
        %v1441 = vunpack.c.l.b16 %v514
        %v1442 = vunpack.c.h.b16 %v514
        %v1443 = vunpack.c.l.b16 %v515
        %v1444 = vunpack.c.h.b16 %v515
        %v1445 = vunpack.c.l.b16 %v516
        %v1446 = vunpack.c.h.b16 %v516
        %v1447 = vunpack.c.l.b16 %v517
        %v1448 = vunpack.c.h.b16 %v517
        %v1449 = vunpack.c.l.b16 %v518
        %v1450 = vunpack.c.h.b16 %v518
        %v1451 = vunpack.c.l.b16 %v519
        %v1452 = vunpack.c.h.b16 %v519
        %v1453 = vunpack.c.l.b16 %v520
        %v1454 = vunpack.c.h.b16 %v520
        %v1455 = vunpack.c.l.b16 %v521
        %v1456 = vunpack.c.h.b16 %v521
        %v1457 = vunpack.c.l.b16 %v522
        %v1458 = vunpack.c.h.b16 %v522
        %v1459 = vunpack.c.l.b16 %v523
        %v1460 = vunpack.c.h.b16 %v523
        %v1461 = vunpack.c.l.b16 %v524
        %v1462 = vunpack.c.h.b16 %v524
        %v1463 = vunpack.c.l.b16 %v525
        %v1464 = vunpack.c.h.b16 %v525
        %v1465 = vunpack.c.l.b16 %v526
        %v1466 = vunpack.c.h.b16 %v526
        %v1467 = vunpack.c.l.b16 %v527
        %v1468 = vunpack.c.h.b16 %v527
        %v1469 = vunpack.c.l.b16 %v528
        %v1470 = vunpack.c.h.b16 %v528
        %v1471 = vunpack.c.l.b16 %v529
        %v1472 = vunpack.c.h.b16 %v529
        %v1473 = vunpack.c.l.b16 %v530
        %v1474 = vunpack.c.h.b16 %v530
        %v1475 = vunpack.c.l.b16 %v531
        %v1476 = vunpack.c.h.b16 %v531
        %v1477 = vunpack.c.l.b16 %v532
        %v1478 = vunpack.c.h.b16 %v532
        %v1479 = vunpack.c.l.b16 %v533
        %v1480 = vunpack.c.h.b16 %v533
        %v1481 = vunpack.c.l.b16 %v534
        %v1482 = vunpack.c.h.b16 %v534
        %v1483 = vunpack.c.l.b16 %v535
        %v1484 = vunpack.c.h.b16 %v535
        %v1485 = vunpack.c.l.b16 %v536
        %v1486 = vunpack.c.h.b16 %v536
        %v1487 = vunpack.c.l.b16 %v537
        %v1488 = vunpack.c.h.b16 %v537
        %v1489 = vunpack.c.l.b16 %v538
        %v1490 = vunpack.c.h.b16 %v538
        %v1491 = vunpack.c.l.b16 %v539
        %v1492 = vunpack.c.h.b16 %v539
        %v1493 = vunpack.c.l.b16 %v540
        %v1494 = vunpack.c.h.b16 %v540
        %v1495 = vunpack.c.l.b16 %v541
        %v1496 = vunpack.c.h.b16 %v541
        %v1497 = vunpack.c.l.b16 %v542
        %v1498 = vunpack.c.h.b16 %v542
        %v1499 = vunpack.c.l.b16 %v543
        %v1500 = vunpack.c.h.b16 %v543
        %v1501 = vunpack.c.l.b16 %v544
        %v1502 = vunpack.c.h.b16 %v544
        %v1503 = vunpack.c.l.b16 %v545
        %v1504 = vunpack.c.h.b16 %v545
        %v1505 = vunpack.c.l.b16 %v546
        %v1506 = vunpack.c.h.b16 %v546
        %v1507 = vunpack.c.l.b16 %v547
        %v1508 = vunpack.c.h.b16 %v547
        %v1509 = vunpack.c.l.b16 %v548
        %v1510 = vunpack.c.h.b16 %v548
        %v1511 = vunpack.c.l.b16 %v549
        %v1512 = vunpack.c.h.b16 %v549
        %v1513 = vunpack.c.l.b16 %v550
        %v1514 = vunpack.c.h.b16 %v550
        %v1515 = vunpack.c.l.b16 %v551
        %v1516 = vunpack.c.h.b16 %v551
        %v1517 = vunpack.c.l.b16 %v552
        %v1518 = vunpack.c.h.b16 %v552
        %v1519 = vunpack.c.l.b16 %v553
        %v1520 = vunpack.c.h.b16 %v553
        %v1521 = vunpack.c.l.b16 %v554
        %v1522 = vunpack.c.h.b16 %v554
        %v1523 = vunpack.c.l.b16 %v555
        %v1524 = vunpack.c.h.b16 %v555
        %v1525 = vunpack.c.l.b16 %v556
        %v1526 = vunpack.c.h.b16 %v556
        %v1527 = vunpack.c.l.b16 %v557
        %v1528 = vunpack.c.h.b16 %v557
        %v1529 = vunpack.c.l.b16 %v558
        %v1530 = vunpack.c.h.b16 %v558
        %v1531 = vunpack.c.l.b16 %v559
        %v1532 = vunpack.c.h.b16 %v559
        %v1533 = vunpack.c.l.b16 %v560
        %v1534 = vunpack.c.h.b16 %v560
        %v1535 = vunpack.c.l.b16 %v561
        %v1536 = vunpack.c.h.b16 %v561
        %v1537 = vunpack.c.l.b16 %v562
        %v1538 = vunpack.c.h.b16 %v562
        %v1539 = vunpack.c.l.b16 %v563
        %v1540 = vunpack.c.h.b16 %v563
        %v1541 = vunpack.c.l.b16 %v564
        %v1542 = vunpack.c.h.b16 %v564
        %v1543 = vunpack.c.l.b16 %v565
        %v1544 = vunpack.c.h.b16 %v565
        %v1545 = vunpack.c.l.b16 %v566
        %v1546 = vunpack.c.h.b16 %v566
        %v1547 = vunpack.c.l.b16 %v567
        %v1548 = vunpack.c.h.b16 %v567
        %v1549 = vunpack.c.l.b16 %v568
        %v1550 = vunpack.c.h.b16 %v568
        %v1551 = vunpack.c.l.b16 %v569
        %v1552 = vunpack.c.h.b16 %v569
        %v1553 = vunpack.c.l.b16 %v570
        %v1554 = vunpack.c.h.b16 %v570
        %v1555 = vpack.c.b16 %v985, %v979
        %v1556 = vpack.c.b16 %v986, %v980
        %v1557 = vpack.c.b16 %v987, %v981
        %v1558 = vpack.c.b16 %v988, %v982
        %v1559 = vpack.c.b16 %v989, %v983
        %v1560 = vpack.c.b16 %v990, %v984
        %v1561 = vpack.c.b16 %v997, %v991
        %v1562 = vpack.c.b16 %v998, %v992
        %v1563 = vpack.c.b16 %v999, %v993
        %v1564 = vpack.c.b16 %v1000, %v994
        %v1565 = vpack.c.b16 %v1001, %v995
        %v1566 = vpack.c.b16 %v1002, %v996
        %v1567 = vpack.c.b16 %v1009, %v1003
        %v1568 = vpack.c.b16 %v1010, %v1004
        %v1569 = vpack.c.b16 %v1011, %v1005
        %v1570 = vpack.c.b16 %v1012, %v1006
        %v1571 = vpack.c.b16 %v1013, %v1007
        %v1572 = vpack.c.b16 %v1014, %v1008
        %v1573 = vpack.c.b16 %v1021, %v1015
        %v1574 = vpack.c.b16 %v1022, %v1016
        %v1575 = vpack.c.b16 %v1023, %v1017
        %v1576 = vpack.c.b16 %v1024, %v1018
        %v1577 = vpack.c.b16 %v1025, %v1019
        %v1578 = vpack.c.b16 %v1026, %v1020
        %v1579 = vpack.c.b16 %v1033, %v1027
        %v1580 = vpack.c.b16 %v1034, %v1028
        %v1581 = vpack.c.b16 %v1035, %v1029
        %v1582 = vpack.c.b16 %v1036, %v1030
        %v1583 = vpack.c.b16 %v1037, %v1031
        %v1584 = vpack.c.b16 %v1038, %v1032
        %v1585 = vpack.c.b16 %v1045, %v1039
        %v1586 = vpack.c.b16 %v1046, %v1040
        %v1587 = vpack.c.b16 %v1047, %v1041
        %v1588 = vpack.c.b16 %v1048, %v1042
        %v1589 = vpack.c.b16 %v1049, %v1043
        %v1590 = vpack.c.b16 %v1050, %v1044
        %v1591 = vpack.c.b16 %v1057, %v1051
        %v1592 = vpack.c.b16 %v1058, %v1052
        %v1593 = vpack.c.b16 %v1059, %v1053
        %v1594 = vpack.c.b16 %v1060, %v1054
        %v1595 = vpack.c.b16 %v1061, %v1055
        %v1596 = vpack.c.b16 %v1062, %v1056
        %v1597 = vpack.c.b16 %v1069, %v1063
        %v1598 = vpack.c.b16 %v1070, %v1064
        %v1599 = vpack.c.b16 %v1071, %v1065
        %v1600 = vpack.c.b16 %v1072, %v1066
        %v1601 = vpack.c.b16 %v1073, %v1067
        %v1602 = vpack.c.b16 %v1074, %v1068
        %v1603 = vpack.c.b16 %v1081, %v1075
        %v1604 = vpack.c.b16 %v1082, %v1076
        %v1605 = vpack.c.b16 %v1083, %v1077
        %v1606 = vpack.c.b16 %v1084, %v1078
        %v1607 = vpack.c.b16 %v1085, %v1079
        %v1608 = vpack.c.b16 %v1086, %v1080
        %v1609 = vpack.c.b16 %v1093, %v1087
        %v1610 = vpack.c.b16 %v1094, %v1088
        %v1611 = vpack.c.b16 %v1095, %v1089
        %v1612 = vpack.c.b16 %v1096, %v1090
        %v1613 = vpack.c.b16 %v1097, %v1091
        %v1614 = vpack.c.b16 %v1098, %v1092
        %v1615 = vpack.c.b16 %v1105, %v1099
        %v1616 = vpack.c.b16 %v1106, %v1100
        %v1617 = vpack.c.b16 %v1107, %v1101
        %v1618 = vpack.c.b16 %v1108, %v1102
        %v1619 = vpack.c.b16 %v1109, %v1103
        %v1620 = vpack.c.b16 %v1110, %v1104
        %v1621 = vpack.c.b16 %v1117, %v1111
        %v1622 = vpack.c.b16 %v1118, %v1112
        %v1623 = vpack.c.b16 %v1119, %v1113
        %v1624 = vpack.c.b16 %v1120, %v1114
        %v1625 = vpack.c.b16 %v1121, %v1115
        %v1626 = vpack.c.b16 %v1122, %v1116
        %v1627 = vpack.c.b16 %v1129, %v1123
        %v1628 = vpack.c.b16 %v1130, %v1124
        %v1629 = vpack.c.b16 %v1131, %v1125
        %v1630 = vpack.c.b16 %v1132, %v1126
        %v1631 = vpack.c.b16 %v1133, %v1127
        %v1632 = vpack.c.b16 %v1134, %v1128
        %v1633 = vpack.c.b16 %v1141, %v1135
        %v1634 = vpack.c.b16 %v1142, %v1136
        %v1635 = vpack.c.b16 %v1143, %v1137
        %v1636 = vpack.c.b16 %v1144, %v1138
        %v1637 = vpack.c.b16 %v1145, %v1139
        %v1638 = vpack.c.b16 %v1146, %v1140
        %v1639 = vpack.c.b16 %v1153, %v1147
        %v1640 = vpack.c.b16 %v1154, %v1148
        %v1641 = vpack.c.b16 %v1155, %v1149
        %v1642 = vpack.c.b16 %v1156, %v1150
        %v1643 = vpack.c.b16 %v1157, %v1151
        %v1644 = vpack.c.b16 %v1158, %v1152
        %v1645 = vpack.c.b16 %v1165, %v1159
        %v1646 = vpack.c.b16 %v1166, %v1160
        %v1647 = vpack.c.b16 %v1167, %v1161
        %v1648 = vpack.c.b16 %v1168, %v1162
        %v1649 = vpack.c.b16 %v1169, %v1163
        %v1650 = vpack.c.b16 %v1170, %v1164
        %v1651 = vpack.c.b16 %v1177, %v1171
        %v1652 = vpack.c.b16 %v1178, %v1172
        %v1653 = vpack.c.b16 %v1179, %v1173
        %v1654 = vpack.c.b16 %v1180, %v1174
        %v1655 = vpack.c.b16 %v1181, %v1175
        %v1656 = vpack.c.b16 %v1182, %v1176
        %v1657 = vpack.c.b16 %v1189, %v1183
        %v1658 = vpack.c.b16 %v1190, %v1184
        %v1659 = vpack.c.b16 %v1191, %v1185
        %v1660 = vpack.c.b16 %v1192, %v1186
        %v1661 = vpack.c.b16 %v1193, %v1187
        %v1662 = vpack.c.b16 %v1194, %v1188
        %v1663 = vpack.c.b16 %v1201, %v1195
        %v1664 = vpack.c.b16 %v1202, %v1196
        %v1665 = vpack.c.b16 %v1203, %v1197
        %v1666 = vpack.c.b16 %v1204, %v1198
        %v1667 = vpack.c.b16 %v1205, %v1199
        %v1668 = vpack.c.b16 %v1206, %v1200
        %v1669 = vpack.c.b16 %v1213, %v1207
        %v1670 = vpack.c.b16 %v1214, %v1208
        %v1671 = vpack.c.b16 %v1215, %v1209
        %v1672 = vpack.c.b16 %v1216, %v1210
        %v1673 = vpack.c.b16 %v1217, %v1211
        %v1674 = vpack.c.b16 %v1218, %v1212
        %v1675 = vpack.c.b16 %v1225, %v1219
        %v1676 = vpack.c.b16 %v1226, %v1220
        %v1677 = vpack.c.b16 %v1227, %v1221
        %v1678 = vpack.c.b16 %v1228, %v1222
        %v1679 = vpack.c.b16 %v1229, %v1223
        %v1680 = vpack.c.b16 %v1230, %v1224
        %v1681 = vpack.c.b16 %v1237, %v1231
        %v1682 = vpack.c.b16 %v1238, %v1232
        %v1683 = vpack.c.b16 %v1239, %v1233
        %v1684 = vpack.c.b16 %v1240, %v1234
        %v1685 = vpack.c.b16 %v1241, %v1235
        %v1686 = vpack.c.b16 %v1242, %v1236
        %v1687 = vpack.c.b16 %v1249, %v1243
        %v1688 = vpack.c.b16 %v1250, %v1244
        %v1689 = vpack.c.b16 %v1251, %v1245
        %v1690 = vpack.c.b16 %v1252, %v1246
        %v1691 = vpack.c.b16 %v1253, %v1247
        %v1692 = vpack.c.b16 %v1254, %v1248
        %v1693 = vpack.c.b16 %v1261, %v1255
        %v1694 = vpack.c.b16 %v1262, %v1256
        %v1695 = vpack.c.b16 %v1263, %v1257
        %v1696 = vpack.c.b16 %v1264, %v1258
        %v1697 = vpack.c.b16 %v1265, %v1259
        %v1698 = vpack.c.b16 %v1266, %v1260
        %v1699 = vpack.c.b16 %v1273, %v1267
        %v1700 = vpack.c.b16 %v1274, %v1268
        %v1701 = vpack.c.b16 %v1275, %v1269
        %v1702 = vpack.c.b16 %v1276, %v1270
        %v1703 = vpack.c.b16 %v1277, %v1271
        %v1704 = vpack.c.b16 %v1278, %v1272
        %v1705 = vpack.c.b16 %v1285, %v1279
        %v1706 = vpack.c.b16 %v1286, %v1280
        %v1707 = vpack.c.b16 %v1287, %v1281
        %v1708 = vpack.c.b16 %v1288, %v1282
        %v1709 = vpack.c.b16 %v1289, %v1283
        %v1710 = vpack.c.b16 %v1290, %v1284
        %v1711 = vpack.c.b16 %v1297, %v1291
        %v1712 = vpack.c.b16 %v1298, %v1292
        %v1713 = vpack.c.b16 %v1299, %v1293
        %v1714 = vpack.c.b16 %v1300, %v1294
        %v1715 = vpack.c.b16 %v1301, %v1295
        %v1716 = vpack.c.b16 %v1302, %v1296
        %v1717 = vpack.c.b16 %v1309, %v1303
        %v1718 = vpack.c.b16 %v1310, %v1304
        %v1719 = vpack.c.b16 %v1311, %v1305
        %v1720 = vpack.c.b16 %v1312, %v1306
        %v1721 = vpack.c.b16 %v1313, %v1307
        %v1722 = vpack.c.b16 %v1314, %v1308
        %v1723 = vpack.c.b16 %v1321, %v1315
        %v1724 = vpack.c.b16 %v1322, %v1316
        %v1725 = vpack.c.b16 %v1323, %v1317
        %v1726 = vpack.c.b16 %v1324, %v1318
        %v1727 = vpack.c.b16 %v1325, %v1319
        %v1728 = vpack.c.b16 %v1326, %v1320
        %v1729 = vpack.c.b16 %v1333, %v1327
        %v1730 = vpack.c.b16 %v1334, %v1328
        %v1731 = vpack.c.b16 %v1335, %v1329
        %v1732 = vpack.c.b16 %v1336, %v1330
        %v1733 = vpack.c.b16 %v1337, %v1331
        %v1734 = vpack.c.b16 %v1338, %v1332
        %v1735 = vpack.c.b16 %v1345, %v1339
        %v1736 = vpack.c.b16 %v1346, %v1340
        %v1737 = vpack.c.b16 %v1347, %v1341
        %v1738 = vpack.c.b16 %v1348, %v1342
        %v1739 = vpack.c.b16 %v1349, %v1343
        %v1740 = vpack.c.b16 %v1350, %v1344
        %v1741 = vpack.c.b16 %v1357, %v1351
        %v1742 = vpack.c.b16 %v1358, %v1352
        %v1743 = vpack.c.b16 %v1359, %v1353
        %v1744 = vpack.c.b16 %v1360, %v1354
        %v1745 = vpack.c.b16 %v1361, %v1355
        %v1746 = vpack.c.b16 %v1362, %v1356
        %v1747 = vpack.c.b16 %v1369, %v1363
        %v1748 = vpack.c.b16 %v1370, %v1364
        %v1749 = vpack.c.b16 %v1371, %v1365
        %v1750 = vpack.c.b16 %v1372, %v1366
        %v1751 = vpack.c.b16 %v1373, %v1367
        %v1752 = vpack.c.b16 %v1374, %v1368
        %v1753 = vpack.c.b16 %v1381, %v1375
        %v1754 = vpack.c.b16 %v1382, %v1376
        %v1755 = vpack.c.b16 %v1383, %v1377
        %v1756 = vpack.c.b16 %v1384, %v1378
        %v1757 = vpack.c.b16 %v1385, %v1379
        %v1758 = vpack.c.b16 %v1386, %v1380
        %v1759 = vpack.c.b16 %v1393, %v1387
        %v1760 = vpack.c.b16 %v1394, %v1388
        %v1761 = vpack.c.b16 %v1395, %v1389
        %v1762 = vpack.c.b16 %v1396, %v1390
        %v1763 = vpack.c.b16 %v1397, %v1391
        %v1764 = vpack.c.b16 %v1398, %v1392
        %v1765 = vpack.c.b16 %v1405, %v1399
        %v1766 = vpack.c.b16 %v1406, %v1400
        %v1767 = vpack.c.b16 %v1407, %v1401
        %v1768 = vpack.c.b16 %v1408, %v1402
        %v1769 = vpack.c.b16 %v1409, %v1403
        %v1770 = vpack.c.b16 %v1410, %v1404
        %v1771 = vpack.c.b16 %v1417, %v1411
        %v1772 = vpack.c.b16 %v1418, %v1412
        %v1773 = vpack.c.b16 %v1419, %v1413
        %v1774 = vpack.c.b16 %v1420, %v1414
        %v1775 = vpack.c.b16 %v1421, %v1415
        %v1776 = vpack.c.b16 %v1422, %v1416
        %v1777 = vpack.c.b16 %v1429, %v1423
        %v1778 = vpack.c.b16 %v1430, %v1424
        %v1779 = vpack.c.b16 %v1431, %v1425
        %v1780 = vpack.c.b16 %v1432, %v1426
        %v1781 = vpack.c.b16 %v1433, %v1427
        %v1782 = vpack.c.b16 %v1434, %v1428
        %v1783 = vpack.c.b16 %v1441, %v1435
        %v1784 = vpack.c.b16 %v1442, %v1436
        %v1785 = vpack.c.b16 %v1443, %v1437
        %v1786 = vpack.c.b16 %v1444, %v1438
        %v1787 = vpack.c.b16 %v1445, %v1439
        %v1788 = vpack.c.b16 %v1446, %v1440
        %v1789 = vpack.c.b16 %v1453, %v1447
        %v1790 = vpack.c.b16 %v1454, %v1448
        %v1791 = vpack.c.b16 %v1455, %v1449
        %v1792 = vpack.c.b16 %v1456, %v1450
        %v1793 = vpack.c.b16 %v1457, %v1451
        %v1794 = vpack.c.b16 %v1458, %v1452
        %v1795 = vpack.c.b16 %v1465, %v1459
        %v1796 = vpack.c.b16 %v1466, %v1460
        %v1797 = vpack.c.b16 %v1467, %v1461
        %v1798 = vpack.c.b16 %v1468, %v1462
        %v1799 = vpack.c.b16 %v1469, %v1463
        %v1800 = vpack.c.b16 %v1470, %v1464
        %v1801 = vpack.c.b16 %v1477, %v1471
        %v1802 = vpack.c.b16 %v1478, %v1472
        %v1803 = vpack.c.b16 %v1479, %v1473
        %v1804 = vpack.c.b16 %v1480, %v1474
        %v1805 = vpack.c.b16 %v1481, %v1475
        %v1806 = vpack.c.b16 %v1482, %v1476
        %v1807 = vpack.c.b16 %v1489, %v1483
        %v1808 = vpack.c.b16 %v1490, %v1484
        %v1809 = vpack.c.b16 %v1491, %v1485
        %v1810 = vpack.c.b16 %v1492, %v1486
        %v1811 = vpack.c.b16 %v1493, %v1487
        %v1812 = vpack.c.b16 %v1494, %v1488
        %v1813 = vpack.c.b16 %v1501, %v1495
        %v1814 = vpack.c.b16 %v1502, %v1496
        %v1815 = vpack.c.b16 %v1503, %v1497
        %v1816 = vpack.c.b16 %v1504, %v1498
        %v1817 = vpack.c.b16 %v1505, %v1499
        %v1818 = vpack.c.b16 %v1506, %v1500
        %v1819 = vpack.c.b16 %v1513, %v1507
        %v1820 = vpack.c.b16 %v1514, %v1508
        %v1821 = vpack.c.b16 %v1515, %v1509
        %v1822 = vpack.c.b16 %v1516, %v1510
        %v1823 = vpack.c.b16 %v1517, %v1511
        %v1824 = vpack.c.b16 %v1518, %v1512
        %v1825 = vpack.c.b16 %v1525, %v1519
        %v1826 = vpack.c.b16 %v1526, %v1520
        %v1827 = vpack.c.b16 %v1527, %v1521
        %v1828 = vpack.c.b16 %v1528, %v1522
        %v1829 = vpack.c.b16 %v1529, %v1523
        %v1830 = vpack.c.b16 %v1530, %v1524
        %v1831 = vpack.c.b16 %v1537, %v1531
        %v1832 = vpack.c.b16 %v1538, %v1532
        %v1833 = vpack.c.b16 %v1539, %v1533
        %v1834 = vpack.c.b16 %v1540, %v1534
        %v1835 = vpack.c.b16 %v1541, %v1535
        %v1836 = vpack.c.b16 %v1542, %v1536
        %v1837 = vpack.c.b16 %v1549, %v1543
        %v1838 = vpack.c.b16 %v1550, %v1544
        %v1839 = vpack.c.b16 %v1551, %v1545
        %v1840 = vpack.c.b16 %v1552, %v1546
        %v1841 = vpack.c.b16 %v1553, %v1547
        %v1842 = vpack.c.b16 %v1554, %v1548
        %2131 = vmatprep.subr.bf16.mxu0 %v1556
        %2132 = vmatpush1.bf16.msra.mxu0 %v1555
        %2133 = vmatprep.subr.bf16.mxu0 %v1562
        %2134 = vmatpush1.bf16.msra.mxu0 %v1561
        %2135 = vmatprep.subr.bf16.mxu0 %v1568
        %2136 = vmatpush1.bf16.msra.mxu0 %v1567
        %2137 = vmatprep.subr.bf16.mxu0 %v1574
        %2138 = vmatpush1.bf16.msra.mxu0 %v1573
        %2139 = vmatprep.subr.bf16.mxu0 %v1580
        %2140 = vmatpush1.bf16.msra.mxu0 %v1579
        %2141 = vmatprep.subr.bf16.mxu0 %v1586
        %2142 = vmatpush1.bf16.msra.mxu0 %v1585
        %2143 = vmatprep.subr.bf16.mxu0 %v1592
        %2144 = vmatpush1.bf16.msra.mxu0 %v1591
        %2145 = vmatprep.subr.bf16.mxu0 %v1598
        %2146 = vmatpush1.bf16.msra.mxu0 %v1597
        %2147 = vmatprep.subr.bf16.mxu0 %v1604
        %2148 = vmatpush1.bf16.msra.mxu0 %v1603
        %2149 = vmatprep.subr.bf16.mxu0 %v1610
        %2150 = vmatpush1.bf16.msra.mxu0 %v1609
        %2151 = vmatprep.subr.bf16.mxu0 %v1616
        %2152 = vmatpush1.bf16.msra.mxu0 %v1615
        %2153 = vmatprep.subr.bf16.mxu0 %v1622
        %2154 = vmatpush1.bf16.msra.mxu0 %v1621
        %2155 = vmatprep.subr.bf16.mxu0 %v1628
        %2156 = vmatpush1.bf16.msra.mxu0 %v1627
        %2157 = vmatprep.subr.bf16.mxu0 %v1634
        %2158 = vmatpush1.bf16.msra.mxu0 %v1633
        %2159 = vmatprep.subr.bf16.mxu0 %v1640
        %2160 = vmatpush1.bf16.msra.mxu0 %v1639
        %2161 = vmatprep.subr.bf16.mxu0 %v1646
        %2162 = vmatpush1.bf16.msra.mxu0 %v1645
        %2163 = vmatprep.mubr.bf16.mxu0 %v644
        %2164 = vmatmul.mubr.bf16.gmra.mrb[0].mxu0 %v643
        %v2165 = vpop.f32.mrb[0].mxu0
        %v2166 = vadd.f32 0.0, %v2165
        %v2167 = vpop.f32.mrb[0].mxu0
        %v2168 = vadd.f32 0.0, %v2167
        %v2169 = vpop.f32.mrb[0].mxu0
        %v2170 = vadd.f32 0.0, %v2169
        %v2171 = vpop.f32.mrb[0].mxu0
        %v2172 = vadd.f32 0.0, %v2171
        %2173 = vmatprep.mubr.bf16.mxu0 %v650
        %2174 = vmatmul.mubr.bf16.gmra.mrb[0].mxu0 %v649
        %v2175 = vpop.f32.mrb[0].mxu0
        %v2176 = vadd.f32 0.0, %v2175
        %v2177 = vpop.f32.mrb[0].mxu0
        %v2178 = vadd.f32 0.0, %v2177
        %v2179 = vpop.f32.mrb[0].mxu0
        %v2180 = vadd.f32 0.0, %v2179
        %v2181 = vpop.f32.mrb[0].mxu0
        %v2182 = vadd.f32 0.0, %v2181
        %2183 = vmatprep.mubr.bf16.mxu0 %v656
        %2184 = vmatmul.mubr.bf16.gmra.mrb[0].mxu0 %v655
        %v2185 = vpop.f32.mrb[0].mxu0
        %v2186 = vadd.f32 0.0, %v2185
        %v2187 = vpop.f32.mrb[0].mxu0
        %v2188 = vadd.f32 0.0, %v2187
        %v2189 = vpop.f32.mrb[0].mxu0
        %v2190 = vadd.f32 0.0, %v2189
        %v2191 = vpop.f32.mrb[0].mxu0
        %v2192 = vadd.f32 0.0, %v2191
        %2193 = vmatprep.mubr.bf16.mxu0 %v662
        %2194 = vmatmul.mubr.bf16.gmra.mrb[0].mxu0 %v661
        %v2195 = vpop.f32.mrb[0].mxu0
        %v2196 = vadd.f32 0.0, %v2195
        %v2197 = vpop.f32.mrb[0].mxu0
        %v2198 = vadd.f32 0.0, %v2197
        %v2199 = vpop.f32.mrb[0].mxu0
        %v2200 = vadd.f32 0.0, %v2199
        %v2201 = vpop.f32.mrb[0].mxu0
        %v2202 = vadd.f32 0.0, %v2201
        %2203 = vdwg.mxu0
        %2204 = vmatprep.subr.bf16.mxu0 %v1652
        %2205 = vmatpush1.bf16.msra.mxu0 %v1651
        %2206 = vmatprep.subr.bf16.mxu0 %v1658
        %2207 = vmatpush1.bf16.msra.mxu0 %v1657
        %2208 = vmatprep.subr.bf16.mxu0 %v1664
        %2209 = vmatpush1.bf16.msra.mxu0 %v1663
        %2210 = vmatprep.subr.bf16.mxu0 %v1670
        %2211 = vmatpush1.bf16.msra.mxu0 %v1669
        %2212 = vmatprep.subr.bf16.mxu0 %v1676
        %2213 = vmatpush1.bf16.msra.mxu0 %v1675
        %2214 = vmatprep.subr.bf16.mxu0 %v1682
        %2215 = vmatpush1.bf16.msra.mxu0 %v1681
        %2216 = vmatprep.subr.bf16.mxu0 %v1688
        %2217 = vmatpush1.bf16.msra.mxu0 %v1687
        %2218 = vmatprep.subr.bf16.mxu0 %v1694
        %2219 = vmatpush1.bf16.msra.mxu0 %v1693
        %2220 = vmatprep.subr.bf16.mxu0 %v1700
        %2221 = vmatpush1.bf16.msra.mxu0 %v1699
        %2222 = vmatprep.subr.bf16.mxu0 %v1706
        %2223 = vmatpush1.bf16.msra.mxu0 %v1705
        %2224 = vmatprep.subr.bf16.mxu0 %v1712
        %2225 = vmatpush1.bf16.msra.mxu0 %v1711
        %2226 = vmatprep.subr.bf16.mxu0 %v1718
        %2227 = vmatpush1.bf16.msra.mxu0 %v1717
        %2228 = vmatprep.subr.bf16.mxu0 %v1724
        %2229 = vmatpush1.bf16.msra.mxu0 %v1723
        %2230 = vmatprep.subr.bf16.mxu0 %v1730
        %2231 = vmatpush1.bf16.msra.mxu0 %v1729
        %2232 = vmatprep.subr.bf16.mxu0 %v1736
        %2233 = vmatpush1.bf16.msra.mxu0 %v1735
        %2234 = vmatprep.subr.bf16.mxu0 %v1742
        %2235 = vmatpush1.bf16.msra.mxu0 %v1741
        %2236 = vmatprep.mubr.bf16.mxu0 %v646
        %2237 = vmatmul.mubr.bf16.gmra.mrb[0].mxu0 %v645
        %v2238 = vpop.f32.mrb[0].mxu0
        %v2239 = vadd.f32 %v2166, %v2238
        %v2240 = vpop.f32.mrb[0].mxu0
        %v2241 = vadd.f32 %v2168, %v2240
        %v2242 = vpop.f32.mrb[0].mxu0
        %v2243 = vadd.f32 %v2170, %v2242
        %v2244 = vpop.f32.mrb[0].mxu0
        %v2245 = vadd.f32 %v2172, %v2244
        %2246 = vmatprep.mubr.bf16.mxu0 %v652
        %2247 = vmatmul.mubr.bf16.gmra.mrb[0].mxu0 %v651
        %v2248 = vpop.f32.mrb[0].mxu0
        %v2249 = vadd.f32 %v2176, %v2248
        %v2250 = vpop.f32.mrb[0].mxu0
        %v2251 = vadd.f32 %v2178, %v2250
        %v2252 = vpop.f32.mrb[0].mxu0
        %v2253 = vadd.f32 %v2180, %v2252
        %v2254 = vpop.f32.mrb[0].mxu0
        %v2255 = vadd.f32 %v2182, %v2254
        %2256 = vmatprep.mubr.bf16.mxu0 %v658
        %2257 = vmatmul.mubr.bf16.gmra.mrb[0].mxu0 %v657
        %v2258 = vpop.f32.mrb[0].mxu0
        %v2259 = vadd.f32 %v2186, %v2258
        %v2260 = vpop.f32.mrb[0].mxu0
        %v2261 = vadd.f32 %v2188, %v2260
        %v2262 = vpop.f32.mrb[0].mxu0
        %v2263 = vadd.f32 %v2190, %v2262
        %v2264 = vpop.f32.mrb[0].mxu0
        %v2265 = vadd.f32 %v2192, %v2264
        %2266 = vmatprep.mubr.bf16.mxu0 %v664
        %2267 = vmatmul.mubr.bf16.gmra.mrb[0].mxu0 %v663
        %v2268 = vpop.f32.mrb[0].mxu0
        %v2269 = vadd.f32 %v2196, %v2268
        %v2270 = vpop.f32.mrb[0].mxu0
        %v2271 = vadd.f32 %v2198, %v2270
        %v2272 = vpop.f32.mrb[0].mxu0
        %v2273 = vadd.f32 %v2200, %v2272
        %v2274 = vpop.f32.mrb[0].mxu0
        %v2275 = vadd.f32 %v2202, %v2274
        %2276 = vdwg.mxu0
        %2277 = vmatprep.subr.bf16.mxu0 %v1748
        %2278 = vmatpush1.bf16.msra.mxu0 %v1747
        %2279 = vmatprep.subr.bf16.mxu0 %v1754
        %2280 = vmatpush1.bf16.msra.mxu0 %v1753
        %2281 = vmatprep.subr.bf16.mxu0 %v1760
        %2282 = vmatpush1.bf16.msra.mxu0 %v1759
        %2283 = vmatprep.subr.bf16.mxu0 %v1766
        %2284 = vmatpush1.bf16.msra.mxu0 %v1765
        %2285 = vmatprep.subr.bf16.mxu0 %v1772
        %2286 = vmatpush1.bf16.msra.mxu0 %v1771
        %2287 = vmatprep.subr.bf16.mxu0 %v1778
        %2288 = vmatpush1.bf16.msra.mxu0 %v1777
        %2289 = vmatprep.subr.bf16.mxu0 %v1784
        %2290 = vmatpush1.bf16.msra.mxu0 %v1783
        %2291 = vmatprep.subr.bf16.mxu0 %v1790
        %2292 = vmatpush1.bf16.msra.mxu0 %v1789
        %2293 = vmatprep.subr.bf16.mxu0 %v1796
        %2294 = vmatpush1.bf16.msra.mxu0 %v1795
        %2295 = vmatprep.subr.bf16.mxu0 %v1802
        %2296 = vmatpush1.bf16.msra.mxu0 %v1801
        %2297 = vmatprep.subr.bf16.mxu0 %v1808
        %2298 = vmatpush1.bf16.msra.mxu0 %v1807
        %2299 = vmatprep.subr.bf16.mxu0 %v1814
        %2300 = vmatpush1.bf16.msra.mxu0 %v1813
        %2301 = vmatprep.subr.bf16.mxu0 %v1820
        %2302 = vmatpush1.bf16.msra.mxu0 %v1819
        %2303 = vmatprep.subr.bf16.mxu0 %v1826
        %2304 = vmatpush1.bf16.msra.mxu0 %v1825
        %2305 = vmatprep.subr.bf16.mxu0 %v1832
        %2306 = vmatpush1.bf16.msra.mxu0 %v1831
        %2307 = vmatprep.subr.bf16.mxu0 %v1838
        %2308 = vmatpush1.bf16.msra.mxu0 %v1837
        %2309 = vmatprep.mubr.bf16.mxu0 %v648
        %2310 = vmatmul.mubr.bf16.gmra.mrb[0].mxu0 %v647
        %v2311 = vpop.f32.mrb[0].mxu0
        %v2312 = vadd.f32 %v2239, %v2311
        %v2313 = vpop.f32.mrb[0].mxu0
        %v2314 = vadd.f32 %v2241, %v2313
        %v2315 = vpop.f32.mrb[0].mxu0
        %v2316 = vadd.f32 %v2243, %v2315
        %v2317 = vpop.f32.mrb[0].mxu0
        %v2318 = vadd.f32 %v2245, %v2317
        %2319 = vmatprep.mubr.bf16.mxu0 %v654
        %2320 = vmatmul.mubr.bf16.gmra.mrb[0].mxu0 %v653
        %v2321 = vpop.f32.mrb[0].mxu0
        %v2322 = vadd.f32 %v2249, %v2321
        %v2323 = vpop.f32.mrb[0].mxu0
        %v2324 = vadd.f32 %v2251, %v2323
        %v2325 = vpop.f32.mrb[0].mxu0
        %v2326 = vadd.f32 %v2253, %v2325
        %v2327 = vpop.f32.mrb[0].mxu0
        %v2328 = vadd.f32 %v2255, %v2327
        %2329 = vmatprep.mubr.bf16.mxu0 %v660
        %2330 = vmatmul.mubr.bf16.gmra.mrb[0].mxu0 %v659
        %v2331 = vpop.f32.mrb[0].mxu0
        %v2332 = vadd.f32 %v2259, %v2331
        %v2333 = vpop.f32.mrb[0].mxu0
        %v2334 = vadd.f32 %v2261, %v2333
        %v2335 = vpop.f32.mrb[0].mxu0
        %v2336 = vadd.f32 %v2263, %v2335
        %v2337 = vpop.f32.mrb[0].mxu0
        %v2338 = vadd.f32 %v2265, %v2337
        %2339 = vmatprep.mubr.bf16.mxu0 %v666
        %2340 = vmatmul.mubr.bf16.gmra.mrb[0].mxu0 %v665
        %v2341 = vpop.f32.mrb[0].mxu0
        %v2342 = vadd.f32 %v2269, %v2341
        %v2343 = vpop.f32.mrb[0].mxu0
        %v2344 = vadd.f32 %v2271, %v2343
        %v2345 = vpop.f32.mrb[0].mxu0
        %v2346 = vadd.f32 %v2273, %v2345
        %v2347 = vpop.f32.mrb[0].mxu0
        %v2348 = vadd.f32 %v2275, %v2347
        %2349 = vdwg.mxu0
        %2350 = vmatprep.subr.bf16.mxu0 %v1558
        %2351 = vmatpush1.bf16.msra.mxu0 %v1557
        %2352 = vmatprep.subr.bf16.mxu0 %v1564
        %2353 = vmatpush1.bf16.msra.mxu0 %v1563
        %2354 = vmatprep.subr.bf16.mxu0 %v1570
        %2355 = vmatpush1.bf16.msra.mxu0 %v1569
        %2356 = vmatprep.subr.bf16.mxu0 %v1576
        %2357 = vmatpush1.bf16.msra.mxu0 %v1575
        %2358 = vmatprep.subr.bf16.mxu0 %v1582
        %2359 = vmatpush1.bf16.msra.mxu0 %v1581
        %2360 = vmatprep.subr.bf16.mxu0 %v1588
        %2361 = vmatpush1.bf16.msra.mxu0 %v1587
        %2362 = vmatprep.subr.bf16.mxu0 %v1594
        %2363 = vmatpush1.bf16.msra.mxu0 %v1593
        %2364 = vmatprep.subr.bf16.mxu0 %v1600
        %2365 = vmatpush1.bf16.msra.mxu0 %v1599
        %2366 = vmatprep.subr.bf16.mxu0 %v1606
        %2367 = vmatpush1.bf16.msra.mxu0 %v1605
        %2368 = vmatprep.subr.bf16.mxu0 %v1612
        %2369 = vmatpush1.bf16.msra.mxu0 %v1611
        %2370 = vmatprep.subr.bf16.mxu0 %v1618
        %2371 = vmatpush1.bf16.msra.mxu0 %v1617
        %2372 = vmatprep.subr.bf16.mxu0 %v1624
        %2373 = vmatpush1.bf16.msra.mxu0 %v1623
        %2374 = vmatprep.subr.bf16.mxu0 %v1630
        %2375 = vmatpush1.bf16.msra.mxu0 %v1629
        %2376 = vmatprep.subr.bf16.mxu0 %v1636
        %2377 = vmatpush1.bf16.msra.mxu0 %v1635
        %2378 = vmatprep.subr.bf16.mxu0 %v1642
        %2379 = vmatpush1.bf16.msra.mxu0 %v1641
        %2380 = vmatprep.subr.bf16.mxu0 %v1648
        %2381 = vmatpush1.bf16.msra.mxu0 %v1647
        %2382 = vmatprep.mubr.bf16.mxu0 %v644
        %2383 = vmatmul.mubr.bf16.gmra.mrb[0].mxu0 %v643
        %v2384 = vpop.f32.mrb[0].mxu0
        %v2385 = vadd.f32 0.0, %v2384
        %v2386 = vpop.f32.mrb[0].mxu0
        %v2387 = vadd.f32 0.0, %v2386
        %v2388 = vpop.f32.mrb[0].mxu0
        %v2389 = vadd.f32 0.0, %v2388
        %v2390 = vpop.f32.mrb[0].mxu0
        %v2391 = vadd.f32 0.0, %v2390
        %2392 = vmatprep.mubr.bf16.mxu0 %v650
        %2393 = vmatmul.mubr.bf16.gmra.mrb[0].mxu0 %v649
        %v2394 = vpop.f32.mrb[0].mxu0
        %v2395 = vadd.f32 0.0, %v2394
        %v2396 = vpop.f32.mrb[0].mxu0
        %v2397 = vadd.f32 0.0, %v2396
        %v2398 = vpop.f32.mrb[0].mxu0
        %v2399 = vadd.f32 0.0, %v2398
        %v2400 = vpop.f32.mrb[0].mxu0
        %v2401 = vadd.f32 0.0, %v2400
        %2402 = vmatprep.mubr.bf16.mxu0 %v656
        %2403 = vmatmul.mubr.bf16.gmra.mrb[0].mxu0 %v655
        %v2404 = vpop.f32.mrb[0].mxu0
        %v2405 = vadd.f32 0.0, %v2404
        %v2406 = vpop.f32.mrb[0].mxu0
        %v2407 = vadd.f32 0.0, %v2406
        %v2408 = vpop.f32.mrb[0].mxu0
        %v2409 = vadd.f32 0.0, %v2408
        %v2410 = vpop.f32.mrb[0].mxu0
        %v2411 = vadd.f32 0.0, %v2410
        %2412 = vmatprep.mubr.bf16.mxu0 %v662
        %2413 = vmatmul.mubr.bf16.gmra.mrb[0].mxu0 %v661
        %v2414 = vpop.f32.mrb[0].mxu0
        %v2415 = vadd.f32 0.0, %v2414
        %v2416 = vpop.f32.mrb[0].mxu0
        %v2417 = vadd.f32 0.0, %v2416
        %v2418 = vpop.f32.mrb[0].mxu0
        %v2419 = vadd.f32 0.0, %v2418
        %v2420 = vpop.f32.mrb[0].mxu0
        %v2421 = vadd.f32 0.0, %v2420
        %2422 = vdwg.mxu0
        %2423 = vmatprep.subr.bf16.mxu0 %v1654
        %2424 = vmatpush1.bf16.msra.mxu0 %v1653
        %2425 = vmatprep.subr.bf16.mxu0 %v1660
        %2426 = vmatpush1.bf16.msra.mxu0 %v1659
        %2427 = vmatprep.subr.bf16.mxu0 %v1666
        %2428 = vmatpush1.bf16.msra.mxu0 %v1665
        %2429 = vmatprep.subr.bf16.mxu0 %v1672
        %2430 = vmatpush1.bf16.msra.mxu0 %v1671
        %2431 = vmatprep.subr.bf16.mxu0 %v1678
        %2432 = vmatpush1.bf16.msra.mxu0 %v1677
        %2433 = vmatprep.subr.bf16.mxu0 %v1684
        %2434 = vmatpush1.bf16.msra.mxu0 %v1683
        %2435 = vmatprep.subr.bf16.mxu0 %v1690
        %2436 = vmatpush1.bf16.msra.mxu0 %v1689
        %2437 = vmatprep.subr.bf16.mxu0 %v1696
        %2438 = vmatpush1.bf16.msra.mxu0 %v1695
        %2439 = vmatprep.subr.bf16.mxu0 %v1702
        %2440 = vmatpush1.bf16.msra.mxu0 %v1701
        %2441 = vmatprep.subr.bf16.mxu0 %v1708
        %2442 = vmatpush1.bf16.msra.mxu0 %v1707
        %2443 = vmatprep.subr.bf16.mxu0 %v1714
        %2444 = vmatpush1.bf16.msra.mxu0 %v1713
        %2445 = vmatprep.subr.bf16.mxu0 %v1720
        %2446 = vmatpush1.bf16.msra.mxu0 %v1719
        %2447 = vmatprep.subr.bf16.mxu0 %v1726
        %2448 = vmatpush1.bf16.msra.mxu0 %v1725
        %2449 = vmatprep.subr.bf16.mxu0 %v1732
        %2450 = vmatpush1.bf16.msra.mxu0 %v1731
        %2451 = vmatprep.subr.bf16.mxu0 %v1738
        %2452 = vmatpush1.bf16.msra.mxu0 %v1737
        %2453 = vmatprep.subr.bf16.mxu0 %v1744
        %2454 = vmatpush1.bf16.msra.mxu0 %v1743
        %2455 = vmatprep.mubr.bf16.mxu0 %v646
        %2456 = vmatmul.mubr.bf16.gmra.mrb[0].mxu0 %v645
        %v2457 = vpop.f32.mrb[0].mxu0
        %v2458 = vadd.f32 %v2385, %v2457
        %v2459 = vpop.f32.mrb[0].mxu0
        %v2460 = vadd.f32 %v2387, %v2459
        %v2461 = vpop.f32.mrb[0].mxu0
        %v2462 = vadd.f32 %v2389, %v2461
        %v2463 = vpop.f32.mrb[0].mxu0
        %v2464 = vadd.f32 %v2391, %v2463
        %2465 = vmatprep.mubr.bf16.mxu0 %v652
        %2466 = vmatmul.mubr.bf16.gmra.mrb[0].mxu0 %v651
        %v2467 = vpop.f32.mrb[0].mxu0
        %v2468 = vadd.f32 %v2395, %v2467
        %v2469 = vpop.f32.mrb[0].mxu0
        %v2470 = vadd.f32 %v2397, %v2469
        %v2471 = vpop.f32.mrb[0].mxu0
        %v2472 = vadd.f32 %v2399, %v2471
        %v2473 = vpop.f32.mrb[0].mxu0
        %v2474 = vadd.f32 %v2401, %v2473
        %2475 = vmatprep.mubr.bf16.mxu0 %v658
        %2476 = vmatmul.mubr.bf16.gmra.mrb[0].mxu0 %v657
        %v2477 = vpop.f32.mrb[0].mxu0
        %v2478 = vadd.f32 %v2405, %v2477
        %v2479 = vpop.f32.mrb[0].mxu0
        %v2480 = vadd.f32 %v2407, %v2479
        %v2481 = vpop.f32.mrb[0].mxu0
        %v2482 = vadd.f32 %v2409, %v2481
        %v2483 = vpop.f32.mrb[0].mxu0
        %v2484 = vadd.f32 %v2411, %v2483
        %2485 = vmatprep.mubr.bf16.mxu0 %v664
        %2486 = vmatmul.mubr.bf16.gmra.mrb[0].mxu0 %v663
        %v2487 = vpop.f32.mrb[0].mxu0
        %v2488 = vadd.f32 %v2415, %v2487
        %v2489 = vpop.f32.mrb[0].mxu0
        %v2490 = vadd.f32 %v2417, %v2489
        %v2491 = vpop.f32.mrb[0].mxu0
        %v2492 = vadd.f32 %v2419, %v2491
        %v2493 = vpop.f32.mrb[0].mxu0
        %v2494 = vadd.f32 %v2421, %v2493
        %2495 = vdwg.mxu0
        %2496 = vmatprep.subr.bf16.mxu0 %v1750
        %2497 = vmatpush1.bf16.msra.mxu0 %v1749
        %2498 = vmatprep.subr.bf16.mxu0 %v1756
        %2499 = vmatpush1.bf16.msra.mxu0 %v1755
        %2500 = vmatprep.subr.bf16.mxu0 %v1762
        %2501 = vmatpush1.bf16.msra.mxu0 %v1761
        %2502 = vmatprep.subr.bf16.mxu0 %v1768
        %2503 = vmatpush1.bf16.msra.mxu0 %v1767
        %2504 = vmatprep.subr.bf16.mxu0 %v1774
        %2505 = vmatpush1.bf16.msra.mxu0 %v1773
        %2506 = vmatprep.subr.bf16.mxu0 %v1780
        %2507 = vmatpush1.bf16.msra.mxu0 %v1779
        %2508 = vmatprep.subr.bf16.mxu0 %v1786
        %2509 = vmatpush1.bf16.msra.mxu0 %v1785
        %2510 = vmatprep.subr.bf16.mxu0 %v1792
        %2511 = vmatpush1.bf16.msra.mxu0 %v1791
        %2512 = vmatprep.subr.bf16.mxu0 %v1798
        %2513 = vmatpush1.bf16.msra.mxu0 %v1797
        %2514 = vmatprep.subr.bf16.mxu0 %v1804
        %2515 = vmatpush1.bf16.msra.mxu0 %v1803
        %2516 = vmatprep.subr.bf16.mxu0 %v1810
        %2517 = vmatpush1.bf16.msra.mxu0 %v1809
        %2518 = vmatprep.subr.bf16.mxu0 %v1816
        %2519 = vmatpush1.bf16.msra.mxu0 %v1815
        %2520 = vmatprep.subr.bf16.mxu0 %v1822
        %2521 = vmatpush1.bf16.msra.mxu0 %v1821
        %2522 = vmatprep.subr.bf16.mxu0 %v1828
        %2523 = vmatpush1.bf16.msra.mxu0 %v1827
        %2524 = vmatprep.subr.bf16.mxu0 %v1834
        %2525 = vmatpush1.bf16.msra.mxu0 %v1833
        %2526 = vmatprep.subr.bf16.mxu0 %v1840
        %2527 = vmatpush1.bf16.msra.mxu0 %v1839
        %2528 = vmatprep.mubr.bf16.mxu0 %v648
        %2529 = vmatmul.mubr.bf16.gmra.mrb[0].mxu0 %v647
        %v2530 = vpop.f32.mrb[0].mxu0
        %v2531 = vadd.f32 %v2458, %v2530
        %v2532 = vpop.f32.mrb[0].mxu0
        %v2533 = vadd.f32 %v2460, %v2532
        %v2534 = vpop.f32.mrb[0].mxu0
        %v2535 = vadd.f32 %v2462, %v2534
        %v2536 = vpop.f32.mrb[0].mxu0
        %v2537 = vadd.f32 %v2464, %v2536
        %2538 = vmatprep.mubr.bf16.mxu0 %v654
        %2539 = vmatmul.mubr.bf16.gmra.mrb[0].mxu0 %v653
        %v2540 = vpop.f32.mrb[0].mxu0
        %v2541 = vadd.f32 %v2468, %v2540
        %v2542 = vpop.f32.mrb[0].mxu0
        %v2543 = vadd.f32 %v2470, %v2542
        %v2544 = vpop.f32.mrb[0].mxu0
        %v2545 = vadd.f32 %v2472, %v2544
        %v2546 = vpop.f32.mrb[0].mxu0
        %v2547 = vadd.f32 %v2474, %v2546
        %2548 = vmatprep.mubr.bf16.mxu0 %v660
        %2549 = vmatmul.mubr.bf16.gmra.mrb[0].mxu0 %v659
        %v2550 = vpop.f32.mrb[0].mxu0
        %v2551 = vadd.f32 %v2478, %v2550
        %v2552 = vpop.f32.mrb[0].mxu0
        %v2553 = vadd.f32 %v2480, %v2552
        %v2554 = vpop.f32.mrb[0].mxu0
        %v2555 = vadd.f32 %v2482, %v2554
        %v2556 = vpop.f32.mrb[0].mxu0
        %v2557 = vadd.f32 %v2484, %v2556
        %2558 = vmatprep.mubr.bf16.mxu0 %v666
        %2559 = vmatmul.mubr.bf16.gmra.mrb[0].mxu0 %v665
        %v2560 = vpop.f32.mrb[0].mxu0
        %v2561 = vadd.f32 %v2488, %v2560
        %v2562 = vpop.f32.mrb[0].mxu0
        %v2563 = vadd.f32 %v2490, %v2562
        %v2564 = vpop.f32.mrb[0].mxu0
        %v2565 = vadd.f32 %v2492, %v2564
        %v2566 = vpop.f32.mrb[0].mxu0
        %v2567 = vadd.f32 %v2494, %v2566
        %2568 = vdwg.mxu0
        %2569 = vmatprep.subr.bf16.mxu0 %v1560
        %2570 = vmatpush1.bf16.msra.mxu0 %v1559
        %2571 = vmatprep.subr.bf16.mxu0 %v1566
        %2572 = vmatpush1.bf16.msra.mxu0 %v1565
        %2573 = vmatprep.subr.bf16.mxu0 %v1572
        %2574 = vmatpush1.bf16.msra.mxu0 %v1571
        %2575 = vmatprep.subr.bf16.mxu0 %v1578
        %2576 = vmatpush1.bf16.msra.mxu0 %v1577
        %2577 = vmatprep.subr.bf16.mxu0 %v1584
        %2578 = vmatpush1.bf16.msra.mxu0 %v1583
        %2579 = vmatprep.subr.bf16.mxu0 %v1590
        %2580 = vmatpush1.bf16.msra.mxu0 %v1589
        %2581 = vmatprep.subr.bf16.mxu0 %v1596
        %2582 = vmatpush1.bf16.msra.mxu0 %v1595
        %2583 = vmatprep.subr.bf16.mxu0 %v1602
        %2584 = vmatpush1.bf16.msra.mxu0 %v1601
        %2585 = vmatprep.subr.bf16.mxu0 %v1608
        %2586 = vmatpush1.bf16.msra.mxu0 %v1607
        %2587 = vmatprep.subr.bf16.mxu0 %v1614
        %2588 = vmatpush1.bf16.msra.mxu0 %v1613
        %2589 = vmatprep.subr.bf16.mxu0 %v1620
        %2590 = vmatpush1.bf16.msra.mxu0 %v1619
        %2591 = vmatprep.subr.bf16.mxu0 %v1626
        %2592 = vmatpush1.bf16.msra.mxu0 %v1625
        %2593 = vmatprep.subr.bf16.mxu0 %v1632
        %2594 = vmatpush1.bf16.msra.mxu0 %v1631
        %2595 = vmatprep.subr.bf16.mxu0 %v1638
        %2596 = vmatpush1.bf16.msra.mxu0 %v1637
        %2597 = vmatprep.subr.bf16.mxu0 %v1644
        %2598 = vmatpush1.bf16.msra.mxu0 %v1643
        %2599 = vmatprep.subr.bf16.mxu0 %v1650
        %2600 = vmatpush1.bf16.msra.mxu0 %v1649
        %2601 = vmatprep.mubr.bf16.mxu0 %v644
        %2602 = vmatmul.mubr.bf16.gmra.mrb[0].mxu0 %v643
        %v2603 = vpop.f32.mrb[0].mxu0
        %v2604 = vadd.f32 0.0, %v2603
        %v2605 = vpop.f32.mrb[0].mxu0
        %v2606 = vadd.f32 0.0, %v2605
        %v2607 = vpop.f32.mrb[0].mxu0
        %v2608 = vadd.f32 0.0, %v2607
        %v2609 = vpop.f32.mrb[0].mxu0
        %v2610 = vadd.f32 0.0, %v2609
        %2611 = vmatprep.mubr.bf16.mxu0 %v650
        %2612 = vmatmul.mubr.bf16.gmra.mrb[0].mxu0 %v649
        %v2613 = vpop.f32.mrb[0].mxu0
        %v2614 = vadd.f32 0.0, %v2613
        %v2615 = vpop.f32.mrb[0].mxu0
        %v2616 = vadd.f32 0.0, %v2615
        %v2617 = vpop.f32.mrb[0].mxu0
        %v2618 = vadd.f32 0.0, %v2617
        %v2619 = vpop.f32.mrb[0].mxu0
        %v2620 = vadd.f32 0.0, %v2619
        %2621 = vmatprep.mubr.bf16.mxu0 %v656
        %2622 = vmatmul.mubr.bf16.gmra.mrb[0].mxu0 %v655
        %v2623 = vpop.f32.mrb[0].mxu0
        %v2624 = vadd.f32 0.0, %v2623
        %v2625 = vpop.f32.mrb[0].mxu0
        %v2626 = vadd.f32 0.0, %v2625
        %v2627 = vpop.f32.mrb[0].mxu0
        %v2628 = vadd.f32 0.0, %v2627
        %v2629 = vpop.f32.mrb[0].mxu0
        %v2630 = vadd.f32 0.0, %v2629
        %2631 = vmatprep.mubr.bf16.mxu0 %v662
        %2632 = vmatmul.mubr.bf16.gmra.mrb[0].mxu0 %v661
        %v2633 = vpop.f32.mrb[0].mxu0
        %v2634 = vadd.f32 0.0, %v2633
        %v2635 = vpop.f32.mrb[0].mxu0
        %v2636 = vadd.f32 0.0, %v2635
        %v2637 = vpop.f32.mrb[0].mxu0
        %v2638 = vadd.f32 0.0, %v2637
        %v2639 = vpop.f32.mrb[0].mxu0
        %v2640 = vadd.f32 0.0, %v2639
        %2641 = vdwg.mxu0
        %2642 = vmatprep.subr.bf16.mxu0 %v1656
        %2643 = vmatpush1.bf16.msra.mxu0 %v1655
        %2644 = vmatprep.subr.bf16.mxu0 %v1662
        %2645 = vmatpush1.bf16.msra.mxu0 %v1661
        %2646 = vmatprep.subr.bf16.mxu0 %v1668
        %2647 = vmatpush1.bf16.msra.mxu0 %v1667
        %2648 = vmatprep.subr.bf16.mxu0 %v1674
        %2649 = vmatpush1.bf16.msra.mxu0 %v1673
        %2650 = vmatprep.subr.bf16.mxu0 %v1680
        %2651 = vmatpush1.bf16.msra.mxu0 %v1679
        %2652 = vmatprep.subr.bf16.mxu0 %v1686
        %2653 = vmatpush1.bf16.msra.mxu0 %v1685
        %2654 = vmatprep.subr.bf16.mxu0 %v1692
        %2655 = vmatpush1.bf16.msra.mxu0 %v1691
        %2656 = vmatprep.subr.bf16.mxu0 %v1698
        %2657 = vmatpush1.bf16.msra.mxu0 %v1697
        %2658 = vmatprep.subr.bf16.mxu0 %v1704
        %2659 = vmatpush1.bf16.msra.mxu0 %v1703
        %2660 = vmatprep.subr.bf16.mxu0 %v1710
        %2661 = vmatpush1.bf16.msra.mxu0 %v1709
        %2662 = vmatprep.subr.bf16.mxu0 %v1716
        %2663 = vmatpush1.bf16.msra.mxu0 %v1715
        %2664 = vmatprep.subr.bf16.mxu0 %v1722
        %2665 = vmatpush1.bf16.msra.mxu0 %v1721
        %2666 = vmatprep.subr.bf16.mxu0 %v1728
        %2667 = vmatpush1.bf16.msra.mxu0 %v1727
        %2668 = vmatprep.subr.bf16.mxu0 %v1734
        %2669 = vmatpush1.bf16.msra.mxu0 %v1733
        %2670 = vmatprep.subr.bf16.mxu0 %v1740
        %2671 = vmatpush1.bf16.msra.mxu0 %v1739
        %2672 = vmatprep.subr.bf16.mxu0 %v1746
        %2673 = vmatpush1.bf16.msra.mxu0 %v1745
        %2674 = vmatprep.mubr.bf16.mxu0 %v646
        %2675 = vmatmul.mubr.bf16.gmra.mrb[0].mxu0 %v645
        %v2676 = vpop.f32.mrb[0].mxu0
        %v2677 = vadd.f32 %v2604, %v2676
        %v2678 = vpop.f32.mrb[0].mxu0
        %v2679 = vadd.f32 %v2606, %v2678
        %v2680 = vpop.f32.mrb[0].mxu0
        %v2681 = vadd.f32 %v2608, %v2680
        %v2682 = vpop.f32.mrb[0].mxu0
        %v2683 = vadd.f32 %v2610, %v2682
        %2684 = vmatprep.mubr.bf16.mxu0 %v652
        %2685 = vmatmul.mubr.bf16.gmra.mrb[0].mxu0 %v651
        %v2686 = vpop.f32.mrb[0].mxu0
        %v2687 = vadd.f32 %v2614, %v2686
        %v2688 = vpop.f32.mrb[0].mxu0
        %v2689 = vadd.f32 %v2616, %v2688
        %v2690 = vpop.f32.mrb[0].mxu0
        %v2691 = vadd.f32 %v2618, %v2690
        %v2692 = vpop.f32.mrb[0].mxu0
        %v2693 = vadd.f32 %v2620, %v2692
        %2694 = vmatprep.mubr.bf16.mxu0 %v658
        %2695 = vmatmul.mubr.bf16.gmra.mrb[0].mxu0 %v657
        %v2696 = vpop.f32.mrb[0].mxu0
        %v2697 = vadd.f32 %v2624, %v2696
        %v2698 = vpop.f32.mrb[0].mxu0
        %v2699 = vadd.f32 %v2626, %v2698
        %v2700 = vpop.f32.mrb[0].mxu0
        %v2701 = vadd.f32 %v2628, %v2700
        %v2702 = vpop.f32.mrb[0].mxu0
        %v2703 = vadd.f32 %v2630, %v2702
        %2704 = vmatprep.mubr.bf16.mxu0 %v664
        %2705 = vmatmul.mubr.bf16.gmra.mrb[0].mxu0 %v663
        %v2706 = vpop.f32.mrb[0].mxu0
        %v2707 = vadd.f32 %v2634, %v2706
        %v2708 = vpop.f32.mrb[0].mxu0
        %v2709 = vadd.f32 %v2636, %v2708
        %v2710 = vpop.f32.mrb[0].mxu0
        %v2711 = vadd.f32 %v2638, %v2710
        %v2712 = vpop.f32.mrb[0].mxu0
        %v2713 = vadd.f32 %v2640, %v2712
        %2714 = vdwg.mxu0
        %2715 = vmatprep.subr.bf16.mxu0 %v1752
        %2716 = vmatpush1.bf16.msra.mxu0 %v1751
        %2717 = vmatprep.subr.bf16.mxu0 %v1758
        %2718 = vmatpush1.bf16.msra.mxu0 %v1757
        %2719 = vmatprep.subr.bf16.mxu0 %v1764
        %2720 = vmatpush1.bf16.msra.mxu0 %v1763
        %2721 = vmatprep.subr.bf16.mxu0 %v1770
        %2722 = vmatpush1.bf16.msra.mxu0 %v1769
        %2723 = vmatprep.subr.bf16.mxu0 %v1776
        %2724 = vmatpush1.bf16.msra.mxu0 %v1775
        %2725 = vmatprep.subr.bf16.mxu0 %v1782
        %2726 = vmatpush1.bf16.msra.mxu0 %v1781
        %2727 = vmatprep.subr.bf16.mxu0 %v1788
        %2728 = vmatpush1.bf16.msra.mxu0 %v1787
        %2729 = vmatprep.subr.bf16.mxu0 %v1794
        %2730 = vmatpush1.bf16.msra.mxu0 %v1793
        %2731 = vmatprep.subr.bf16.mxu0 %v1800
        %2732 = vmatpush1.bf16.msra.mxu0 %v1799
        %2733 = vmatprep.subr.bf16.mxu0 %v1806
        %2734 = vmatpush1.bf16.msra.mxu0 %v1805
        %2735 = vmatprep.subr.bf16.mxu0 %v1812
        %2736 = vmatpush1.bf16.msra.mxu0 %v1811
        %2737 = vmatprep.subr.bf16.mxu0 %v1818
        %2738 = vmatpush1.bf16.msra.mxu0 %v1817
        %2739 = vmatprep.subr.bf16.mxu0 %v1824
        %2740 = vmatpush1.bf16.msra.mxu0 %v1823
        %2741 = vmatprep.subr.bf16.mxu0 %v1830
        %2742 = vmatpush1.bf16.msra.mxu0 %v1829
        %2743 = vmatprep.subr.bf16.mxu0 %v1836
        %2744 = vmatpush1.bf16.msra.mxu0 %v1835
        %2745 = vmatprep.subr.bf16.mxu0 %v1842
        %2746 = vmatpush1.bf16.msra.mxu0 %v1841
        %2747 = vmatprep.mubr.bf16.mxu0 %v648
        %2748 = vmatmul.mubr.bf16.gmra.mrb[0].mxu0 %v647
        %v2749 = vpop.f32.mrb[0].mxu0
        %v2750 = vadd.f32 %v2677, %v2749
        %v2751 = vpop.f32.mrb[0].mxu0
        %v2752 = vadd.f32 %v2679, %v2751
        %v2753 = vpop.f32.mrb[0].mxu0
        %v2754 = vadd.f32 %v2681, %v2753
        %v2755 = vpop.f32.mrb[0].mxu0
        %v2756 = vadd.f32 %v2683, %v2755
        %2757 = vmatprep.mubr.bf16.mxu0 %v654
        %2758 = vmatmul.mubr.bf16.gmra.mrb[0].mxu0 %v653
        %v2759 = vpop.f32.mrb[0].mxu0
        %v2760 = vadd.f32 %v2687, %v2759
        %v2761 = vpop.f32.mrb[0].mxu0
        %v2762 = vadd.f32 %v2689, %v2761
        %v2763 = vpop.f32.mrb[0].mxu0
        %v2764 = vadd.f32 %v2691, %v2763
        %v2765 = vpop.f32.mrb[0].mxu0
        %v2766 = vadd.f32 %v2693, %v2765
        %2767 = vmatprep.mubr.bf16.mxu0 %v660
        %2768 = vmatmul.mubr.bf16.gmra.mrb[0].mxu0 %v659
        %v2769 = vpop.f32.mrb[0].mxu0
        %v2770 = vadd.f32 %v2697, %v2769
        %v2771 = vpop.f32.mrb[0].mxu0
        %v2772 = vadd.f32 %v2699, %v2771
        %v2773 = vpop.f32.mrb[0].mxu0
        %v2774 = vadd.f32 %v2701, %v2773
        %v2775 = vpop.f32.mrb[0].mxu0
        %v2776 = vadd.f32 %v2703, %v2775
        %2777 = vmatprep.mubr.bf16.mxu0 %v666
        %2778 = vmatmul.mubr.bf16.gmra.mrb[0].mxu0 %v665
        %v2779 = vpop.f32.mrb[0].mxu0
        %v2780 = vadd.f32 %v2707, %v2779
        %v2781 = vpop.f32.mrb[0].mxu0
        %v2782 = vadd.f32 %v2709, %v2781
        %v2783 = vpop.f32.mrb[0].mxu0
        %v2784 = vadd.f32 %v2711, %v2783
        %v2785 = vpop.f32.mrb[0].mxu0
        %v2786 = vadd.f32 %v2713, %v2785
        %2787 = vdwg.mxu0
        %v2788 = vlaneseq
        %v2789 = vshrl.u32 %v2788, 7
        %v2790 = vadd.s32 %v2789, 8
        %v2791 = vadd.s32 %v2789, 16
        %v2792 = vadd.s32 %v2789, 24
        %v2793 = vadd.s32 %v2789, 32
        %v2794 = vadd.s32 %v2789, 40
        %v2795 = vadd.s32 %v2789, 48
        %v2796 = vadd.s32 %v2789, 56
        %v2797 = vlaneseq
        %v2798 = vand.u32 %v2797, 127
        %vm2799 = vcmp.le.s32.totalorder %v2798, %v2789
        %vm2800 = vcmp.le.s32.totalorder %v2798, %v2790
        %vm2801 = vcmp.le.s32.totalorder %v2798, %v2791
        %vm2802 = vcmp.le.s32.totalorder %v2798, %v2792
        %vm2803 = vcmp.le.s32.totalorder %v2798, %v2793
        %vm2804 = vcmp.le.s32.totalorder %v2798, %v2794
        %vm2805 = vcmp.le.s32.totalorder %v2798, %v2795
        %vm2806 = vcmp.le.s32.totalorder %v2798, %v2796
        %v2807 = vpack.c.bf16 %v2316, %v2312
        %v2808 = vpack.c.bf16 %v2326, %v2322
        %v2809 = vpack.c.bf16 %v2336, %v2332
        %v2810 = vpack.c.bf16 %v2346, %v2342
        %v2811 = vpack.c.bf16 %v2535, %v2531
        %v2812 = vpack.c.bf16 %v2545, %v2541
        %v2813 = vpack.c.bf16 %v2555, %v2551
        %v2814 = vpack.c.bf16 %v2565, %v2561
        %v2815 = vpack.c.bf16 %v2754, %v2750
        %v2816 = vpack.c.bf16 %v2764, %v2760
        %v2817 = vpack.c.bf16 %v2774, %v2770
        %v2818 = vpack.c.bf16 %v2784, %v2780
        %2819 = vmatprep.subr.bf16.mxu0 0
        %2820 = vmatpush1.bf16.xpose.msra.mxu0 %v2811
        %2821 = vmatprep.subr.bf16.mxu0 0
        %2822 = vmatpush1.bf16.xpose.msra.mxu0 %v2812
        %2823 = vmatprep.subr.bf16.mxu0 0
        %2824 = vmatpush1.bf16.xpose.msra.mxu0 %v2813
        %2825 = vmatprep.subr.bf16.mxu0 0
        %2826 = vmatpush1.bf16.xpose.msra.mxu0 %v2814
        %2827 = vmatprep.subr.bf16.mxu0 0
        %2828 = vmatpush1.bf16.xpose.msra.mxu0 0
        %2829 = vmatprep.subr.bf16.mxu0 0
        %2830 = vmatpush1.bf16.xpose.msra.mxu0 0
        %2831 = vmatprep.subr.bf16.mxu0 0
        %2832 = vmatpush1.bf16.xpose.msra.mxu0 0
        %2833 = vmatprep.subr.bf16.mxu0 0
        %2834 = vmatpush1.bf16.xpose.msra.mxu0 0
        %2835 = vmatprep.subr.bf16.mxu0 0
        %2836 = vmatpush1.bf16.xpose.msra.mxu0 0
        %2837 = vmatprep.subr.bf16.mxu0 0
        %2838 = vmatpush1.bf16.xpose.msra.mxu0 0
        %2839 = vmatprep.subr.bf16.mxu0 0
        %2840 = vmatpush1.bf16.xpose.msra.mxu0 0
        %2841 = vmatprep.subr.bf16.mxu0 0
        %2842 = vmatpush1.bf16.xpose.msra.mxu0 0
        %2843 = vmatprep.subr.bf16.mxu0 0
        %2844 = vmatpush1.bf16.xpose.msra.mxu0 0
        %2845 = vmatprep.subr.bf16.mxu0 0
        %2846 = vmatpush1.bf16.xpose.msra.mxu0 0
        %2847 = vmatprep.subr.bf16.mxu0 0
        %2848 = vmatpush1.bf16.xpose.msra.mxu0 0
        %2849 = vmatprep.subr.bf16.mxu0 0
        %2850 = vmatpush1.bf16.xpose.msra.mxu0 0
        %2851 = vmatprep.mubr.bf16.mxu0 0
        %2852 = vmatmul.mubr.bf16.gmra.mrb[0].mxu0 %v2807
        %v2853 = vpop.f32.mrb[0].mxu0
        %v2854 = vadd.f32 0.0, %v2853
        %v2855 = vpop.f32.mrb[0].mxu0
        %v2856 = vpop.f32.mrb[0].mxu0
        %v2857 = vadd.f32 0.0, %v2856
        %v2858 = vpop.f32.mrb[0].mxu0
        %2859 = vmatprep.mubr.bf16.mxu0 0
        %2860 = vmatmul.mubr.bf16.gmra.mrb[0].mxu0 %v2808
        %v2861 = vpop.f32.mrb[0].mxu0
        %v2862 = vadd.f32 0.0, %v2861
        %v2863 = vpop.f32.mrb[0].mxu0
        %v2864 = vpop.f32.mrb[0].mxu0
        %v2865 = vadd.f32 0.0, %v2864
        %v2866 = vpop.f32.mrb[0].mxu0
        %2867 = vmatprep.mubr.bf16.mxu0 0
        %2868 = vmatmul.mubr.bf16.gmra.mrb[0].mxu0 %v2809
        %v2869 = vpop.f32.mrb[0].mxu0
        %v2870 = vadd.f32 0.0, %v2869
        %v2871 = vpop.f32.mrb[0].mxu0
        %v2872 = vpop.f32.mrb[0].mxu0
        %v2873 = vadd.f32 0.0, %v2872
        %v2874 = vpop.f32.mrb[0].mxu0
        %2875 = vmatprep.mubr.bf16.mxu0 0
        %2876 = vmatmul.mubr.bf16.gmra.mrb[0].mxu0 %v2810
        %v2877 = vpop.f32.mrb[0].mxu0
        %v2878 = vadd.f32 0.0, %v2877
        %v2879 = vpop.f32.mrb[0].mxu0
        %v2880 = vpop.f32.mrb[0].mxu0
        %v2881 = vadd.f32 0.0, %v2880
        %v2882 = vpop.f32.mrb[0].mxu0
        %2883 = vdwg.mxu0
        %v2884 = vmul.f32 %v2854, 0.088388346
        %v2885 = vmul.f32 %v2857, 0.088388346
        %v2886 = vmul.f32 %v2862, 0.088388346
        %v2887 = vmul.f32 %v2865, 0.088388346
        %v2888 = vmul.f32 %v2870, 0.088388346
        %v2889 = vmul.f32 %v2873, 0.088388346
        %v2890 = vmul.f32 %v2878, 0.088388346
        %v2891 = vmul.f32 %v2881, 0.088388346
        %v2892 = vsel %vm2799, %v2884, -1e+30
        %v2893 = vsel %vm2800, %v2885, -1e+30
        %v2894 = vsel %vm2801, %v2886, -1e+30
        %v2895 = vsel %vm2802, %v2887, -1e+30
        %v2896 = vsel %vm2803, %v2888, -1e+30
        %v2897 = vsel %vm2804, %v2889, -1e+30
        %v2898 = vsel %vm2805, %v2890, -1e+30
        %v2899 = vsel %vm2806, %v2891, -1e+30
        %vm2900 = vcmask 523264
        %v2901 = vsel %vm2900, %v2892, -inf
        %2902 = vmax.xlane.f32.xlu0 %v2901
        %v2903 = vpop.xlane.xlu0 %2902
        %v2904 = vsel %vm2900, %v2893, -inf
        %2905 = vmax.xlane.f32.xlu0 %v2904
        %v2906 = vpop.xlane.xlu0 %2905
        %v2907 = vsel %vm2900, %v2894, -inf
        %2908 = vmax.xlane.f32.xlu0 %v2907
        %v2909 = vpop.xlane.xlu0 %2908
        %v2910 = vsel %vm2900, %v2895, -inf
        %2911 = vmax.xlane.f32.xlu0 %v2910
        %v2912 = vpop.xlane.xlu0 %2911
        %v2913 = vsel %vm2900, %v2896, -inf
        %2914 = vmax.xlane.f32.xlu0 %v2913
        %v2915 = vpop.xlane.xlu0 %2914
        %v2916 = vsel %vm2900, %v2897, -inf
        %2917 = vmax.xlane.f32.xlu0 %v2916
        %v2918 = vpop.xlane.xlu0 %2917
        %v2919 = vsel %vm2900, %v2898, -inf
        %2920 = vmax.xlane.f32.xlu0 %v2919
        %v2921 = vpop.xlane.xlu0 %2920
        %v2922 = vsel %vm2900, %v2899, -inf
        %2923 = vmax.xlane.f32.xlu0 %v2922
        %v2924 = vpop.xlane.xlu0 %2923
        %v2925 = vsub.f32 %v2892, %v2903
        %v2926 = vsub.f32 %v2893, %v2906
        %v2927 = vsub.f32 %v2894, %v2909
        %v2928 = vsub.f32 %v2895, %v2912
        %v2929 = vsub.f32 %v2896, %v2915
        %v2930 = vsub.f32 %v2897, %v2918
        %v2931 = vsub.f32 %v2898, %v2921
        %v2932 = vsub.f32 %v2899, %v2924
        %v2933 = vmul.f32 %v2925, 1.442695
        %v2934 = vpow.pop %v2933
        %v2935 = vmul.f32 %v2926, 1.442695
        %v2936 = vpow.pop %v2935
        %v2937 = vmul.f32 %v2927, 1.442695
        %v2938 = vpow.pop %v2937
        %v2939 = vmul.f32 %v2928, 1.442695
        %v2940 = vpow.pop %v2939
        %v2941 = vmul.f32 %v2929, 1.442695
        %v2942 = vpow.pop %v2941
        %v2943 = vmul.f32 %v2930, 1.442695
        %v2944 = vpow.pop %v2943
        %v2945 = vmul.f32 %v2931, 1.442695
        %v2946 = vpow.pop %v2945
        %v2947 = vmul.f32 %v2932, 1.442695
        %v2948 = vpow.pop %v2947
        %v2949 = vsel %vm2900, %v2934, 0.0
        %2950 = vadd.xlane.f32.xlu0 %v2949
        %v2951 = vpop.xlane.xlu0 %2950
        %v2952 = vsel %vm2900, %v2936, 0.0
        %2953 = vadd.xlane.f32.xlu0 %v2952
        %v2954 = vpop.xlane.xlu0 %2953
        %v2955 = vsel %vm2900, %v2938, 0.0
        %2956 = vadd.xlane.f32.xlu0 %v2955
        %v2957 = vpop.xlane.xlu0 %2956
        %v2958 = vsel %vm2900, %v2940, 0.0
        %2959 = vadd.xlane.f32.xlu0 %v2958
        %v2960 = vpop.xlane.xlu0 %2959
        %v2961 = vsel %vm2900, %v2942, 0.0
        %2962 = vadd.xlane.f32.xlu0 %v2961
        %v2963 = vpop.xlane.xlu0 %2962
        %v2964 = vsel %vm2900, %v2944, 0.0
        %2965 = vadd.xlane.f32.xlu0 %v2964
        %v2966 = vpop.xlane.xlu0 %2965
        %v2967 = vsel %vm2900, %v2946, 0.0
        %2968 = vadd.xlane.f32.xlu0 %v2967
        %v2969 = vpop.xlane.xlu0 %2968
        %v2970 = vsel %vm2900, %v2948, 0.0
        %2971 = vadd.xlane.f32.xlu0 %v2970
        %v2972 = vpop.xlane.xlu0 %2971
        %v2973 = vrcp.pop %v2951
        %v2974 = vrcp.pop %v2954
        %v2975 = vrcp.pop %v2957
        %v2976 = vrcp.pop %v2960
        %v2977 = vrcp.pop %v2963
        %v2978 = vrcp.pop %v2966
        %v2979 = vrcp.pop %v2969
        %v2980 = vrcp.pop %v2972
        %v2981 = vmul.f32 %v2934, %v2973
        %v2982 = vmul.f32 %v2936, %v2974
        %v2983 = vmul.f32 %v2938, %v2975
        %v2984 = vmul.f32 %v2940, %v2976
        %v2985 = vmul.f32 %v2942, %v2977
        %v2986 = vmul.f32 %v2944, %v2978
        %v2987 = vmul.f32 %v2946, %v2979
        %v2988 = vmul.f32 %v2948, %v2980
        %v2989 = vpack.c.bf16 %v2982, %v2981
        %v2990 = vpack.c.bf16 %v2984, %v2983
        %v2991 = vpack.c.bf16 %v2986, %v2985
        %v2992 = vpack.c.bf16 %v2988, %v2987
        %v2994 = vsel %vm2900, %v2989, 0
        %v2997 = vsel %vm2900, %v2990, 0
        %v3000 = vsel %vm2900, %v2991, 0
        %v3003 = vsel %vm2900, %v2992, 0
        %3005 = vmatprep.subr.bf16.mxu0 0
        %3006 = vmatpush1.bf16.msra.mxu0 %v2815
        %3007 = vmatprep.subr.bf16.mxu0 0
        %3008 = vmatpush1.bf16.msra.mxu0 %v2816
        %3009 = vmatprep.subr.bf16.mxu0 0
        %3010 = vmatpush1.bf16.msra.mxu0 %v2817
        %3011 = vmatprep.subr.bf16.mxu0 0
        %3012 = vmatpush1.bf16.msra.mxu0 %v2818
        %3013 = vmatprep.subr.bf16.mxu0 0
        %3014 = vmatpush1.bf16.msra.mxu0 0
        %3015 = vmatprep.subr.bf16.mxu0 0
        %3016 = vmatpush1.bf16.msra.mxu0 0
        %3017 = vmatprep.subr.bf16.mxu0 0
        %3018 = vmatpush1.bf16.msra.mxu0 0
        %3019 = vmatprep.subr.bf16.mxu0 0
        %3020 = vmatpush1.bf16.msra.mxu0 0
        %3021 = vmatprep.subr.bf16.mxu0 0
        %3022 = vmatpush1.bf16.msra.mxu0 0
        %3023 = vmatprep.subr.bf16.mxu0 0
        %3024 = vmatpush1.bf16.msra.mxu0 0
        %3025 = vmatprep.subr.bf16.mxu0 0
        %3026 = vmatpush1.bf16.msra.mxu0 0
        %3027 = vmatprep.subr.bf16.mxu0 0
        %3028 = vmatpush1.bf16.msra.mxu0 0
        %3029 = vmatprep.subr.bf16.mxu0 0
        %3030 = vmatpush1.bf16.msra.mxu0 0
        %3031 = vmatprep.subr.bf16.mxu0 0
        %3032 = vmatpush1.bf16.msra.mxu0 0
        %3033 = vmatprep.subr.bf16.mxu0 0
        %3034 = vmatpush1.bf16.msra.mxu0 0
        %3035 = vmatprep.subr.bf16.mxu0 0
        %3036 = vmatpush1.bf16.msra.mxu0 0
        %3037 = vmatprep.mubr.bf16.mxu0 0
        %3038 = vmatmul.mubr.bf16.gmra.mrb[0].mxu0 %v2994
        %v3039 = vpop.f32.mrb[0].mxu0
        %v3040 = vadd.f32 0.0, %v3039
        %v3041 = vpop.f32.mrb[0].mxu0
        %v3042 = vpop.f32.mrb[0].mxu0
        %v3043 = vadd.f32 0.0, %v3042
        %v3044 = vpop.f32.mrb[0].mxu0
        %3045 = vmatprep.mubr.bf16.mxu0 0
        %3046 = vmatmul.mubr.bf16.gmra.mrb[0].mxu0 %v2997
        %v3047 = vpop.f32.mrb[0].mxu0
        %v3048 = vadd.f32 0.0, %v3047
        %v3049 = vpop.f32.mrb[0].mxu0
        %v3050 = vpop.f32.mrb[0].mxu0
        %v3051 = vadd.f32 0.0, %v3050
        %v3052 = vpop.f32.mrb[0].mxu0
        %3053 = vmatprep.mubr.bf16.mxu0 0
        %3054 = vmatmul.mubr.bf16.gmra.mrb[0].mxu0 %v3000
        %v3055 = vpop.f32.mrb[0].mxu0
        %v3056 = vadd.f32 0.0, %v3055
        %v3057 = vpop.f32.mrb[0].mxu0
        %v3058 = vpop.f32.mrb[0].mxu0
        %v3059 = vadd.f32 0.0, %v3058
        %v3060 = vpop.f32.mrb[0].mxu0
        %3061 = vmatprep.mubr.bf16.mxu0 0
        %3062 = vmatmul.mubr.bf16.gmra.mrb[0].mxu0 %v3003
        %v3063 = vpop.f32.mrb[0].mxu0
        %v3064 = vadd.f32 0.0, %v3063
        %v3065 = vpop.f32.mrb[0].mxu0
        %v3066 = vpop.f32.mrb[0].mxu0
        %v3067 = vadd.f32 0.0, %v3066
        %v3068 = vpop.f32.mrb[0].mxu0
        %3069 = vdwg.mxu0
        %v3070 = vpack.c.bf16 %v2318, %v2314
        %v3071 = vpack.c.bf16 %v2328, %v2324
        %v3072 = vpack.c.bf16 %v2338, %v2334
        %v3073 = vpack.c.bf16 %v2348, %v2344
        %v3074 = vpack.c.bf16 %v2537, %v2533
        %v3075 = vpack.c.bf16 %v2547, %v2543
        %v3076 = vpack.c.bf16 %v2557, %v2553
        %v3077 = vpack.c.bf16 %v2567, %v2563
        %v3078 = vpack.c.bf16 %v2756, %v2752
        %v3079 = vpack.c.bf16 %v2766, %v2762
        %v3080 = vpack.c.bf16 %v2776, %v2772
        %v3081 = vpack.c.bf16 %v2786, %v2782
        %3082 = vmatprep.subr.bf16.mxu0 0
        %3083 = vmatpush1.bf16.xpose.msra.mxu0 %v3074
        %3084 = vmatprep.subr.bf16.mxu0 0
        %3085 = vmatpush1.bf16.xpose.msra.mxu0 %v3075
        %3086 = vmatprep.subr.bf16.mxu0 0
        %3087 = vmatpush1.bf16.xpose.msra.mxu0 %v3076
        %3088 = vmatprep.subr.bf16.mxu0 0
        %3089 = vmatpush1.bf16.xpose.msra.mxu0 %v3077
        %3090 = vmatprep.subr.bf16.mxu0 0
        %3091 = vmatpush1.bf16.xpose.msra.mxu0 0
        %3092 = vmatprep.subr.bf16.mxu0 0
        %3093 = vmatpush1.bf16.xpose.msra.mxu0 0
        %3094 = vmatprep.subr.bf16.mxu0 0
        %3095 = vmatpush1.bf16.xpose.msra.mxu0 0
        %3096 = vmatprep.subr.bf16.mxu0 0
        %3097 = vmatpush1.bf16.xpose.msra.mxu0 0
        %3098 = vmatprep.subr.bf16.mxu0 0
        %3099 = vmatpush1.bf16.xpose.msra.mxu0 0
        %3100 = vmatprep.subr.bf16.mxu0 0
        %3101 = vmatpush1.bf16.xpose.msra.mxu0 0
        %3102 = vmatprep.subr.bf16.mxu0 0
        %3103 = vmatpush1.bf16.xpose.msra.mxu0 0
        %3104 = vmatprep.subr.bf16.mxu0 0
        %3105 = vmatpush1.bf16.xpose.msra.mxu0 0
        %3106 = vmatprep.subr.bf16.mxu0 0
        %3107 = vmatpush1.bf16.xpose.msra.mxu0 0
        %3108 = vmatprep.subr.bf16.mxu0 0
        %3109 = vmatpush1.bf16.xpose.msra.mxu0 0
        %3110 = vmatprep.subr.bf16.mxu0 0
        %3111 = vmatpush1.bf16.xpose.msra.mxu0 0
        %3112 = vmatprep.subr.bf16.mxu0 0
        %3113 = vmatpush1.bf16.xpose.msra.mxu0 0
        %3114 = vmatprep.mubr.bf16.mxu0 0
        %3115 = vmatmul.mubr.bf16.gmra.mrb[0].mxu0 %v3070
        %v3116 = vpop.f32.mrb[0].mxu0
        %v3117 = vadd.f32 0.0, %v3116
        %v3118 = vpop.f32.mrb[0].mxu0
        %v3119 = vpop.f32.mrb[0].mxu0
        %v3120 = vadd.f32 0.0, %v3119
        %v3121 = vpop.f32.mrb[0].mxu0
        %3122 = vmatprep.mubr.bf16.mxu0 0
        %3123 = vmatmul.mubr.bf16.gmra.mrb[0].mxu0 %v3071
        %v3124 = vpop.f32.mrb[0].mxu0
        %v3125 = vadd.f32 0.0, %v3124
        %v3126 = vpop.f32.mrb[0].mxu0
        %v3127 = vpop.f32.mrb[0].mxu0
        %v3128 = vadd.f32 0.0, %v3127
        %v3129 = vpop.f32.mrb[0].mxu0
        %3130 = vmatprep.mubr.bf16.mxu0 0
        %3131 = vmatmul.mubr.bf16.gmra.mrb[0].mxu0 %v3072
        %v3132 = vpop.f32.mrb[0].mxu0
        %v3133 = vadd.f32 0.0, %v3132
        %v3134 = vpop.f32.mrb[0].mxu0
        %v3135 = vpop.f32.mrb[0].mxu0
        %v3136 = vadd.f32 0.0, %v3135
        %v3137 = vpop.f32.mrb[0].mxu0
        %3138 = vmatprep.mubr.bf16.mxu0 0
        %3139 = vmatmul.mubr.bf16.gmra.mrb[0].mxu0 %v3073
        %v3140 = vpop.f32.mrb[0].mxu0
        %v3141 = vadd.f32 0.0, %v3140
        %v3142 = vpop.f32.mrb[0].mxu0
        %v3143 = vpop.f32.mrb[0].mxu0
        %v3144 = vadd.f32 0.0, %v3143
        %v3145 = vpop.f32.mrb[0].mxu0
        %3146 = vdwg.mxu0
        %v3147 = vmul.f32 %v3117, 0.088388346
        %v3148 = vmul.f32 %v3120, 0.088388346
        %v3149 = vmul.f32 %v3125, 0.088388346
        %v3150 = vmul.f32 %v3128, 0.088388346
        %v3151 = vmul.f32 %v3133, 0.088388346
        %v3152 = vmul.f32 %v3136, 0.088388346
        %v3153 = vmul.f32 %v3141, 0.088388346
        %v3154 = vmul.f32 %v3144, 0.088388346
        %v3155 = vsel %vm2799, %v3147, -1e+30
        %v3156 = vsel %vm2800, %v3148, -1e+30
        %v3157 = vsel %vm2801, %v3149, -1e+30
        %v3158 = vsel %vm2802, %v3150, -1e+30
        %v3159 = vsel %vm2803, %v3151, -1e+30
        %v3160 = vsel %vm2804, %v3152, -1e+30
        %v3161 = vsel %vm2805, %v3153, -1e+30
        %v3162 = vsel %vm2806, %v3154, -1e+30
        %v3163 = vsel %vm2900, %v3155, -inf
        %3164 = vmax.xlane.f32.xlu0 %v3163
        %v3165 = vpop.xlane.xlu0 %3164
        %v3166 = vsel %vm2900, %v3156, -inf
        %3167 = vmax.xlane.f32.xlu0 %v3166
        %v3168 = vpop.xlane.xlu0 %3167
        %v3169 = vsel %vm2900, %v3157, -inf
        %3170 = vmax.xlane.f32.xlu0 %v3169
        %v3171 = vpop.xlane.xlu0 %3170
        %v3172 = vsel %vm2900, %v3158, -inf
        %3173 = vmax.xlane.f32.xlu0 %v3172
        %v3174 = vpop.xlane.xlu0 %3173
        %v3175 = vsel %vm2900, %v3159, -inf
        %3176 = vmax.xlane.f32.xlu0 %v3175
        %v3177 = vpop.xlane.xlu0 %3176
        %v3178 = vsel %vm2900, %v3160, -inf
        %3179 = vmax.xlane.f32.xlu0 %v3178
        %v3180 = vpop.xlane.xlu0 %3179
        %v3181 = vsel %vm2900, %v3161, -inf
        %3182 = vmax.xlane.f32.xlu0 %v3181
        %v3183 = vpop.xlane.xlu0 %3182
        %v3184 = vsel %vm2900, %v3162, -inf
        %3185 = vmax.xlane.f32.xlu0 %v3184
        %v3186 = vpop.xlane.xlu0 %3185
        %v3187 = vsub.f32 %v3155, %v3165
        %v3188 = vsub.f32 %v3156, %v3168
        %v3189 = vsub.f32 %v3157, %v3171
        %v3190 = vsub.f32 %v3158, %v3174
        %v3191 = vsub.f32 %v3159, %v3177
        %v3192 = vsub.f32 %v3160, %v3180
        %v3193 = vsub.f32 %v3161, %v3183
        %v3194 = vsub.f32 %v3162, %v3186
        %v3195 = vmul.f32 %v3187, 1.442695
        %v3196 = vpow.pop %v3195
        %v3197 = vmul.f32 %v3188, 1.442695
        %v3198 = vpow.pop %v3197
        %v3199 = vmul.f32 %v3189, 1.442695
        %v3200 = vpow.pop %v3199
        %v3201 = vmul.f32 %v3190, 1.442695
        %v3202 = vpow.pop %v3201
        %v3203 = vmul.f32 %v3191, 1.442695
        %v3204 = vpow.pop %v3203
        %v3205 = vmul.f32 %v3192, 1.442695
        %v3206 = vpow.pop %v3205
        %v3207 = vmul.f32 %v3193, 1.442695
        %v3208 = vpow.pop %v3207
        %v3209 = vmul.f32 %v3194, 1.442695
        %v3210 = vpow.pop %v3209
        %v3211 = vsel %vm2900, %v3196, 0.0
        %3212 = vadd.xlane.f32.xlu0 %v3211
        %v3213 = vpop.xlane.xlu0 %3212
        %v3214 = vsel %vm2900, %v3198, 0.0
        %3215 = vadd.xlane.f32.xlu0 %v3214
        %v3216 = vpop.xlane.xlu0 %3215
        %v3217 = vsel %vm2900, %v3200, 0.0
        %3218 = vadd.xlane.f32.xlu0 %v3217
        %v3219 = vpop.xlane.xlu0 %3218
        %v3220 = vsel %vm2900, %v3202, 0.0
        %3221 = vadd.xlane.f32.xlu0 %v3220
        %v3222 = vpop.xlane.xlu0 %3221
        %v3223 = vsel %vm2900, %v3204, 0.0
        %3224 = vadd.xlane.f32.xlu0 %v3223
        %v3225 = vpop.xlane.xlu0 %3224
        %v3226 = vsel %vm2900, %v3206, 0.0
        %3227 = vadd.xlane.f32.xlu0 %v3226
        %v3228 = vpop.xlane.xlu0 %3227
        %v3229 = vsel %vm2900, %v3208, 0.0
        %3230 = vadd.xlane.f32.xlu0 %v3229
        %v3231 = vpop.xlane.xlu0 %3230
        %v3232 = vsel %vm2900, %v3210, 0.0
        %3233 = vadd.xlane.f32.xlu0 %v3232
        %v3234 = vpop.xlane.xlu0 %3233
        %v3235 = vrcp.pop %v3213
        %v3236 = vrcp.pop %v3216
        %v3237 = vrcp.pop %v3219
        %v3238 = vrcp.pop %v3222
        %v3239 = vrcp.pop %v3225
        %v3240 = vrcp.pop %v3228
        %v3241 = vrcp.pop %v3231
        %v3242 = vrcp.pop %v3234
        %v3243 = vmul.f32 %v3196, %v3235
        %v3244 = vmul.f32 %v3198, %v3236
        %v3245 = vmul.f32 %v3200, %v3237
        %v3246 = vmul.f32 %v3202, %v3238
        %v3247 = vmul.f32 %v3204, %v3239
        %v3248 = vmul.f32 %v3206, %v3240
        %v3249 = vmul.f32 %v3208, %v3241
        %v3250 = vmul.f32 %v3210, %v3242
        %v3251 = vpack.c.bf16 %v3244, %v3243
        %v3252 = vpack.c.bf16 %v3246, %v3245
        %v3253 = vpack.c.bf16 %v3248, %v3247
        %v3254 = vpack.c.bf16 %v3250, %v3249
        %v3256 = vsel %vm2900, %v3251, 0
        %v3259 = vsel %vm2900, %v3252, 0
        %v3262 = vsel %vm2900, %v3253, 0
        %v3265 = vsel %vm2900, %v3254, 0
        %3267 = vmatprep.subr.bf16.mxu0 0
        %3268 = vmatpush1.bf16.msra.mxu0 %v3078
        %3269 = vmatprep.subr.bf16.mxu0 0
        %3270 = vmatpush1.bf16.msra.mxu0 %v3079
        %3271 = vmatprep.subr.bf16.mxu0 0
        %3272 = vmatpush1.bf16.msra.mxu0 %v3080
        %3273 = vmatprep.subr.bf16.mxu0 0
        %3274 = vmatpush1.bf16.msra.mxu0 %v3081
        %3275 = vmatprep.subr.bf16.mxu0 0
        %3276 = vmatpush1.bf16.msra.mxu0 0
        %3277 = vmatprep.subr.bf16.mxu0 0
        %3278 = vmatpush1.bf16.msra.mxu0 0
        %3279 = vmatprep.subr.bf16.mxu0 0
        %3280 = vmatpush1.bf16.msra.mxu0 0
        %3281 = vmatprep.subr.bf16.mxu0 0
        %3282 = vmatpush1.bf16.msra.mxu0 0
        %3283 = vmatprep.subr.bf16.mxu0 0
        %3284 = vmatpush1.bf16.msra.mxu0 0
        %3285 = vmatprep.subr.bf16.mxu0 0
        %3286 = vmatpush1.bf16.msra.mxu0 0
        %3287 = vmatprep.subr.bf16.mxu0 0
        %3288 = vmatpush1.bf16.msra.mxu0 0
        %3289 = vmatprep.subr.bf16.mxu0 0
        %3290 = vmatpush1.bf16.msra.mxu0 0
        %3291 = vmatprep.subr.bf16.mxu0 0
        %3292 = vmatpush1.bf16.msra.mxu0 0
        %3293 = vmatprep.subr.bf16.mxu0 0
        %3294 = vmatpush1.bf16.msra.mxu0 0
        %3295 = vmatprep.subr.bf16.mxu0 0
        %3296 = vmatpush1.bf16.msra.mxu0 0
        %3297 = vmatprep.subr.bf16.mxu0 0
        %3298 = vmatpush1.bf16.msra.mxu0 0
        %3299 = vmatprep.mubr.bf16.mxu0 0
        %3300 = vmatmul.mubr.bf16.gmra.mrb[0].mxu0 %v3256
        %v3301 = vpop.f32.mrb[0].mxu0
        %v3302 = vadd.f32 0.0, %v3301
        %v3303 = vpop.f32.mrb[0].mxu0
        %v3304 = vpop.f32.mrb[0].mxu0
        %v3305 = vadd.f32 0.0, %v3304
        %v3306 = vpop.f32.mrb[0].mxu0
        %3307 = vmatprep.mubr.bf16.mxu0 0
        %3308 = vmatmul.mubr.bf16.gmra.mrb[0].mxu0 %v3259
        %v3309 = vpop.f32.mrb[0].mxu0
        %v3310 = vadd.f32 0.0, %v3309
        %v3311 = vpop.f32.mrb[0].mxu0
        %v3312 = vpop.f32.mrb[0].mxu0
        %v3313 = vadd.f32 0.0, %v3312
        %v3314 = vpop.f32.mrb[0].mxu0
        %3315 = vmatprep.mubr.bf16.mxu0 0
        %3316 = vmatmul.mubr.bf16.gmra.mrb[0].mxu0 %v3262
        %v3317 = vpop.f32.mrb[0].mxu0
        %v3318 = vadd.f32 0.0, %v3317
        %v3319 = vpop.f32.mrb[0].mxu0
        %v3320 = vpop.f32.mrb[0].mxu0
        %v3321 = vadd.f32 0.0, %v3320
        %v3322 = vpop.f32.mrb[0].mxu0
        %3323 = vmatprep.mubr.bf16.mxu0 0
        %3324 = vmatmul.mubr.bf16.gmra.mrb[0].mxu0 %v3265
        %v3325 = vpop.f32.mrb[0].mxu0
        %v3326 = vadd.f32 0.0, %v3325
        %v3327 = vpop.f32.mrb[0].mxu0
        %v3328 = vpop.f32.mrb[0].mxu0
        %v3329 = vadd.f32 0.0, %v3328
        %v3330 = vpop.f32.mrb[0].mxu0
        %3331 = vdwg.mxu0
        %v3332 = vpack.c.bf16 %v3043, %v3040
        %v3333 = vpack.c.bf16 %v3305, %v3302
        %v3334 = vpack.c.bf16 %v3051, %v3048
        %v3335 = vpack.c.bf16 %v3313, %v3310
        %v3336 = vpack.c.bf16 %v3059, %v3056
        %v3337 = vpack.c.bf16 %v3321, %v3318
        %v3338 = vpack.c.bf16 %v3067, %v3064
        %v3339 = vpack.c.bf16 %v3329, %v3326
        %v3340 = vld [vmem:[#allocation7] sm:$0xff]
        %v3341 = vld [vmem:[#allocation7 + $0x8] sm:$0xff]
        %v3342 = vld [vmem:[#allocation7 + $0x10] sm:$0xff]
        %v3343 = vld [vmem:[#allocation7 + $0x18] sm:$0xff]
        %v3344 = vld [vmem:[#allocation7 + $0x20] sm:$0xff]
        %v3345 = vld [vmem:[#allocation7 + $0x28] sm:$0xff]
        %v3346 = vld [vmem:[#allocation7 + $0x30] sm:$0xff]
        %v3347 = vld [vmem:[#allocation7 + $0x38] sm:$0xff]
        %v3348 = vld [vmem:[#allocation7 + $0x40] sm:$0xff]
        %v3349 = vld [vmem:[#allocation7 + $0x48] sm:$0xff]
        %v3350 = vld [vmem:[#allocation7 + $0x50] sm:$0xff]
        %v3351 = vld [vmem:[#allocation7 + $0x58] sm:$0xff]
        %v3352 = vld [vmem:[#allocation7 + $0x60] sm:$0xff]
        %v3353 = vld [vmem:[#allocation7 + $0x68] sm:$0xff]
        %v3354 = vld [vmem:[#allocation7 + $0x70] sm:$0xff]
        %v3355 = vld [vmem:[#allocation7 + $0x78] sm:$0xff]
        %v3356 = vld [vmem:[#allocation7 + $0x80] sm:$0xff]
        %v3357 = vld [vmem:[#allocation7 + $0x88] sm:$0xff]
        %v3358 = vld [vmem:[#allocation7 + $0x90] sm:$0xff]
        %v3359 = vld [vmem:[#allocation7 + $0x98] sm:$0xff]
        %v3360 = vld [vmem:[#allocation7 + $0xa0] sm:$0xff]
        %v3361 = vld [vmem:[#allocation7 + $0xa8] sm:$0xff]
        %v3362 = vld [vmem:[#allocation7 + $0xb0] sm:$0xff]
        %v3363 = vld [vmem:[#allocation7 + $0xb8] sm:$0xff]
        %v3364 = vld [vmem:[#allocation7 + $0xc0] sm:$0xff]
        %v3365 = vld [vmem:[#allocation7 + $0xc8] sm:$0xff]
        %v3366 = vld [vmem:[#allocation7 + $0xd0] sm:$0xff]
        %v3367 = vld [vmem:[#allocation7 + $0xd8] sm:$0xff]
        %v3368 = vld [vmem:[#allocation7 + $0xe0] sm:$0xff]
        %v3369 = vld [vmem:[#allocation7 + $0xe8] sm:$0xff]
        %v3370 = vld [vmem:[#allocation7 + $0xf0] sm:$0xff]
        %v3371 = vld [vmem:[#allocation7 + $0xf8] sm:$0xff]
        %v3372 = vld [vmem:[#allocation7 + $0x100] sm:$0xff]
        %v3373 = vld [vmem:[#allocation7 + $0x108] sm:$0xff]
        %v3374 = vld [vmem:[#allocation7 + $0x110] sm:$0xff]
        %v3375 = vld [vmem:[#allocation7 + $0x118] sm:$0xff]
        %v3376 = vld [vmem:[#allocation7 + $0x120] sm:$0xff]
        %v3377 = vld [vmem:[#allocation7 + $0x128] sm:$0xff]
        %v3378 = vld [vmem:[#allocation7 + $0x130] sm:$0xff]
        %v3379 = vld [vmem:[#allocation7 + $0x138] sm:$0xff]
        %v3380 = vld [vmem:[#allocation7 + $0x140] sm:$0xff]
        %v3381 = vld [vmem:[#allocation7 + $0x148] sm:$0xff]
        %v3382 = vld [vmem:[#allocation7 + $0x150] sm:$0xff]
        %v3383 = vld [vmem:[#allocation7 + $0x158] sm:$0xff]
        %v3384 = vld [vmem:[#allocation7 + $0x160] sm:$0xff]
        %v3385 = vld [vmem:[#allocation7 + $0x168] sm:$0xff]
        %v3386 = vld [vmem:[#allocation7 + $0x170] sm:$0xff]
        %v3387 = vld [vmem:[#allocation7 + $0x178] sm:$0xff]
        %v3388 = vld [vmem:[#allocation7 + $0x180] sm:$0xff]
        %v3389 = vld [vmem:[#allocation7 + $0x188] sm:$0xff]
        %v3390 = vld [vmem:[#allocation7 + $0x190] sm:$0xff]
        %v3391 = vld [vmem:[#allocation7 + $0x198] sm:$0xff]
        %v3392 = vld [vmem:[#allocation7 + $0x1a0] sm:$0xff]
        %v3393 = vld [vmem:[#allocation7 + $0x1a8] sm:$0xff]
        %v3394 = vld [vmem:[#allocation7 + $0x1b0] sm:$0xff]
        %v3395 = vld [vmem:[#allocation7 + $0x1b8] sm:$0xff]
        %v3396 = vld [vmem:[#allocation7 + $0x1c0] sm:$0xff]
        %v3397 = vld [vmem:[#allocation7 + $0x1c8] sm:$0xff]
        %v3398 = vld [vmem:[#allocation7 + $0x1d0] sm:$0xff]
        %v3399 = vld [vmem:[#allocation7 + $0x1d8] sm:$0xff]
        %v3400 = vld [vmem:[#allocation7 + $0x1e0] sm:$0xff]
        %v3401 = vld [vmem:[#allocation7 + $0x1e8] sm:$0xff]
        %v3402 = vld [vmem:[#allocation7 + $0x1f0] sm:$0xff]
        %v3403 = vld [vmem:[#allocation7 + $0x1f8] sm:$0xff]
        %v3404 = vld [vmem:[#allocation7 + $0x200] sm:$0xff]
        %v3405 = vld [vmem:[#allocation7 + $0x208] sm:$0xff]
        %v3406 = vld [vmem:[#allocation7 + $0x210] sm:$0xff]
        %v3407 = vld [vmem:[#allocation7 + $0x218] sm:$0xff]
        %v3408 = vld [vmem:[#allocation7 + $0x220] sm:$0xff]
        %v3409 = vld [vmem:[#allocation7 + $0x228] sm:$0xff]
        %v3410 = vld [vmem:[#allocation7 + $0x230] sm:$0xff]
        %v3411 = vld [vmem:[#allocation7 + $0x238] sm:$0xff]
        %v3412 = vld [vmem:[#allocation7 + $0x240] sm:$0xff]
        %v3413 = vld [vmem:[#allocation7 + $0x248] sm:$0xff]
        %v3414 = vld [vmem:[#allocation7 + $0x250] sm:$0xff]
        %v3415 = vld [vmem:[#allocation7 + $0x258] sm:$0xff]
        %v3416 = vld [vmem:[#allocation7 + $0x260] sm:$0xff]
        %v3417 = vld [vmem:[#allocation7 + $0x268] sm:$0xff]
        %v3418 = vld [vmem:[#allocation7 + $0x270] sm:$0xff]
        %v3419 = vld [vmem:[#allocation7 + $0x278] sm:$0xff]
        %v3420 = vld [vmem:[#allocation7 + $0x280] sm:$0xff]
        %v3421 = vld [vmem:[#allocation7 + $0x288] sm:$0xff]
        %v3422 = vld [vmem:[#allocation7 + $0x290] sm:$0xff]
        %v3423 = vld [vmem:[#allocation7 + $0x298] sm:$0xff]
        %v3424 = vld [vmem:[#allocation7 + $0x2a0] sm:$0xff]
        %v3425 = vld [vmem:[#allocation7 + $0x2a8] sm:$0xff]
        %v3426 = vld [vmem:[#allocation7 + $0x2b0] sm:$0xff]
        %v3427 = vld [vmem:[#allocation7 + $0x2b8] sm:$0xff]
        %v3428 = vld [vmem:[#allocation7 + $0x2c0] sm:$0xff]
        %v3429 = vld [vmem:[#allocation7 + $0x2c8] sm:$0xff]
        %v3430 = vld [vmem:[#allocation7 + $0x2d0] sm:$0xff]
        %v3431 = vld [vmem:[#allocation7 + $0x2d8] sm:$0xff]
        %v3432 = vld [vmem:[#allocation7 + $0x2e0] sm:$0xff]
        %v3433 = vld [vmem:[#allocation7 + $0x2e8] sm:$0xff]
        %v3434 = vld [vmem:[#allocation7 + $0x2f0] sm:$0xff]
        %v3435 = vld [vmem:[#allocation7 + $0x2f8] sm:$0xff]
        %v3436 = vld [vmem:[#allocation8] sm:$0x3f]
        %v3438 = vlaneseq
        %v3439 = vshrl.u32 %v3438, 7
        %v3440 = vsub.s32 0, %v3439
        %v3441 = vrot.slane %v3436, %v3440
        %v3442 = vlaneseq
        %v3443 = vshrl.u32 %v3442, 7
        %v3444 = vsub.s32 1, %v3443
        %v3445 = vrot.slane %v3436, %v3444
        %v3446 = vlaneseq
        %v3447 = vshrl.u32 %v3446, 7
        %v3448 = vsub.s32 2, %v3447
        %v3449 = vrot.slane %v3436, %v3448
        %v3450 = vlaneseq
        %v3451 = vshrl.u32 %v3450, 7
        %v3452 = vsub.s32 3, %v3451
        %v3453 = vrot.slane %v3436, %v3452
        %v3454 = vlaneseq
        %v3455 = vshrl.u32 %v3454, 7
        %v3456 = vsub.s32 4, %v3455
        %v3457 = vrot.slane %v3436, %v3456
        %v3458 = vlaneseq
        %v3459 = vshrl.u32 %v3458, 7
        %v3460 = vsub.s32 5, %v3459
        %v3461 = vrot.slane %v3436, %v3460
        %v3564 = vunpack.c.l.b16 %v3340
        %v3565 = vunpack.c.h.b16 %v3340
        %v3566 = vunpack.c.l.b16 %v3341
        %v3567 = vunpack.c.h.b16 %v3341
        %v3568 = vunpack.c.l.b16 %v3342
        %v3569 = vunpack.c.h.b16 %v3342
        %v3570 = vunpack.c.l.b16 %v3343
        %v3571 = vunpack.c.h.b16 %v3343
        %v3572 = vunpack.c.l.b16 %v3344
        %v3573 = vunpack.c.h.b16 %v3344
        %v3574 = vunpack.c.l.b16 %v3345
        %v3575 = vunpack.c.h.b16 %v3345
        %v3576 = vunpack.c.l.b16 %v3346
        %v3577 = vunpack.c.h.b16 %v3346
        %v3578 = vunpack.c.l.b16 %v3347
        %v3579 = vunpack.c.h.b16 %v3347
        %v3580 = vunpack.c.l.b16 %v3348
        %v3581 = vunpack.c.h.b16 %v3348
        %v3582 = vunpack.c.l.b16 %v3349
        %v3583 = vunpack.c.h.b16 %v3349
        %v3584 = vunpack.c.l.b16 %v3350
        %v3585 = vunpack.c.h.b16 %v3350
        %v3586 = vunpack.c.l.b16 %v3351
        %v3587 = vunpack.c.h.b16 %v3351
        %v3588 = vunpack.c.l.b16 %v3352
        %v3589 = vunpack.c.h.b16 %v3352
        %v3590 = vunpack.c.l.b16 %v3353
        %v3591 = vunpack.c.h.b16 %v3353
        %v3592 = vunpack.c.l.b16 %v3354
        %v3593 = vunpack.c.h.b16 %v3354
        %v3594 = vunpack.c.l.b16 %v3355
        %v3595 = vunpack.c.h.b16 %v3355
        %v3596 = vunpack.c.l.b16 %v3356
        %v3597 = vunpack.c.h.b16 %v3356
        %v3598 = vunpack.c.l.b16 %v3357
        %v3599 = vunpack.c.h.b16 %v3357
        %v3600 = vunpack.c.l.b16 %v3358
        %v3601 = vunpack.c.h.b16 %v3358
        %v3602 = vunpack.c.l.b16 %v3359
        %v3603 = vunpack.c.h.b16 %v3359
        %v3604 = vunpack.c.l.b16 %v3360
        %v3605 = vunpack.c.h.b16 %v3360
        %v3606 = vunpack.c.l.b16 %v3361
        %v3607 = vunpack.c.h.b16 %v3361
        %v3608 = vunpack.c.l.b16 %v3362
        %v3609 = vunpack.c.h.b16 %v3362
        %v3610 = vunpack.c.l.b16 %v3363
        %v3611 = vunpack.c.h.b16 %v3363
        %v3612 = vunpack.c.l.b16 %v3364
        %v3613 = vunpack.c.h.b16 %v3364
        %v3614 = vunpack.c.l.b16 %v3365
        %v3615 = vunpack.c.h.b16 %v3365
        %v3616 = vunpack.c.l.b16 %v3366
        %v3617 = vunpack.c.h.b16 %v3366
        %v3618 = vunpack.c.l.b16 %v3367
        %v3619 = vunpack.c.h.b16 %v3367
        %v3620 = vunpack.c.l.b16 %v3368
        %v3621 = vunpack.c.h.b16 %v3368
        %v3622 = vunpack.c.l.b16 %v3369
        %v3623 = vunpack.c.h.b16 %v3369
        %v3624 = vunpack.c.l.b16 %v3370
        %v3625 = vunpack.c.h.b16 %v3370
        %v3626 = vunpack.c.l.b16 %v3371
        %v3627 = vunpack.c.h.b16 %v3371
        %v3628 = vunpack.c.l.b16 %v3372
        %v3629 = vunpack.c.h.b16 %v3372
        %v3630 = vunpack.c.l.b16 %v3373
        %v3631 = vunpack.c.h.b16 %v3373
        %v3632 = vunpack.c.l.b16 %v3374
        %v3633 = vunpack.c.h.b16 %v3374
        %v3634 = vunpack.c.l.b16 %v3375
        %v3635 = vunpack.c.h.b16 %v3375
        %v3636 = vunpack.c.l.b16 %v3376
        %v3637 = vunpack.c.h.b16 %v3376
        %v3638 = vunpack.c.l.b16 %v3377
        %v3639 = vunpack.c.h.b16 %v3377
        %v3640 = vunpack.c.l.b16 %v3378
        %v3641 = vunpack.c.h.b16 %v3378
        %v3642 = vunpack.c.l.b16 %v3379
        %v3643 = vunpack.c.h.b16 %v3379
        %v3644 = vunpack.c.l.b16 %v3380
        %v3645 = vunpack.c.h.b16 %v3380
        %v3646 = vunpack.c.l.b16 %v3381
        %v3647 = vunpack.c.h.b16 %v3381
        %v3648 = vunpack.c.l.b16 %v3382
        %v3649 = vunpack.c.h.b16 %v3382
        %v3650 = vunpack.c.l.b16 %v3383
        %v3651 = vunpack.c.h.b16 %v3383
        %v3652 = vunpack.c.l.b16 %v3384
        %v3653 = vunpack.c.h.b16 %v3384
        %v3654 = vunpack.c.l.b16 %v3385
        %v3655 = vunpack.c.h.b16 %v3385
        %v3656 = vunpack.c.l.b16 %v3386
        %v3657 = vunpack.c.h.b16 %v3386
        %v3658 = vunpack.c.l.b16 %v3387
        %v3659 = vunpack.c.h.b16 %v3387
        %v3660 = vunpack.c.l.b16 %v3388
        %v3661 = vunpack.c.h.b16 %v3388
        %v3662 = vunpack.c.l.b16 %v3389
        %v3663 = vunpack.c.h.b16 %v3389
        %v3664 = vunpack.c.l.b16 %v3390
        %v3665 = vunpack.c.h.b16 %v3390
        %v3666 = vunpack.c.l.b16 %v3391
        %v3667 = vunpack.c.h.b16 %v3391
        %v3668 = vunpack.c.l.b16 %v3392
        %v3669 = vunpack.c.h.b16 %v3392
        %v3670 = vunpack.c.l.b16 %v3393
        %v3671 = vunpack.c.h.b16 %v3393
        %v3672 = vunpack.c.l.b16 %v3394
        %v3673 = vunpack.c.h.b16 %v3394
        %v3674 = vunpack.c.l.b16 %v3395
        %v3675 = vunpack.c.h.b16 %v3395
        %v3676 = vunpack.c.l.b16 %v3396
        %v3677 = vunpack.c.h.b16 %v3396
        %v3678 = vunpack.c.l.b16 %v3397
        %v3679 = vunpack.c.h.b16 %v3397
        %v3680 = vunpack.c.l.b16 %v3398
        %v3681 = vunpack.c.h.b16 %v3398
        %v3682 = vunpack.c.l.b16 %v3399
        %v3683 = vunpack.c.h.b16 %v3399
        %v3684 = vunpack.c.l.b16 %v3400
        %v3685 = vunpack.c.h.b16 %v3400
        %v3686 = vunpack.c.l.b16 %v3401
        %v3687 = vunpack.c.h.b16 %v3401
        %v3688 = vunpack.c.l.b16 %v3402
        %v3689 = vunpack.c.h.b16 %v3402
        %v3690 = vunpack.c.l.b16 %v3403
        %v3691 = vunpack.c.h.b16 %v3403
        %v3692 = vunpack.c.l.b16 %v3404
        %v3693 = vunpack.c.h.b16 %v3404
        %v3694 = vunpack.c.l.b16 %v3405
        %v3695 = vunpack.c.h.b16 %v3405
        %v3696 = vunpack.c.l.b16 %v3406
        %v3697 = vunpack.c.h.b16 %v3406
        %v3698 = vunpack.c.l.b16 %v3407
        %v3699 = vunpack.c.h.b16 %v3407
        %v3700 = vunpack.c.l.b16 %v3408
        %v3701 = vunpack.c.h.b16 %v3408
        %v3702 = vunpack.c.l.b16 %v3409
        %v3703 = vunpack.c.h.b16 %v3409
        %v3704 = vunpack.c.l.b16 %v3410
        %v3705 = vunpack.c.h.b16 %v3410
        %v3706 = vunpack.c.l.b16 %v3411
        %v3707 = vunpack.c.h.b16 %v3411
        %v3708 = vunpack.c.l.b16 %v3412
        %v3709 = vunpack.c.h.b16 %v3412
        %v3710 = vunpack.c.l.b16 %v3413
        %v3711 = vunpack.c.h.b16 %v3413
        %v3712 = vunpack.c.l.b16 %v3414
        %v3713 = vunpack.c.h.b16 %v3414
        %v3714 = vunpack.c.l.b16 %v3415
        %v3715 = vunpack.c.h.b16 %v3415
        %v3716 = vunpack.c.l.b16 %v3416
        %v3717 = vunpack.c.h.b16 %v3416
        %v3718 = vunpack.c.l.b16 %v3417
        %v3719 = vunpack.c.h.b16 %v3417
        %v3720 = vunpack.c.l.b16 %v3418
        %v3721 = vunpack.c.h.b16 %v3418
        %v3722 = vunpack.c.l.b16 %v3419
        %v3723 = vunpack.c.h.b16 %v3419
        %v3724 = vunpack.c.l.b16 %v3420
        %v3725 = vunpack.c.h.b16 %v3420
        %v3726 = vunpack.c.l.b16 %v3421
        %v3727 = vunpack.c.h.b16 %v3421
        %v3728 = vunpack.c.l.b16 %v3422
        %v3729 = vunpack.c.h.b16 %v3422
        %v3730 = vunpack.c.l.b16 %v3423
        %v3731 = vunpack.c.h.b16 %v3423
        %v3732 = vunpack.c.l.b16 %v3424
        %v3733 = vunpack.c.h.b16 %v3424
        %v3734 = vunpack.c.l.b16 %v3425
        %v3735 = vunpack.c.h.b16 %v3425
        %v3736 = vunpack.c.l.b16 %v3426
        %v3737 = vunpack.c.h.b16 %v3426
        %v3738 = vunpack.c.l.b16 %v3427
        %v3739 = vunpack.c.h.b16 %v3427
        %v3740 = vunpack.c.l.b16 %v3428
        %v3741 = vunpack.c.h.b16 %v3428
        %v3742 = vunpack.c.l.b16 %v3429
        %v3743 = vunpack.c.h.b16 %v3429
        %v3744 = vunpack.c.l.b16 %v3430
        %v3745 = vunpack.c.h.b16 %v3430
        %v3746 = vunpack.c.l.b16 %v3431
        %v3747 = vunpack.c.h.b16 %v3431
        %v3748 = vunpack.c.l.b16 %v3432
        %v3749 = vunpack.c.h.b16 %v3432
        %v3750 = vunpack.c.l.b16 %v3433
        %v3751 = vunpack.c.h.b16 %v3433
        %v3752 = vunpack.c.l.b16 %v3434
        %v3753 = vunpack.c.h.b16 %v3434
        %v3754 = vunpack.c.l.b16 %v3435
        %v3755 = vunpack.c.h.b16 %v3435
        %v3756 = vpack.c.b16 %v3570, %v3564
        %v3757 = vpack.c.b16 %v3571, %v3565
        %v3758 = vpack.c.b16 %v3572, %v3566
        %v3759 = vpack.c.b16 %v3573, %v3567
        %v3760 = vpack.c.b16 %v3574, %v3568
        %v3761 = vpack.c.b16 %v3575, %v3569
        %v3762 = vpack.c.b16 %v3582, %v3576
        %v3763 = vpack.c.b16 %v3583, %v3577
        %v3764 = vpack.c.b16 %v3584, %v3578
        %v3765 = vpack.c.b16 %v3585, %v3579
        %v3766 = vpack.c.b16 %v3586, %v3580
        %v3767 = vpack.c.b16 %v3587, %v3581
        %v3768 = vpack.c.b16 %v3594, %v3588
        %v3769 = vpack.c.b16 %v3595, %v3589
        %v3770 = vpack.c.b16 %v3596, %v3590
        %v3771 = vpack.c.b16 %v3597, %v3591
        %v3772 = vpack.c.b16 %v3598, %v3592
        %v3773 = vpack.c.b16 %v3599, %v3593
        %v3774 = vpack.c.b16 %v3606, %v3600
        %v3775 = vpack.c.b16 %v3607, %v3601
        %v3776 = vpack.c.b16 %v3608, %v3602
        %v3777 = vpack.c.b16 %v3609, %v3603
        %v3778 = vpack.c.b16 %v3610, %v3604
        %v3779 = vpack.c.b16 %v3611, %v3605
        %v3780 = vpack.c.b16 %v3618, %v3612
        %v3781 = vpack.c.b16 %v3619, %v3613
        %v3782 = vpack.c.b16 %v3620, %v3614
        %v3783 = vpack.c.b16 %v3621, %v3615
        %v3784 = vpack.c.b16 %v3622, %v3616
        %v3785 = vpack.c.b16 %v3623, %v3617
        %v3786 = vpack.c.b16 %v3630, %v3624
        %v3787 = vpack.c.b16 %v3631, %v3625
        %v3788 = vpack.c.b16 %v3632, %v3626
        %v3789 = vpack.c.b16 %v3633, %v3627
        %v3790 = vpack.c.b16 %v3634, %v3628
        %v3791 = vpack.c.b16 %v3635, %v3629
        %v3792 = vpack.c.b16 %v3642, %v3636
        %v3793 = vpack.c.b16 %v3643, %v3637
        %v3794 = vpack.c.b16 %v3644, %v3638
        %v3795 = vpack.c.b16 %v3645, %v3639
        %v3796 = vpack.c.b16 %v3646, %v3640
        %v3797 = vpack.c.b16 %v3647, %v3641
        %v3798 = vpack.c.b16 %v3654, %v3648
        %v3799 = vpack.c.b16 %v3655, %v3649
        %v3800 = vpack.c.b16 %v3656, %v3650
        %v3801 = vpack.c.b16 %v3657, %v3651
        %v3802 = vpack.c.b16 %v3658, %v3652
        %v3803 = vpack.c.b16 %v3659, %v3653
        %v3804 = vpack.c.b16 %v3666, %v3660
        %v3805 = vpack.c.b16 %v3667, %v3661
        %v3806 = vpack.c.b16 %v3668, %v3662
        %v3807 = vpack.c.b16 %v3669, %v3663
        %v3808 = vpack.c.b16 %v3670, %v3664
        %v3809 = vpack.c.b16 %v3671, %v3665
        %v3810 = vpack.c.b16 %v3678, %v3672
        %v3811 = vpack.c.b16 %v3679, %v3673
        %v3812 = vpack.c.b16 %v3680, %v3674
        %v3813 = vpack.c.b16 %v3681, %v3675
        %v3814 = vpack.c.b16 %v3682, %v3676
        %v3815 = vpack.c.b16 %v3683, %v3677
        %v3816 = vpack.c.b16 %v3690, %v3684
        %v3817 = vpack.c.b16 %v3691, %v3685
        %v3818 = vpack.c.b16 %v3692, %v3686
        %v3819 = vpack.c.b16 %v3693, %v3687
        %v3820 = vpack.c.b16 %v3694, %v3688
        %v3821 = vpack.c.b16 %v3695, %v3689
        %v3822 = vpack.c.b16 %v3702, %v3696
        %v3823 = vpack.c.b16 %v3703, %v3697
        %v3824 = vpack.c.b16 %v3704, %v3698
        %v3825 = vpack.c.b16 %v3705, %v3699
        %v3826 = vpack.c.b16 %v3706, %v3700
        %v3827 = vpack.c.b16 %v3707, %v3701
        %v3828 = vpack.c.b16 %v3714, %v3708
        %v3829 = vpack.c.b16 %v3715, %v3709
        %v3830 = vpack.c.b16 %v3716, %v3710
        %v3831 = vpack.c.b16 %v3717, %v3711
        %v3832 = vpack.c.b16 %v3718, %v3712
        %v3833 = vpack.c.b16 %v3719, %v3713
        %v3834 = vpack.c.b16 %v3726, %v3720
        %v3835 = vpack.c.b16 %v3727, %v3721
        %v3836 = vpack.c.b16 %v3728, %v3722
        %v3837 = vpack.c.b16 %v3729, %v3723
        %v3838 = vpack.c.b16 %v3730, %v3724
        %v3839 = vpack.c.b16 %v3731, %v3725
        %v3840 = vpack.c.b16 %v3738, %v3732
        %v3841 = vpack.c.b16 %v3739, %v3733
        %v3842 = vpack.c.b16 %v3740, %v3734
        %v3843 = vpack.c.b16 %v3741, %v3735
        %v3844 = vpack.c.b16 %v3742, %v3736
        %v3845 = vpack.c.b16 %v3743, %v3737
        %v3846 = vpack.c.b16 %v3750, %v3744
        %v3847 = vpack.c.b16 %v3751, %v3745
        %v3848 = vpack.c.b16 %v3752, %v3746
        %v3849 = vpack.c.b16 %v3753, %v3747
        %v3850 = vpack.c.b16 %v3754, %v3748
        %v3851 = vpack.c.b16 %v3755, %v3749
        %3948 = vmatprep.subr.bf16.mxu0 %v3757
        %3949 = vmatpush1.bf16.msra.mxu0 %v3756
        %3950 = vmatprep.subr.bf16.mxu0 %v3763
        %3951 = vmatpush1.bf16.msra.mxu0 %v3762
        %3952 = vmatprep.subr.bf16.mxu0 %v3769
        %3953 = vmatpush1.bf16.msra.mxu0 %v3768
        %3954 = vmatprep.subr.bf16.mxu0 %v3775
        %3955 = vmatpush1.bf16.msra.mxu0 %v3774
        %3956 = vmatprep.subr.bf16.mxu0 %v3781
        %3957 = vmatpush1.bf16.msra.mxu0 %v3780
        %3958 = vmatprep.subr.bf16.mxu0 %v3787
        %3959 = vmatpush1.bf16.msra.mxu0 %v3786
        %3960 = vmatprep.subr.bf16.mxu0 %v3793
        %3961 = vmatpush1.bf16.msra.mxu0 %v3792
        %3962 = vmatprep.subr.bf16.mxu0 %v3799
        %3963 = vmatpush1.bf16.msra.mxu0 %v3798
        %3964 = vmatprep.subr.bf16.mxu0 %v3805
        %3965 = vmatpush1.bf16.msra.mxu0 %v3804
        %3966 = vmatprep.subr.bf16.mxu0 %v3811
        %3967 = vmatpush1.bf16.msra.mxu0 %v3810
        %3968 = vmatprep.subr.bf16.mxu0 %v3817
        %3969 = vmatpush1.bf16.msra.mxu0 %v3816
        %3970 = vmatprep.subr.bf16.mxu0 %v3823
        %3971 = vmatpush1.bf16.msra.mxu0 %v3822
        %3972 = vmatprep.subr.bf16.mxu0 %v3829
        %3973 = vmatpush1.bf16.msra.mxu0 %v3828
        %3974 = vmatprep.subr.bf16.mxu0 %v3835
        %3975 = vmatpush1.bf16.msra.mxu0 %v3834
        %3976 = vmatprep.subr.bf16.mxu0 %v3841
        %3977 = vmatpush1.bf16.msra.mxu0 %v3840
        %3978 = vmatprep.subr.bf16.mxu0 %v3847
        %3979 = vmatpush1.bf16.msra.mxu0 %v3846
        %3980 = vmatprep.mubr.bf16.mxu0 %v3333
        %3981 = vmatmul.mubr.bf16.gmra.mrb[0].mxu0 %v3332
        %v3982 = vpop.f32.mrb[0].mxu0
        %v3983 = vadd.f32 %v3441, %v3982
        %v3984 = vpop.f32.mrb[0].mxu0
        %v3985 = vadd.f32 %v3445, %v3984
        %v3986 = vpop.f32.mrb[0].mxu0
        %v3987 = vadd.f32 %v3441, %v3986
        %v3988 = vpop.f32.mrb[0].mxu0
        %v3989 = vadd.f32 %v3445, %v3988
        %3990 = vmatprep.mubr.bf16.mxu0 %v3335
        %3991 = vmatmul.mubr.bf16.gmra.mrb[0].mxu0 %v3334
        %v3992 = vpop.f32.mrb[0].mxu0
        %v3993 = vadd.f32 %v3441, %v3992
        %v3994 = vpop.f32.mrb[0].mxu0
        %v3995 = vadd.f32 %v3445, %v3994
        %v3996 = vpop.f32.mrb[0].mxu0
        %v3997 = vadd.f32 %v3441, %v3996
        %v3998 = vpop.f32.mrb[0].mxu0
        %v3999 = vadd.f32 %v3445, %v3998
        %4000 = vmatprep.mubr.bf16.mxu0 %v3337
        %4001 = vmatmul.mubr.bf16.gmra.mrb[0].mxu0 %v3336
        %v4002 = vpop.f32.mrb[0].mxu0
        %v4003 = vadd.f32 %v3441, %v4002
        %v4004 = vpop.f32.mrb[0].mxu0
        %v4005 = vadd.f32 %v3445, %v4004
        %v4006 = vpop.f32.mrb[0].mxu0
        %v4007 = vadd.f32 %v3441, %v4006
        %v4008 = vpop.f32.mrb[0].mxu0
        %v4009 = vadd.f32 %v3445, %v4008
        %4010 = vmatprep.mubr.bf16.mxu0 %v3339
        %4011 = vmatmul.mubr.bf16.gmra.mrb[0].mxu0 %v3338
        %v4012 = vpop.f32.mrb[0].mxu0
        %v4013 = vadd.f32 %v3441, %v4012
        %v4014 = vpop.f32.mrb[0].mxu0
        %v4015 = vadd.f32 %v3445, %v4014
        %v4016 = vpop.f32.mrb[0].mxu0
        %v4017 = vadd.f32 %v3441, %v4016
        %v4018 = vpop.f32.mrb[0].mxu0
        %v4019 = vadd.f32 %v3445, %v4018
        %4020 = vdwg.mxu0
        %4021 = vmatprep.subr.bf16.mxu0 %v3759
        %4022 = vmatpush1.bf16.msra.mxu0 %v3758
        %4023 = vmatprep.subr.bf16.mxu0 %v3765
        %4024 = vmatpush1.bf16.msra.mxu0 %v3764
        %4025 = vmatprep.subr.bf16.mxu0 %v3771
        %4026 = vmatpush1.bf16.msra.mxu0 %v3770
        %4027 = vmatprep.subr.bf16.mxu0 %v3777
        %4028 = vmatpush1.bf16.msra.mxu0 %v3776
        %4029 = vmatprep.subr.bf16.mxu0 %v3783
        %4030 = vmatpush1.bf16.msra.mxu0 %v3782
        %4031 = vmatprep.subr.bf16.mxu0 %v3789
        %4032 = vmatpush1.bf16.msra.mxu0 %v3788
        %4033 = vmatprep.subr.bf16.mxu0 %v3795
        %4034 = vmatpush1.bf16.msra.mxu0 %v3794
        %4035 = vmatprep.subr.bf16.mxu0 %v3801
        %4036 = vmatpush1.bf16.msra.mxu0 %v3800
        %4037 = vmatprep.subr.bf16.mxu0 %v3807
        %4038 = vmatpush1.bf16.msra.mxu0 %v3806
        %4039 = vmatprep.subr.bf16.mxu0 %v3813
        %4040 = vmatpush1.bf16.msra.mxu0 %v3812
        %4041 = vmatprep.subr.bf16.mxu0 %v3819
        %4042 = vmatpush1.bf16.msra.mxu0 %v3818
        %4043 = vmatprep.subr.bf16.mxu0 %v3825
        %4044 = vmatpush1.bf16.msra.mxu0 %v3824
        %4045 = vmatprep.subr.bf16.mxu0 %v3831
        %4046 = vmatpush1.bf16.msra.mxu0 %v3830
        %4047 = vmatprep.subr.bf16.mxu0 %v3837
        %4048 = vmatpush1.bf16.msra.mxu0 %v3836
        %4049 = vmatprep.subr.bf16.mxu0 %v3843
        %4050 = vmatpush1.bf16.msra.mxu0 %v3842
        %4051 = vmatprep.subr.bf16.mxu0 %v3849
        %4052 = vmatpush1.bf16.msra.mxu0 %v3848
        %4053 = vmatprep.mubr.bf16.mxu0 %v3333
        %4054 = vmatmul.mubr.bf16.gmra.mrb[0].mxu0 %v3332
        %v4055 = vpop.f32.mrb[0].mxu0
        %v4056 = vadd.f32 %v3449, %v4055
        %v4057 = vpop.f32.mrb[0].mxu0
        %v4058 = vadd.f32 %v3453, %v4057
        %v4059 = vpop.f32.mrb[0].mxu0
        %v4060 = vadd.f32 %v3449, %v4059
        %v4061 = vpop.f32.mrb[0].mxu0
        %v4062 = vadd.f32 %v3453, %v4061
        %4063 = vmatprep.mubr.bf16.mxu0 %v3335
        %4064 = vmatmul.mubr.bf16.gmra.mrb[0].mxu0 %v3334
        %v4065 = vpop.f32.mrb[0].mxu0
        %v4066 = vadd.f32 %v3449, %v4065
        %v4067 = vpop.f32.mrb[0].mxu0
        %v4068 = vadd.f32 %v3453, %v4067
        %v4069 = vpop.f32.mrb[0].mxu0
        %v4070 = vadd.f32 %v3449, %v4069
        %v4071 = vpop.f32.mrb[0].mxu0
        %v4072 = vadd.f32 %v3453, %v4071
        %4073 = vmatprep.mubr.bf16.mxu0 %v3337
        %4074 = vmatmul.mubr.bf16.gmra.mrb[0].mxu0 %v3336
        %v4075 = vpop.f32.mrb[0].mxu0
        %v4076 = vadd.f32 %v3449, %v4075
        %v4077 = vpop.f32.mrb[0].mxu0
        %v4078 = vadd.f32 %v3453, %v4077
        %v4079 = vpop.f32.mrb[0].mxu0
        %v4080 = vadd.f32 %v3449, %v4079
        %v4081 = vpop.f32.mrb[0].mxu0
        %v4082 = vadd.f32 %v3453, %v4081
        %4083 = vmatprep.mubr.bf16.mxu0 %v3339
        %4084 = vmatmul.mubr.bf16.gmra.mrb[0].mxu0 %v3338
        %v4085 = vpop.f32.mrb[0].mxu0
        %v4086 = vadd.f32 %v3449, %v4085
        %v4087 = vpop.f32.mrb[0].mxu0
        %v4088 = vadd.f32 %v3453, %v4087
        %v4089 = vpop.f32.mrb[0].mxu0
        %v4090 = vadd.f32 %v3449, %v4089
        %v4091 = vpop.f32.mrb[0].mxu0
        %v4092 = vadd.f32 %v3453, %v4091
        %4093 = vdwg.mxu0
        %4094 = vmatprep.subr.bf16.mxu0 %v3761
        %4095 = vmatpush1.bf16.msra.mxu0 %v3760
        %4096 = vmatprep.subr.bf16.mxu0 %v3767
        %4097 = vmatpush1.bf16.msra.mxu0 %v3766
        %4098 = vmatprep.subr.bf16.mxu0 %v3773
        %4099 = vmatpush1.bf16.msra.mxu0 %v3772
        %4100 = vmatprep.subr.bf16.mxu0 %v3779
        %4101 = vmatpush1.bf16.msra.mxu0 %v3778
        %4102 = vmatprep.subr.bf16.mxu0 %v3785
        %4103 = vmatpush1.bf16.msra.mxu0 %v3784
        %4104 = vmatprep.subr.bf16.mxu0 %v3791
        %4105 = vmatpush1.bf16.msra.mxu0 %v3790
        %4106 = vmatprep.subr.bf16.mxu0 %v3797
        %4107 = vmatpush1.bf16.msra.mxu0 %v3796
        %4108 = vmatprep.subr.bf16.mxu0 %v3803
        %4109 = vmatpush1.bf16.msra.mxu0 %v3802
        %4110 = vmatprep.subr.bf16.mxu0 %v3809
        %4111 = vmatpush1.bf16.msra.mxu0 %v3808
        %4112 = vmatprep.subr.bf16.mxu0 %v3815
        %4113 = vmatpush1.bf16.msra.mxu0 %v3814
        %4114 = vmatprep.subr.bf16.mxu0 %v3821
        %4115 = vmatpush1.bf16.msra.mxu0 %v3820
        %4116 = vmatprep.subr.bf16.mxu0 %v3827
        %4117 = vmatpush1.bf16.msra.mxu0 %v3826
        %4118 = vmatprep.subr.bf16.mxu0 %v3833
        %4119 = vmatpush1.bf16.msra.mxu0 %v3832
        %4120 = vmatprep.subr.bf16.mxu0 %v3839
        %4121 = vmatpush1.bf16.msra.mxu0 %v3838
        %4122 = vmatprep.subr.bf16.mxu0 %v3845
        %4123 = vmatpush1.bf16.msra.mxu0 %v3844
        %4124 = vmatprep.subr.bf16.mxu0 %v3851
        %4125 = vmatpush1.bf16.msra.mxu0 %v3850
        %4126 = vmatprep.mubr.bf16.mxu0 %v3333
        %4127 = vmatmul.mubr.bf16.gmra.mrb[0].mxu0 %v3332
        %v4128 = vpop.f32.mrb[0].mxu0
        %v4129 = vadd.f32 %v3457, %v4128
        %v4130 = vpop.f32.mrb[0].mxu0
        %v4131 = vadd.f32 %v3461, %v4130
        %v4132 = vpop.f32.mrb[0].mxu0
        %v4133 = vadd.f32 %v3457, %v4132
        %v4134 = vpop.f32.mrb[0].mxu0
        %v4135 = vadd.f32 %v3461, %v4134
        %4136 = vmatprep.mubr.bf16.mxu0 %v3335
        %4137 = vmatmul.mubr.bf16.gmra.mrb[0].mxu0 %v3334
        %v4138 = vpop.f32.mrb[0].mxu0
        %v4139 = vadd.f32 %v3457, %v4138
        %v4140 = vpop.f32.mrb[0].mxu0
        %v4141 = vadd.f32 %v3461, %v4140
        %v4142 = vpop.f32.mrb[0].mxu0
        %v4143 = vadd.f32 %v3457, %v4142
        %v4144 = vpop.f32.mrb[0].mxu0
        %v4145 = vadd.f32 %v3461, %v4144
        %4146 = vmatprep.mubr.bf16.mxu0 %v3337
        %4147 = vmatmul.mubr.bf16.gmra.mrb[0].mxu0 %v3336
        %v4148 = vpop.f32.mrb[0].mxu0
        %v4149 = vadd.f32 %v3457, %v4148
        %v4150 = vpop.f32.mrb[0].mxu0
        %v4151 = vadd.f32 %v3461, %v4150
        %v4152 = vpop.f32.mrb[0].mxu0
        %v4153 = vadd.f32 %v3457, %v4152
        %v4154 = vpop.f32.mrb[0].mxu0
        %v4155 = vadd.f32 %v3461, %v4154
        %4156 = vmatprep.mubr.bf16.mxu0 %v3339
        %4157 = vmatmul.mubr.bf16.gmra.mrb[0].mxu0 %v3338
        %v4158 = vpop.f32.mrb[0].mxu0
        %v4159 = vadd.f32 %v3457, %v4158
        %v4160 = vpop.f32.mrb[0].mxu0
        %v4161 = vadd.f32 %v3461, %v4160
        %v4162 = vpop.f32.mrb[0].mxu0
        %v4163 = vadd.f32 %v3457, %v4162
        %v4164 = vpop.f32.mrb[0].mxu0
        %v4165 = vadd.f32 %v3461, %v4164
        %4166 = vdwg.mxu0
        %4167 = vst [vmem:[%s257] sm:$0xff] %v3983
        %4168 = vst [vmem:[%s257 + $0x8] sm:$0xff] %v3985
        %4169 = vst [vmem:[%s257 + $0x10] sm:$0xff] %v4056
        %4170 = vst [vmem:[%s257 + $0x18] sm:$0xff] %v4058
        %4171 = vst [vmem:[%s257 + $0x20] sm:$0xff] %v4129
        %4172 = vst [vmem:[%s257 + $0x28] sm:$0xff] %v4131
        %4173 = vst [vmem:[%s257 + $0x30] sm:$0xff] %v3987
        %4174 = vst [vmem:[%s257 + $0x38] sm:$0xff] %v3989
        %4175 = vst [vmem:[%s257 + $0x40] sm:$0xff] %v4060
        %4176 = vst [vmem:[%s257 + $0x48] sm:$0xff] %v4062
        %4177 = vst [vmem:[%s257 + $0x50] sm:$0xff] %v4133
        %4178 = vst [vmem:[%s257 + $0x58] sm:$0xff] %v4135
        %4179 = vst [vmem:[%s257 + $0x60] sm:$0xff] %v3993
        %4180 = vst [vmem:[%s257 + $0x68] sm:$0xff] %v3995
        %4181 = vst [vmem:[%s257 + $0x70] sm:$0xff] %v4066
        %4182 = vst [vmem:[%s257 + $0x78] sm:$0xff] %v4068
        %4183 = vst [vmem:[%s257 + $0x80] sm:$0xff] %v4139
        %4184 = vst [vmem:[%s257 + $0x88] sm:$0xff] %v4141
        %4185 = vst [vmem:[%s257 + $0x90] sm:$0xff] %v3997
        %4186 = vst [vmem:[%s257 + $0x98] sm:$0xff] %v3999
        %4187 = vst [vmem:[%s257 + $0xa0] sm:$0xff] %v4070
        %4188 = vst [vmem:[%s257 + $0xa8] sm:$0xff] %v4072
        %4189 = vst [vmem:[%s257 + $0xb0] sm:$0xff] %v4143
        %4190 = vst [vmem:[%s257 + $0xb8] sm:$0xff] %v4145
        %4191 = vst [vmem:[%s257 + $0xc0] sm:$0xff] %v4003
        %4192 = vst [vmem:[%s257 + $0xc8] sm:$0xff] %v4005
        %4193 = vst [vmem:[%s257 + $0xd0] sm:$0xff] %v4076
        %4194 = vst [vmem:[%s257 + $0xd8] sm:$0xff] %v4078
        %4195 = vst [vmem:[%s257 + $0xe0] sm:$0xff] %v4149
        %4196 = vst [vmem:[%s257 + $0xe8] sm:$0xff] %v4151
        %4197 = vst [vmem:[%s257 + $0xf0] sm:$0xff] %v4007
        %4198 = vst [vmem:[%s257 + $0xf8] sm:$0xff] %v4009
        %4199 = vst [vmem:[%s257 + $0x100] sm:$0xff] %v4080
        %4200 = vst [vmem:[%s257 + $0x108] sm:$0xff] %v4082
        %4201 = vst [vmem:[%s257 + $0x110] sm:$0xff] %v4153
        %4202 = vst [vmem:[%s257 + $0x118] sm:$0xff] %v4155
        %4203 = vst [vmem:[%s257 + $0x120] sm:$0xff] %v4013
        %4204 = vst [vmem:[%s257 + $0x128] sm:$0xff] %v4015
        %4205 = vst [vmem:[%s257 + $0x130] sm:$0xff] %v4086
        %4206 = vst [vmem:[%s257 + $0x138] sm:$0xff] %v4088
        %4207 = vst [vmem:[%s257 + $0x140] sm:$0xff] %v4159
        %4208 = vst [vmem:[%s257 + $0x148] sm:$0xff] %v4161
        %4209 = vst [vmem:[%s257 + $0x150] sm:$0xff] %v4017
        %4210 = vst [vmem:[%s257 + $0x158] sm:$0xff] %v4019
        %4211 = vst [vmem:[%s257 + $0x160] sm:$0xff] %v4090
        %4212 = vst [vmem:[%s257 + $0x168] sm:$0xff] %v4092
        %4213 = vst [vmem:[%s257 + $0x170] sm:$0xff] %v4163
        %4214 = vst [vmem:[%s257 + $0x178] sm:$0xff] %v4165
        %s4215 = sand.u32 %s120, 1
        %s4216 = scalar_lea.sflag [#allocation4], %s4215
        %s4217 = sand.u32 %s120, 1
        %s4218 = smul.addr %s4217, 384
        %s4219 = scalar_lea.vmem [#allocation10], %s4218
        // Predicated region
        $region53: #{tpu_custom_call.1} parent=35 // pred_check
          %p4220 = pneg %p130
        $region54: #{tpu_custom_call.1} parent=35 // pred_check_branch
          %4222 = sbr.rel (%p4220) target = $region56
        $region55: #{tpu_custom_call.1} parent=35 // pred_region
          %s4224 = ssub.s32 6144, 6144
          %4225 = vsyncadd %s4216, %s4224
          %s4226 = smul.addr %s23, 48
          %s4227 = smul.addr %s4226, 128
          %s4228 = scalar_lea.hbm %s4, %s4227
          %s4229 = sshll.u32 %s4219, 4
          %s4230 = int_to_ptr.vmem [resolvable:$true] %s4229
          %4235 = dma.vmem_to_hbm [thread:$0]  %s4230, 6144, %s4228, %s4216, 768, 768, 48
        $region56: #{tpu_custom_call.1} parent=35 // pred_fallthru
          _
      $region36: #{tpu_custom_call.1} parent=5 // pred_fallthru
        _
      %p4236 = scmp.le.s32.totalorder 2, %s18
      // Predicated region
      $region57: #{tpu_custom_call.1} parent=5 // pred_check
        %p4237 = pneg %p4236
      $region58: #{tpu_custom_call.1} parent=5 // pred_check_branch
        %4239 = sbr.rel (%p4237) target = $region60
      $region59: #{tpu_custom_call.1} parent=5 // pred_region
        %s4240 = ssub.s32 %s18, 2
        // Predicated region
        $region61: #{tpu_custom_call.1} parent=59 // pred_check
          %p4241 = pneg %p136
        $region62: #{tpu_custom_call.1} parent=59 // pred_check_branch
          %4243 = sbr.rel (%p4241) target = $region64
        $region63: #{tpu_custom_call.1} parent=59 // pred_region
          %s4244 = sand.u32 %s121, 1
          %s4245 = scalar_lea.sflag [#allocation4], %s4244
          %s4246 = sand.u32 %s121, 1
          %s4247 = smul.addr %s4246, 384
          %s4248 = scalar_lea.vmem [#allocation10], %s4247
          %4249 = dma.done %s4245, 6144
        $region64: #{tpu_custom_call.1} parent=59 // pred_fallthru
          _
      $region60: #{tpu_custom_call.1} parent=5 // pred_fallthru
        _
    $region6: #{tpu_custom_call.1} parent=1 // loop_footer
      %s22 = sadd.s32 1, %s18
    $region7: #{tpu_custom_call.1} parent=1 // loop_footer_branch
      %17 = sbr.rel target = $region3
    $region8: #{tpu_custom_call.1} parent=1 // loop_exit
      _
    %4250 = vsyncpa [#allocation3], 1
    %s4251 = scalar_lea.sflag [#allocation3], 1
    %4252 = vsyncpa %s4251, 1
    %4253 = vsyncpa [#allocation6], 1
    %4254 = vsyncpa [#allocation9], 1
    %4255 = vsyncpa [#allocation4], 1
    %s4256 = scalar_lea.sflag [#allocation4], 1
    %4257 = vsyncpa %s4256, 1

</llo_original>
